<compile_context>
chip_gen: v7x
topology: tpu7x:2x2x1
jax: 0.10.0
libtpu: 0.0.40
codegen_flags: <defaults>
</compile_context>

<pallas_src>
import math

import jax
import jax.numpy as jnp
from jax.experimental import pallas as pl
from jax.experimental.pallas import tpu as pltpu

# --- problem sizes ------------------------------------------------------------------------
S_TAB   = 4                       # tabular token sequence length
S_TS    = 8                       # time-series token sequence length
D_TOKEN = 192                     # module default d_token
D_PAD   = 256                     # d_token padded up to a multiple of 128 lanes
TAB_FLAT = S_TAB * D_TOKEN        # 768
TS_FLAT  = S_TS * D_TOKEN         # 1536
IN_FLAT  = TAB_FLAT + TS_FLAT     # 2304 = MLP in_features
B        = 192                    # example batch (exercises batch padding + a 2-step grid)


def flat_concat_mlp_kernel(xtab_ref, xts_ref, w1_ref, w23_ref, b_ref, out_ref):
    """Fused concat-matmul (split over the two inputs) + ReLU MLP + head for one batch block."""
    # Layer 1: concat(flatten(tab), flatten(ts)) @ W1 + b1, as a split matmul so the
    # concatenated activation is never materialized.
    h = (jnp.dot(xtab_ref[...], w1_ref[:TAB_FLAT, :], preferred_element_type=jnp.float32)
         + jnp.dot(xts_ref[...], w1_ref[TAB_FLAT:, :], preferred_element_type=jnp.float32)
         + b_ref[0:1, :])
    h = jnp.maximum(h, 0.0)                       # ReLU (Dropout(0.1) = identity in eval)

    # Layer 2
    h = (jnp.dot(h.astype(jnp.bfloat16), w23_ref[0], preferred_element_type=jnp.float32)
         + b_ref[1:2, :])
    h = jnp.maximum(h, 0.0)                       # ReLU (Dropout = identity in eval)

    # Head (no activation)
    out = (jnp.dot(h.astype(jnp.bfloat16), w23_ref[1], preferred_element_type=jnp.float32)
           + b_ref[2:3, :])
    out_ref[...] = out.astype(out_ref.dtype)


def flat_concat_mlp(tab_tokens, ts_tokens, params, *, block_b=128):
    """Wrapper: flatten/concat handled as free reshapes, batch padded to a multiple of block_b."""
    w1, w23, biases = params
    b = tab_tokens.shape[0]
    # torch .flatten(start_dim=1) -- a free reshape done as wrapper glue.
    x_tab = tab_tokens.reshape(b, TAB_FLAT).astype(jnp.bfloat16)
    x_ts = ts_tokens.reshape(b, TS_FLAT).astype(jnp.bfloat16)

    n_blocks = pl.cdiv(b, block_b)
    b_pad = n_blocks * block_b
    if b_pad != b:
        x_tab = jnp.pad(x_tab, ((0, b_pad - b), (0, 0)))
        x_ts = jnp.pad(x_ts, ((0, b_pad - b), (0, 0)))

    flops = 2 * b_pad * (IN_FLAT + 2 * D_PAD) * D_PAD
    bytes_accessed = (w1.size * 2 + w23.size * 2 + biases.size * 4
                      + x_tab.size * 2 + x_ts.size * 2 + b_pad * D_PAD * 4)

    out = pl.pallas_call(
        flat_concat_mlp_kernel,
        out_shape=jax.ShapeDtypeStruct((b_pad, D_PAD), jnp.float32),
        grid=(n_blocks,),
        in_specs=[
            pl.BlockSpec((block_b, TAB_FLAT), lambda i: (i, 0)),   # activations: batch-blocked
            pl.BlockSpec((block_b, TS_FLAT), lambda i: (i, 0)),
            pl.BlockSpec((IN_FLAT, D_PAD), lambda i: (0, 0)),      # weights: resident across steps
            pl.BlockSpec((2, D_PAD, D_PAD), lambda i: (0, 0, 0)),
            pl.BlockSpec((3, D_PAD), lambda i: (0, 0)),
        ],
        out_specs=pl.BlockSpec((block_b, D_PAD), lambda i: (i, 0)),
        compiler_params=pltpu.CompilerParams(
            dimension_semantics=("parallel",),       # batch axis -> both TCs on v7x
            vmem_limit_bytes=32 * 1024 * 1024,       # stays portable to v7x's 64 MiB VMEM
        ),
        cost_estimate=pl.CostEstimate(
            flops=flops, transcendentals=0, bytes_accessed=bytes_accessed),
    )(x_tab, x_ts, w1, w23, biases)

    # slice away batch padding + lane padding; .unsqueeze(1) from torch -> (B, 1, d_token)
    return out[:b, :D_TOKEN][:, None, :]


def init_params(key):
    """Deterministic init mimicking torch nn.Linear defaults (uniform +-1/sqrt(fan_in)).

    Kernel params: weights (in, out) layout, bf16, lane axis zero-padded 192 -> 256;
    biases coalesced into one (3, 256) f32 array; W2/Wh coalesced into one (2, 256, 256).
    Also returns the raw f32 (unpadded) params for the pure-JAX reference."""
    def uniform(k, shape, fan_in):
        bound = 1.0 / math.sqrt(fan_in)
        return jax.random.uniform(k, shape, jnp.float32, -bound, bound)

    k1, k2, k3, kb1, kb2, kb3 = jax.random.split(key, 6)
    w1 = uniform(k1, (IN_FLAT, D_TOKEN), IN_FLAT)     # layer 0: IN_FLAT -> d
    w2 = uniform(k2, (D_TOKEN, D_TOKEN), D_TOKEN)     # layer 1: d -> d
    wh = uniform(k3, (D_TOKEN, D_TOKEN), D_TOKEN)     # head:    d -> d
    b1 = uniform(kb1, (D_TOKEN,), IN_FLAT)
    b2 = uniform(kb2, (D_TOKEN,), D_TOKEN)
    bh = uniform(kb3, (D_TOKEN,), D_TOKEN)

    dp = D_PAD - D_TOKEN
    w1_p = jnp.pad(w1, ((0, 0), (0, dp))).astype(jnp.bfloat16)
    w2_p = jnp.pad(w2, ((0, dp), (0, dp))).astype(jnp.bfloat16)
    wh_p = jnp.pad(wh, ((0, dp), (0, dp))).astype(jnp.bfloat16)
    biases_p = jnp.stack([jnp.pad(b1, (0, dp)),
                          jnp.pad(b2, (0, dp)),
                          jnp.pad(bh, (0, dp))]).astype(jnp.float32)
    kernel_params = (w1_p, jnp.stack([w2_p, wh_p]), biases_p)
    raw_params = (w1, w2, wh, b1, b2, bh)
    return kernel_params, raw_params


def reference(tab_tokens, ts_tokens, raw_params):
    """Pure-JAX reference with identical precision policy (bf16 matmul inputs, f32 acc)."""
    w1, w2, wh, b1, b2, bh = raw_params
    b = tab_tokens.shape[0]
    x = jnp.concatenate([tab_tokens.reshape(b, -1), ts_tokens.reshape(b, -1)],
                        axis=1).astype(jnp.bfloat16)
    h = jnp.dot(x, w1.astype(jnp.bfloat16), preferred_element_type=jnp.float32) + b1[None, :]
    h = jnp.maximum(h, 0.0)
    h = jnp.dot(h.astype(jnp.bfloat16), w2.astype(jnp.bfloat16),
                preferred_element_type=jnp.float32) + b2[None, :]
    h = jnp.maximum(h, 0.0)
    out = jnp.dot(h.astype(jnp.bfloat16), wh.astype(jnp.bfloat16),
                  preferred_element_type=jnp.float32) + bh[None, :]
    return out[:, None, :]


if __name__ == "__main__":
    key = jax.random.PRNGKey(0)
    k_tab, k_ts, k_p = jax.random.split(key, 3)
    tab_tokens = jax.random.normal(k_tab, (B, S_TAB, D_TOKEN), jnp.float32)
    ts_tokens = jax.random.normal(k_ts, (B, S_TS, D_TOKEN), jnp.float32)
    kernel_params, raw_params = init_params(k_p)

    out = flat_concat_mlp(tab_tokens, ts_tokens, kernel_params, block_b=128)
    out = jax.block_until_ready(out)

    ref = reference(tab_tokens, ts_tokens, raw_params)
    assert out.shape == (B, 1, D_TOKEN), out.shape
    assert jnp.allclose(out, ref, atol=2e-2, rtol=2e-2), "mismatch vs reference"
    print("KERNEL_OK")
</pallas_src>

<mosaic_0001>
module attributes {stable_mosaic.version = 11 : i64} {
  func.func @flat_concat_mlp_kernel(%arg0: i32, %arg1: memref<128x768xbf16, #tpu.memory_space<vmem>>, %arg2: memref<128x1536xbf16, #tpu.memory_space<vmem>>, %arg3: memref<2304x256xbf16, #tpu.memory_space<vmem>>, %arg4: memref<2x256x256xbf16, #tpu.memory_space<vmem>>, %arg5: memref<3x256xf32, #tpu.memory_space<vmem>>, %arg6: memref<128x256xf32, #tpu.memory_space<vmem>>) attributes {dimension_semantics = [#tpu.dimension_semantics<parallel>], iteration_bounds = array<i64: 2>, scalar_prefetch = 0 : i64, scratch_operands = 0 : i64, tpu.core_type = #tpu.core_type<tc>, window_params = [{transform_indices = @transform_0, window_bounds = array<i64: 128, 768>}, {transform_indices = @transform_1, window_bounds = array<i64: 128, 1536>}, {pipeline_mode = #tpu.pipeline_mode<synchronous>, transform_indices = @transform_2, window_bounds = array<i64: 2304, 256>}, {pipeline_mode = #tpu.pipeline_mode<synchronous>, transform_indices = @transform_3, window_bounds = array<i64: 2, 256, 256>}, {pipeline_mode = #tpu.pipeline_mode<synchronous>, transform_indices = @transform_4, window_bounds = array<i64: 3, 256>}, {transform_indices = @transform_5, window_bounds = array<i64: 128, 256>}]} {
    %c0 = arith.constant 0 : index
    %c0_0 = arith.constant 0 : index
    %0 = vector.load %arg1[%c0, %c0_0] : memref<128x768xbf16, #tpu.memory_space<vmem>>, vector<128x768xbf16>
    %c0_1 = arith.constant 0 : index
    %c0_2 = arith.constant 0 : index
    %1 = vector.load %arg3[%c0_1, %c0_2] : memref<2304x256xbf16, #tpu.memory_space<vmem>>, vector<768x256xbf16>
    %cst = arith.constant dense<0.000000e+00> : vector<128x256xf32>
    %2 = tpu.matmul %0, %1, %cst {dimension_numbers = #tpu.dot_dimension_numbers<[1], [0], [0], [1], [0, 0, 1, 1], [], []>} : vector<128x768xbf16>, vector<768x256xbf16>, vector<128x256xf32> -> vector<128x256xf32>
    %c0_3 = arith.constant 0 : index
    %c0_4 = arith.constant 0 : index
    %3 = vector.load %arg2[%c0_3, %c0_4] : memref<128x1536xbf16, #tpu.memory_space<vmem>>, vector<128x1536xbf16>
    %c768 = arith.constant 768 : index
    %c0_5 = arith.constant 0 : index
    %4 = vector.load %arg3[%c768, %c0_5] : memref<2304x256xbf16, #tpu.memory_space<vmem>>, vector<1536x256xbf16>
    %cst_6 = arith.constant dense<0.000000e+00> : vector<128x256xf32>
    %5 = tpu.matmul %3, %4, %cst_6 {dimension_numbers = #tpu.dot_dimension_numbers<[1], [0], [0], [1], [0, 0, 1, 1], [], []>} : vector<128x1536xbf16>, vector<1536x256xbf16>, vector<128x256xf32> -> vector<128x256xf32>
    %6 = arith.addf %2, %5 : vector<128x256xf32>
    %c0_7 = arith.constant 0 : index
    %c0_8 = arith.constant 0 : index
    %7 = vector.load %arg5[%c0_7, %c0_8] : memref<3x256xf32, #tpu.memory_space<vmem>>, vector<1x256xf32>
    %8 = vector.broadcast %7 : vector<1x256xf32> to vector<128x256xf32>
    %9 = arith.addf %6, %8 : vector<128x256xf32>
    %cst_9 = arith.constant 0.000000e+00 : f32
    %10 = vector.broadcast %cst_9 : f32 to vector<128x256xf32>
    %11 = arith.maximumf %9, %10 : vector<128x256xf32>
    %12 = arith.truncf %11 : vector<128x256xf32> to vector<128x256xbf16>
    %c0_10 = arith.constant 0 : index
    %c0_11 = arith.constant 0 : index
    %c0_12 = arith.constant 0 : index
    %13 = vector.load %arg4[%c0_10, %c0_11, %c0_12] : memref<2x256x256xbf16, #tpu.memory_space<vmem>>, vector<1x256x256xbf16>
    %14 = vector.shape_cast %13 : vector<1x256x256xbf16> to vector<256x256xbf16>
    %cst_13 = arith.constant dense<0.000000e+00> : vector<128x256xf32>
    %15 = tpu.matmul %12, %14, %cst_13 {dimension_numbers = #tpu.dot_dimension_numbers<[1], [0], [0], [1], [0, 0, 1, 1], [], []>} : vector<128x256xbf16>, vector<256x256xbf16>, vector<128x256xf32> -> vector<128x256xf32>
    %c1 = arith.constant 1 : index
    %c0_14 = arith.constant 0 : index
    %16 = vector.load %arg5[%c1, %c0_14] : memref<3x256xf32, #tpu.memory_space<vmem>>, vector<1x256xf32>
    %17 = vector.broadcast %16 : vector<1x256xf32> to vector<128x256xf32>
    %18 = arith.addf %15, %17 : vector<128x256xf32>
    %cst_15 = arith.constant 0.000000e+00 : f32
    %19 = vector.broadcast %cst_15 : f32 to vector<128x256xf32>
    %20 = arith.maximumf %18, %19 : vector<128x256xf32>
    %21 = arith.truncf %20 : vector<128x256xf32> to vector<128x256xbf16>
    %c1_16 = arith.constant 1 : index
    %c0_17 = arith.constant 0 : index
    %c0_18 = arith.constant 0 : index
    %22 = vector.load %arg4[%c1_16, %c0_17, %c0_18] : memref<2x256x256xbf16, #tpu.memory_space<vmem>>, vector<1x256x256xbf16>
    %23 = vector.shape_cast %22 : vector<1x256x256xbf16> to vector<256x256xbf16>
    %cst_19 = arith.constant dense<0.000000e+00> : vector<128x256xf32>
    %24 = tpu.matmul %21, %23, %cst_19 {dimension_numbers = #tpu.dot_dimension_numbers<[1], [0], [0], [1], [0, 0, 1, 1], [], []>} : vector<128x256xbf16>, vector<256x256xbf16>, vector<128x256xf32> -> vector<128x256xf32>
    %c2 = arith.constant 2 : index
    %c0_20 = arith.constant 0 : index
    %25 = vector.load %arg5[%c2, %c0_20] : memref<3x256xf32, #tpu.memory_space<vmem>>, vector<1x256xf32>
    %26 = vector.broadcast %25 : vector<1x256xf32> to vector<128x256xf32>
    %27 = arith.addf %24, %26 : vector<128x256xf32>
    %c0_21 = arith.constant 0 : index
    %c0_22 = arith.constant 0 : index
    %28 = vector.load %arg6[%c0_21, %c0_22] : memref<128x256xf32, #tpu.memory_space<vmem>>, vector<128x256xf32>
    tpu.vector_store %arg6[%c0_21, %c0_22], %27 {strides = array<i32>} : memref<128x256xf32, #tpu.memory_space<vmem>>, vector<128x256xf32>,
    return
  }
  func.func @transform_0(%arg0: i32) -> (i32, i32) {
    %c0_i32 = arith.constant 0 : i32
    %c0_i32_0 = arith.constant 0 : i32
    return %arg0, %c0_i32 : i32, i32
  }
  func.func @transform_1(%arg0: i32) -> (i32, i32) {
    %c0_i32 = arith.constant 0 : i32
    %c0_i32_0 = arith.constant 0 : i32
    return %arg0, %c0_i32 : i32, i32
  }
  func.func @transform_2(%arg0: i32) -> (i32, i32) {
    %c0_i32 = arith.constant 0 : i32
    %c0_i32_0 = arith.constant 0 : i32
    %c0_i32_1 = arith.constant 0 : i32
    return %c0_i32, %c0_i32_0 : i32, i32
  }
  func.func @transform_3(%arg0: i32) -> (i32, i32, i32) {
    %c0_i32 = arith.constant 0 : i32
    %c0_i32_0 = arith.constant 0 : i32
    %c0_i32_1 = arith.constant 0 : i32
    %c0_i32_2 = arith.constant 0 : i32
    return %c0_i32, %c0_i32_0, %c0_i32_1 : i32, i32, i32
  }
  func.func @transform_4(%arg0: i32) -> (i32, i32) {
    %c0_i32 = arith.constant 0 : i32
    %c0_i32_0 = arith.constant 0 : i32
    %c0_i32_1 = arith.constant 0 : i32
    return %c0_i32, %c0_i32_0 : i32, i32
  }
  func.func @transform_5(%arg0: i32) -> (i32, i32) {
    %c0_i32 = arith.constant 0 : i32
    %c0_i32_0 = arith.constant 0 : i32
    return %arg0, %c0_i32 : i32, i32
  }
}

</mosaic_0001>

<llo_original>
// kernel: tpu_custom_call.1
$region0: #{tpu_custom_call.1}
  #allocation0 [shape = 'u32[]', space=smem, size = 0x4, offset = 0x4, fixed_abs, tag = 'smem constant byte address 0x4 - core index']
  #allocation1 [shape = 'u32[144,128]{1,0:T(1,128)}', space=vmem, size = 0x12000, scoped, tag = 'internal scratch']
  %s0 = inlined_call_operand.hbm [shape: bf16[256,768], index: 0, kind: input, shape index: {}]
  %s1 = inlined_call_operand.hbm [shape: bf16[256,1536], index: 1, kind: input, shape index: {}]
  %s2 = inlined_call_operand.hbm [shape: bf16[2304,256], index: 2, kind: input, shape index: {}]
  %s3 = inlined_call_operand.hbm [shape: bf16[2,256,256], index: 3, kind: input, shape index: {}]
  %s4 = inlined_call_operand.hbm [shape: f32[3,256], index: 4, kind: input, shape index: {}]
  %s5 = inlined_call_operand.hbm [shape: f32[256,256], index: 5, kind: output, shape index: {}]
  %s6 = sld [smem:[#allocation0]]
  $region73: #{tpu_custom_call.1} parent=0
    _
  %s8 = ssub.s32 1, %s6
  %s9 = scalar_select 0, %s8, %s6
  $region1: #{tpu_custom_call.1} parent=0
    #allocation2 [shape = 'u8[393216]{0}', space=vmem, size = 0x60000, scoped, tag = 'input window, operand 0']
    #allocation3 [shape = 's32[2]{0}', space=sflag, size = 0x8, scoped, tag = 'scoped memory for tpu_custom_call.1']
    #allocation4 [shape = 's32[2]{0}', space=sflag, size = 0x8, scoped, tag = 'scoped memory for tpu_custom_call.1']
    #allocation5 [shape = 'u8[786432]{0}', space=vmem, size = 0xc0000, scoped, tag = 'input window, operand 1']
    #allocation6 [shape = 's32[2]{0}', space=sflag, size = 0x8, scoped, tag = 'scoped memory for tpu_custom_call.1']
    #allocation7 [shape = 'u8[1179648]{0}', space=vmem, size = 0x120000, scoped, tag = 'input window, operand 2, single buffered']
    #allocation8 [shape = 'u8[262144]{0}', space=vmem, size = 0x40000, scoped, tag = 'input window, operand 3, single buffered']
    #allocation9 [shape = 's32[1]{0}', space=sflag, size = 0x4, scoped, tag = 'scoped memory for tpu_custom_call.1']
    #allocation10 [shape = 'u8[4096]{0}', space=vmem, size = 0x1000, scoped, tag = 'input window, operand 4, single buffered']
    #allocation11 [shape = 'u8[262144]{0}', space=vmem, size = 0x40000, scoped, tag = 'output window, operand 0']
    %10 = vsyncpa [#allocation3], 0
    %s11 = scalar_lea.sflag [#allocation3], 1
    %12 = vsyncpa %s11, 0
    %13 = vsyncpa [#allocation6], 0
    %s14 = scalar_lea.sflag [#allocation6], 1
    %15 = vsyncpa %s14, 0
    %16 = vsyncpa [#allocation9], 0
    %17 = vsyncpa [#allocation4], 0
    %s18 = scalar_lea.sflag [#allocation4], 1
    %19 = vsyncpa %s18, 0
    loop: start=0, step=1, limit=4
    $region2: #{tpu_custom_call.1} parent=1 // loop_pre_header
      _
    $region3: #{tpu_custom_call.1} parent=1 // loop_header
      %s21 = sphi 0, %s25
      %p22 = scmp.ge.s32.totalorder %s21, 4
      %s31 = sphi 0, %s33
      %s34 = sphi 0, %s31
      %s35 = sphi 0, %s34
      %s51 = sphi 0, %s35
      %s57 = sphi 0, %s59
      %s60 = sphi 0, %s57
      %s61 = sphi 0, %s60
      %s77 = sphi 0, %s61
      %s81 = sphi 0, %s81
      %s83 = sphi 0, %s81
      %s84 = sphi 0, %s83
      %s98 = sphi 0, %s84
      %s102 = sphi 0, %s102
      %s104 = sphi 0, %s102
      %s105 = sphi 0, %s104
      %s119 = sphi 0, %s105
      %s123 = sphi 0, %s123
      %s125 = sphi 0, %s123
      %s126 = sphi 0, %s125
      %s140 = sphi 0, %s126
      %s146 = sphi 0, %s148
      %s149 = sphi 0, %s146
      %s150 = sphi 0, %s149
      %s166 = sphi 0, %s150
    $region4: #{tpu_custom_call.1} parent=1 // loop_header_branch
      %24 = sbr.rel (%p22) target = $region8
    $region5: #{tpu_custom_call.1} parent=1 // loop_body
      %s26 = ssub.s32 %s21, 1
      %s27 = ssub.s32 %s21, 2
      %s28 = sadd.s32 %s21, 1
      %s29 = ssub.s32 %s21, %s28
      %p30 = scmp.eq.s32.totalorder %s29, 0
      %s32 = sadd.s32 %s31, 1
      %s33 = scalar_select %p30, %s31, %s32
      %p36 = pneg %p30
      %p37 = scmp.eq.s32.totalorder %s21, 1
      %p38 = por %p36, %p37
      %p39 = scmp.ne.s32.totalorder %s31, %s34
      %p40 = scmp.eq.s32.totalorder %s21, 0
      %p41 = por %p39, %p40
      %p42 = scmp.ne.s32.totalorder %s31, %s34
      %p43 = scmp.eq.s32.totalorder %s26, 1
      %p44 = por %p42, %p43
      %p45 = scmp.ne.s32.totalorder %s34, %s35
      %p46 = scmp.eq.s32.totalorder %s26, 0
      %p47 = por %p45, %p46
      %p48 = scmp.ne.s32.totalorder %s34, %s35
      %p49 = scmp.eq.s32.totalorder %s27, 1
      %p50 = por %p48, %p49
      %p52 = scmp.ne.s32.totalorder %s35, %s51
      %p53 = scmp.eq.s32.totalorder %s27, 0
      %p54 = por %p52, %p53
      %s55 = ssub.s32 %s21, %s28
      %p56 = scmp.eq.s32.totalorder %s55, 0
      %s58 = sadd.s32 %s57, 1
      %s59 = scalar_select %p56, %s57, %s58
      %p62 = pneg %p56
      %p63 = scmp.eq.s32.totalorder %s21, 1
      %p64 = por %p62, %p63
      %p65 = scmp.ne.s32.totalorder %s57, %s60
      %p66 = scmp.eq.s32.totalorder %s21, 0
      %p67 = por %p65, %p66
      %p68 = scmp.ne.s32.totalorder %s57, %s60
      %p69 = scmp.eq.s32.totalorder %s26, 1
      %p70 = por %p68, %p69
      %p71 = scmp.ne.s32.totalorder %s60, %s61
      %p72 = scmp.eq.s32.totalorder %s26, 0
      %p73 = por %p71, %p72
      %p74 = scmp.ne.s32.totalorder %s60, %s61
      %p75 = scmp.eq.s32.totalorder %s27, 1
      %p76 = por %p74, %p75
      %p78 = scmp.ne.s32.totalorder %s61, %s77
      %p79 = scmp.eq.s32.totalorder %s27, 0
      %p80 = por %p78, %p79
      %s82 = sadd.s32 %s81, 1
      %p85 = scmp.eq.s32.totalorder %s21, 1
      %p86 = scmp.ne.s32.totalorder %s81, %s83
      %p87 = scmp.eq.s32.totalorder %s21, 0
      %p88 = por %p86, %p87
      %p89 = scmp.ne.s32.totalorder %s81, %s83
      %p90 = scmp.eq.s32.totalorder %s26, 1
      %p91 = por %p89, %p90
      %p92 = scmp.ne.s32.totalorder %s83, %s84
      %p93 = scmp.eq.s32.totalorder %s26, 0
      %p94 = por %p92, %p93
      %p95 = scmp.ne.s32.totalorder %s83, %s84
      %p96 = scmp.eq.s32.totalorder %s27, 1
      %p97 = por %p95, %p96
      %p99 = scmp.ne.s32.totalorder %s84, %s98
      %p100 = scmp.eq.s32.totalorder %s27, 0
      %p101 = por %p99, %p100
      %s103 = sadd.s32 %s102, 1
      %p106 = scmp.eq.s32.totalorder %s21, 1
      %p107 = scmp.ne.s32.totalorder %s102, %s104
      %p108 = scmp.eq.s32.totalorder %s21, 0
      %p109 = por %p107, %p108
      %p110 = scmp.ne.s32.totalorder %s102, %s104
      %p111 = scmp.eq.s32.totalorder %s26, 1
      %p112 = por %p110, %p111
      %p113 = scmp.ne.s32.totalorder %s104, %s105
      %p114 = scmp.eq.s32.totalorder %s26, 0
      %p115 = por %p113, %p114
      %p116 = scmp.ne.s32.totalorder %s104, %s105
      %p117 = scmp.eq.s32.totalorder %s27, 1
      %p118 = por %p116, %p117
      %p120 = scmp.ne.s32.totalorder %s105, %s119
      %p121 = scmp.eq.s32.totalorder %s27, 0
      %p122 = por %p120, %p121
      %s124 = sadd.s32 %s123, 1
      %p127 = scmp.eq.s32.totalorder %s21, 1
      %p128 = scmp.ne.s32.totalorder %s123, %s125
      %p129 = scmp.eq.s32.totalorder %s21, 0
      %p130 = por %p128, %p129
      %p131 = scmp.ne.s32.totalorder %s123, %s125
      %p132 = scmp.eq.s32.totalorder %s26, 1
      %p133 = por %p131, %p132
      %p134 = scmp.ne.s32.totalorder %s125, %s126
      %p135 = scmp.eq.s32.totalorder %s26, 0
      %p136 = por %p134, %p135
      %p137 = scmp.ne.s32.totalorder %s125, %s126
      %p138 = scmp.eq.s32.totalorder %s27, 1
      %p139 = por %p137, %p138
      %p141 = scmp.ne.s32.totalorder %s126, %s140
      %p142 = scmp.eq.s32.totalorder %s27, 0
      %p143 = por %p141, %p142
      %s144 = ssub.s32 %s21, %s28
      %p145 = scmp.eq.s32.totalorder %s144, 0
      %s147 = sadd.s32 %s146, 1
      %s148 = scalar_select %p145, %s146, %s147
      %p151 = pneg %p145
      %p152 = scmp.eq.s32.totalorder %s21, 1
      %p153 = por %p151, %p152
      %p154 = scmp.ne.s32.totalorder %s146, %s149
      %p155 = scmp.eq.s32.totalorder %s21, 0
      %p156 = por %p154, %p155
      %p157 = scmp.ne.s32.totalorder %s146, %s149
      %p158 = scmp.eq.s32.totalorder %s26, 1
      %p159 = por %p157, %p158
      %p160 = scmp.ne.s32.totalorder %s149, %s150
      %p161 = scmp.eq.s32.totalorder %s26, 0
      %p162 = por %p160, %p161
      %p163 = scmp.ne.s32.totalorder %s149, %s150
      %p164 = scmp.eq.s32.totalorder %s27, 1
      %p165 = por %p163, %p164
      %p167 = scmp.ne.s32.totalorder %s150, %s166
      %p168 = scmp.eq.s32.totalorder %s27, 0
      %p169 = por %p167, %p168
      %p170 = scmp.le.s32.totalorder 1, %s21
      %p171 = scmp.lt.s32.totalorder %s21, 3
      %p172 = pnand %p170, %p171
      %p173 = pneg %p172
      // Predicated region
      $region9: #{tpu_custom_call.1} parent=5 // pred_check
        _
      $region10: #{tpu_custom_call.1} parent=5 // pred_check_branch
        %175 = sbr.rel (%p172) target = $region12
      $region11: #{tpu_custom_call.1} parent=5 // pred_region
        %s176 = ssub.s32 %s21, 1
        // Predicated region
        $region13: #{tpu_custom_call.1} parent=11 // pred_check
          %p177 = pneg %p94
        $region14: #{tpu_custom_call.1} parent=11 // pred_check_branch
          %179 = sbr.rel (%p177) target = $region16
        $region15: #{tpu_custom_call.1} parent=11 // pred_region
          %s181 = ssub.s32 36864, 36864
          %182 = vsyncadd [#allocation6], %s181
          %s183 = sshll.u32 [#allocation7], 4
          %s184 = int_to_ptr.vmem [resolvable:$true] %s183
          %189 = dma.hbm_to_vmem [thread:$0]  %s2, 36864, %s184, [#allocation6], 128, 128, 8
        $region16: #{tpu_custom_call.1} parent=11 // pred_fallthru
          _
        // Predicated region
        $region17: #{tpu_custom_call.1} parent=11 // pred_check
          %p190 = pneg %p115
        $region18: #{tpu_custom_call.1} parent=11 // pred_check_branch
          %192 = sbr.rel (%p190) target = $region20
        $region19: #{tpu_custom_call.1} parent=11 // pred_region
          %s194 = ssub.s32 8192, 8192
          %195 = vsyncadd [#allocation9], %s194
          %s196 = sshll.u32 [#allocation8], 4
          %s197 = int_to_ptr.vmem [resolvable:$true] %s196
          %202 = dma.hbm_to_vmem [thread:$0]  %s3, 8192, %s197, [#allocation9], 128, 128, 8
        $region20: #{tpu_custom_call.1} parent=11 // pred_fallthru
          _
        // Predicated region
        $region21: #{tpu_custom_call.1} parent=11 // pred_check
          %p203 = pneg %p136
        $region22: #{tpu_custom_call.1} parent=11 // pred_check_branch
          %205 = sbr.rel (%p203) target = $region24
        $region23: #{tpu_custom_call.1} parent=11 // pred_region
          %s207 = ssub.s32 128, 128
          %208 = vsyncadd [#allocation9], %s207
          %s210 = sshll.u32 [#allocation10], 4
          %s211 = int_to_ptr.vmem [resolvable:$true] %s210
          %213 = dma.hbm_to_vmem [thread:$0]  %s4, 128, %s211, [#allocation9]
        $region24: #{tpu_custom_call.1} parent=11 // pred_fallthru
          _
      $region12: #{tpu_custom_call.1} parent=5 // pred_fallthru
        _
      %p214 = scmp.lt.s32.totalorder %s21, 2
      // Predicated region
      $region25: #{tpu_custom_call.1} parent=5 // pred_check
        %p215 = pneg %p214
      $region26: #{tpu_custom_call.1} parent=5 // pred_check_branch
        %217 = sbr.rel (%p215) target = $region28
      $region27: #{tpu_custom_call.1} parent=5 // pred_region
        // Predicated region
        $region29: #{tpu_custom_call.1} parent=27 // pred_check
          %p218 = pneg %p41
        $region30: #{tpu_custom_call.1} parent=27 // pred_check_branch
          %220 = sbr.rel (%p218) target = $region32
        $region31: #{tpu_custom_call.1} parent=27 // pred_region
          %s221 = sand.u32 %s31, 1
          %s222 = scalar_lea.sflag [#allocation3], %s221
          %s223 = sand.u32 %s31, 1
          %s224 = smul.addr %s223, 384
          %s225 = scalar_lea.vmem [#allocation2], %s224
          %s226 = smul.u32 16, %s21
          %s228 = ssub.s32 6144, 6144
          %229 = vsyncadd %s222, %s228
          %s230 = smul.addr %s226, 6
          %s231 = smul.addr %s230, 64
          %s232 = scalar_lea.hbm %s0, %s231
          %s233 = sshll.u32 %s225, 4
          %s234 = int_to_ptr.vmem [resolvable:$true] %s233
          %239 = dma.hbm_to_vmem [thread:$0]  %s232, 6144, %s234, %s222, 384, 384, 24
        $region32: #{tpu_custom_call.1} parent=27 // pred_fallthru
          _
        // Predicated region
        $region33: #{tpu_custom_call.1} parent=27 // pred_check
          %p240 = pneg %p67
        $region34: #{tpu_custom_call.1} parent=27 // pred_check_branch
          %242 = sbr.rel (%p240) target = $region36
        $region35: #{tpu_custom_call.1} parent=27 // pred_region
          %s243 = sand.u32 %s21, 1
          %s244 = scalar_lea.sflag [#allocation6], %s243
          %s245 = sand.u32 %s57, 1
          %s246 = smul.addr %s245, 768
          %s247 = scalar_lea.vmem [#allocation5], %s246
          %s248 = smul.u32 16, %s21
          %s250 = ssub.s32 12288, 12288
          %251 = vsyncadd %s244, %s250
          %s252 = smul.addr %s248, 12
          %s253 = smul.addr %s252, 64
          %s254 = scalar_lea.hbm %s1, %s253
          %s255 = sshll.u32 %s247, 4
          %s256 = int_to_ptr.vmem [resolvable:$true] %s255
          %261 = dma.hbm_to_vmem [thread:$0]  %s254, 12288, %s256, %s244, 768, 768, 48
        $region36: #{tpu_custom_call.1} parent=27 // pred_fallthru
          _
      $region28: #{tpu_custom_call.1} parent=5 // pred_fallthru
        _
      %p262 = scmp.le.s32.totalorder 1, %s21
      %p263 = scmp.lt.s32.totalorder %s21, 3
      %p264 = pnand %p262, %p263
      %p265 = pneg %p264
      // Predicated region
      $region37: #{tpu_custom_call.1} parent=5 // pred_check
        _
      $region38: #{tpu_custom_call.1} parent=5 // pred_check_branch
        %267 = sbr.rel (%p264) target = $region40
      $region39: #{tpu_custom_call.1} parent=5 // pred_region
        %s268 = ssub.s32 %s21, 1
        %s269 = sand.u32 %s34, 1
        %s270 = scalar_lea.sflag [#allocation3], %s269
        %s271 = sand.u32 %s34, 1
        %s272 = smul.addr %s271, 384
        %s273 = scalar_lea.vmem [#allocation2], %s272
        // Predicated region
        $region41: #{tpu_custom_call.1} parent=39 // pred_check
          %p274 = pneg %p47
        $region42: #{tpu_custom_call.1} parent=39 // pred_check_branch
          %276 = sbr.rel (%p274) target = $region44
        $region43: #{tpu_custom_call.1} parent=39 // pred_region
          %277 = dma.done %s270, 6144
        $region44: #{tpu_custom_call.1} parent=39 // pred_fallthru
          _
        %s278 = sand.u32 %s26, 1
        %s279 = scalar_lea.sflag [#allocation6], %s278
        %s280 = sand.u32 %s60, 1
        %s281 = smul.addr %s280, 768
        %s282 = scalar_lea.vmem [#allocation5], %s281
        // Predicated region
        $region45: #{tpu_custom_call.1} parent=39 // pred_check
          %p283 = pneg %p73
        $region46: #{tpu_custom_call.1} parent=39 // pred_check_branch
          %285 = sbr.rel (%p283) target = $region48
        $region47: #{tpu_custom_call.1} parent=39 // pred_region
          %286 = dma.done %s279, 12288
        $region48: #{tpu_custom_call.1} parent=39 // pred_fallthru
          _
        // Predicated region
        $region49: #{tpu_custom_call.1} parent=39 // pred_check
          %p287 = pneg %p94
        $region50: #{tpu_custom_call.1} parent=39 // pred_check_branch
          %289 = sbr.rel (%p287) target = $region52
        $region51: #{tpu_custom_call.1} parent=39 // pred_region
          %290 = dma.done [#allocation6], 36864
        $region52: #{tpu_custom_call.1} parent=39 // pred_fallthru
          _
        // Predicated region
        $region53: #{tpu_custom_call.1} parent=39 // pred_check
          %p291 = pneg %p115
        $region54: #{tpu_custom_call.1} parent=39 // pred_check_branch
          %293 = sbr.rel (%p291) target = $region56
        $region55: #{tpu_custom_call.1} parent=39 // pred_region
          %294 = dma.done [#allocation9], 8192
        $region56: #{tpu_custom_call.1} parent=39 // pred_fallthru
          _
        // Predicated region
        $region57: #{tpu_custom_call.1} parent=39 // pred_check
          %p295 = pneg %p136
        $region58: #{tpu_custom_call.1} parent=39 // pred_check_branch
          %297 = sbr.rel (%p295) target = $region60
        $region59: #{tpu_custom_call.1} parent=39 // pred_region
          %298 = dma.done [#allocation9], 128
        $region60: #{tpu_custom_call.1} parent=39 // pred_fallthru
          _
        %s299 = sand.u32 %s34, 1
        %s300 = scalar_lea.sflag [#allocation3], %s299
        %s301 = sand.u32 %s34, 1
        %s302 = smul.addr %s301, 384
        %s303 = scalar_lea.vmem [#allocation2], %s302
        %p304 = pneg %p47
        %p305 = pneg %p44
        %s306 = sand.u32 %s26, 1
        %s307 = scalar_lea.sflag [#allocation6], %s306
        %s308 = sand.u32 %s60, 1
        %s309 = smul.addr %s308, 768
        %s310 = scalar_lea.vmem [#allocation5], %s309
        %p311 = pneg %p73
        %p312 = pneg %p70
        %p313 = pneg %p94
        %p314 = pneg %p91
        %p315 = pneg %p115
        %p316 = pneg %p112
        %p317 = pneg %p136
        %p318 = pneg %p133
        %p319 = pneg %p162
        %p320 = pneg %p159
        %s321 = sand.u32 %s149, 1
        %s322 = scalar_lea.sflag [#allocation4], %s321
        %s323 = sand.u32 %s149, 1
        %s324 = smul.addr %s323, 256
        %s325 = scalar_lea.vmem [#allocation11], %s324
        %s326 = smul.u32 16, %s26
        %s327 = smul.u32 16, %s26
        %s328 = smul.u32 16, %s26
        %v329 = vld [vmem:[%s273] sm:$0xff]
        %v330 = vld [vmem:[%s273 + $0x8] sm:$0xff]
        %v331 = vld [vmem:[%s273 + $0x10] sm:$0xff]
        %v332 = vld [vmem:[%s273 + $0x18] sm:$0xff]
        %v333 = vld [vmem:[%s273 + $0x20] sm:$0xff]
        %v334 = vld [vmem:[%s273 + $0x28] sm:$0xff]
        %v335 = vld [vmem:[%s273 + $0x30] sm:$0xff]
        %v336 = vld [vmem:[%s273 + $0x38] sm:$0xff]
        %v337 = vld [vmem:[%s273 + $0x40] sm:$0xff]
        %v338 = vld [vmem:[%s273 + $0x48] sm:$0xff]
        %v339 = vld [vmem:[%s273 + $0x50] sm:$0xff]
        %v340 = vld [vmem:[%s273 + $0x58] sm:$0xff]
        %v341 = vld [vmem:[%s273 + $0x60] sm:$0xff]
        %v342 = vld [vmem:[%s273 + $0x68] sm:$0xff]
        %v343 = vld [vmem:[%s273 + $0x70] sm:$0xff]
        %v344 = vld [vmem:[%s273 + $0x78] sm:$0xff]
        %v345 = vld [vmem:[%s273 + $0x80] sm:$0xff]
        %v346 = vld [vmem:[%s273 + $0x88] sm:$0xff]
        %v347 = vld [vmem:[%s273 + $0x90] sm:$0xff]
        %v348 = vld [vmem:[%s273 + $0x98] sm:$0xff]
        %v349 = vld [vmem:[%s273 + $0xa0] sm:$0xff]
        %v350 = vld [vmem:[%s273 + $0xa8] sm:$0xff]
        %v351 = vld [vmem:[%s273 + $0xb0] sm:$0xff]
        %v352 = vld [vmem:[%s273 + $0xb8] sm:$0xff]
        %v353 = vld [vmem:[%s273 + $0xc0] sm:$0xff]
        %v354 = vld [vmem:[%s273 + $0xc8] sm:$0xff]
        %v355 = vld [vmem:[%s273 + $0xd0] sm:$0xff]
        %v356 = vld [vmem:[%s273 + $0xd8] sm:$0xff]
        %v357 = vld [vmem:[%s273 + $0xe0] sm:$0xff]
        %v358 = vld [vmem:[%s273 + $0xe8] sm:$0xff]
        %v359 = vld [vmem:[%s273 + $0xf0] sm:$0xff]
        %v360 = vld [vmem:[%s273 + $0xf8] sm:$0xff]
        %v361 = vld [vmem:[%s273 + $0x100] sm:$0xff]
        %v362 = vld [vmem:[%s273 + $0x108] sm:$0xff]
        %v363 = vld [vmem:[%s273 + $0x110] sm:$0xff]
        %v364 = vld [vmem:[%s273 + $0x118] sm:$0xff]
        %v365 = vld [vmem:[%s273 + $0x120] sm:$0xff]
        %v366 = vld [vmem:[%s273 + $0x128] sm:$0xff]
        %v367 = vld [vmem:[%s273 + $0x130] sm:$0xff]
        %v368 = vld [vmem:[%s273 + $0x138] sm:$0xff]
        %v369 = vld [vmem:[%s273 + $0x140] sm:$0xff]
        %v370 = vld [vmem:[%s273 + $0x148] sm:$0xff]
        %v371 = vld [vmem:[%s273 + $0x150] sm:$0xff]
        %v372 = vld [vmem:[%s273 + $0x158] sm:$0xff]
        %v373 = vld [vmem:[%s273 + $0x160] sm:$0xff]
        %v374 = vld [vmem:[%s273 + $0x168] sm:$0xff]
        %v375 = vld [vmem:[%s273 + $0x170] sm:$0xff]
        %v376 = vld [vmem:[%s273 + $0x178] sm:$0xff]
        %v377 = vld [vmem:[#allocation7] sm:$0xff]
        %v378 = vld [vmem:[#allocation7 + $0x8] sm:$0xff]
        %v379 = vld [vmem:[#allocation7 + $0x10] sm:$0xff]
        %v380 = vld [vmem:[#allocation7 + $0x18] sm:$0xff]
        %v381 = vld [vmem:[#allocation7 + $0x20] sm:$0xff]
        %v382 = vld [vmem:[#allocation7 + $0x28] sm:$0xff]
        %v383 = vld [vmem:[#allocation7 + $0x30] sm:$0xff]
        %v384 = vld [vmem:[#allocation7 + $0x38] sm:$0xff]
        %v385 = vld [vmem:[#allocation7 + $0x40] sm:$0xff]
        %v386 = vld [vmem:[#allocation7 + $0x48] sm:$0xff]
        %v387 = vld [vmem:[#allocation7 + $0x50] sm:$0xff]
        %v388 = vld [vmem:[#allocation7 + $0x58] sm:$0xff]
        %v389 = vld [vmem:[#allocation7 + $0x60] sm:$0xff]
        %v390 = vld [vmem:[#allocation7 + $0x68] sm:$0xff]
        %v391 = vld [vmem:[#allocation7 + $0x70] sm:$0xff]
        %v392 = vld [vmem:[#allocation7 + $0x78] sm:$0xff]
        %v393 = vld [vmem:[#allocation7 + $0x80] sm:$0xff]
        %v394 = vld [vmem:[#allocation7 + $0x88] sm:$0xff]
        %v395 = vld [vmem:[#allocation7 + $0x90] sm:$0xff]
        %v396 = vld [vmem:[#allocation7 + $0x98] sm:$0xff]
        %v397 = vld [vmem:[#allocation7 + $0xa0] sm:$0xff]
        %v398 = vld [vmem:[#allocation7 + $0xa8] sm:$0xff]
        %v399 = vld [vmem:[#allocation7 + $0xb0] sm:$0xff]
        %v400 = vld [vmem:[#allocation7 + $0xb8] sm:$0xff]
        %v401 = vld [vmem:[#allocation7 + $0xc0] sm:$0xff]
        %v402 = vld [vmem:[#allocation7 + $0xc8] sm:$0xff]
        %v403 = vld [vmem:[#allocation7 + $0xd0] sm:$0xff]
        %v404 = vld [vmem:[#allocation7 + $0xd8] sm:$0xff]
        %v405 = vld [vmem:[#allocation7 + $0xe0] sm:$0xff]
        %v406 = vld [vmem:[#allocation7 + $0xe8] sm:$0xff]
        %v407 = vld [vmem:[#allocation7 + $0xf0] sm:$0xff]
        %v408 = vld [vmem:[#allocation7 + $0xf8] sm:$0xff]
        %v409 = vld [vmem:[#allocation7 + $0x100] sm:$0xff]
        %v410 = vld [vmem:[#allocation7 + $0x108] sm:$0xff]
        %v411 = vld [vmem:[#allocation7 + $0x110] sm:$0xff]
        %v412 = vld [vmem:[#allocation7 + $0x118] sm:$0xff]
        %v413 = vld [vmem:[#allocation7 + $0x120] sm:$0xff]
        %v414 = vld [vmem:[#allocation7 + $0x128] sm:$0xff]
        %v415 = vld [vmem:[#allocation7 + $0x130] sm:$0xff]
        %v416 = vld [vmem:[#allocation7 + $0x138] sm:$0xff]
        %v417 = vld [vmem:[#allocation7 + $0x140] sm:$0xff]
        %v418 = vld [vmem:[#allocation7 + $0x148] sm:$0xff]
        %v419 = vld [vmem:[#allocation7 + $0x150] sm:$0xff]
        %v420 = vld [vmem:[#allocation7 + $0x158] sm:$0xff]
        %v421 = vld [vmem:[#allocation7 + $0x160] sm:$0xff]
        %v422 = vld [vmem:[#allocation7 + $0x168] sm:$0xff]
        %v423 = vld [vmem:[#allocation7 + $0x170] sm:$0xff]
        %v424 = vld [vmem:[#allocation7 + $0x178] sm:$0xff]
        %v425 = vld [vmem:[#allocation7 + $0x180] sm:$0xff]
        %v426 = vld [vmem:[#allocation7 + $0x188] sm:$0xff]
        %v427 = vld [vmem:[#allocation7 + $0x190] sm:$0xff]
        %v428 = vld [vmem:[#allocation7 + $0x198] sm:$0xff]
        %v429 = vld [vmem:[#allocation7 + $0x1a0] sm:$0xff]
        %v430 = vld [vmem:[#allocation7 + $0x1a8] sm:$0xff]
        %v431 = vld [vmem:[#allocation7 + $0x1b0] sm:$0xff]
        %v432 = vld [vmem:[#allocation7 + $0x1b8] sm:$0xff]
        %v433 = vld [vmem:[#allocation7 + $0x1c0] sm:$0xff]
        %v434 = vld [vmem:[#allocation7 + $0x1c8] sm:$0xff]
        %v435 = vld [vmem:[#allocation7 + $0x1d0] sm:$0xff]
        %v436 = vld [vmem:[#allocation7 + $0x1d8] sm:$0xff]
        %v437 = vld [vmem:[#allocation7 + $0x1e0] sm:$0xff]
        %v438 = vld [vmem:[#allocation7 + $0x1e8] sm:$0xff]
        %v439 = vld [vmem:[#allocation7 + $0x1f0] sm:$0xff]
        %v440 = vld [vmem:[#allocation7 + $0x1f8] sm:$0xff]
        %v441 = vld [vmem:[#allocation7 + $0x200] sm:$0xff]
        %v442 = vld [vmem:[#allocation7 + $0x208] sm:$0xff]
        %v443 = vld [vmem:[#allocation7 + $0x210] sm:$0xff]
        %v444 = vld [vmem:[#allocation7 + $0x218] sm:$0xff]
        %v445 = vld [vmem:[#allocation7 + $0x220] sm:$0xff]
        %v446 = vld [vmem:[#allocation7 + $0x228] sm:$0xff]
        %v447 = vld [vmem:[#allocation7 + $0x230] sm:$0xff]
        %v448 = vld [vmem:[#allocation7 + $0x238] sm:$0xff]
        %v449 = vld [vmem:[#allocation7 + $0x240] sm:$0xff]
        %v450 = vld [vmem:[#allocation7 + $0x248] sm:$0xff]
        %v451 = vld [vmem:[#allocation7 + $0x250] sm:$0xff]
        %v452 = vld [vmem:[#allocation7 + $0x258] sm:$0xff]
        %v453 = vld [vmem:[#allocation7 + $0x260] sm:$0xff]
        %v454 = vld [vmem:[#allocation7 + $0x268] sm:$0xff]
        %v455 = vld [vmem:[#allocation7 + $0x270] sm:$0xff]
        %v456 = vld [vmem:[#allocation7 + $0x278] sm:$0xff]
        %v457 = vld [vmem:[#allocation7 + $0x280] sm:$0xff]
        %v458 = vld [vmem:[#allocation7 + $0x288] sm:$0xff]
        %v459 = vld [vmem:[#allocation7 + $0x290] sm:$0xff]
        %v460 = vld [vmem:[#allocation7 + $0x298] sm:$0xff]
        %v461 = vld [vmem:[#allocation7 + $0x2a0] sm:$0xff]
        %v462 = vld [vmem:[#allocation7 + $0x2a8] sm:$0xff]
        %v463 = vld [vmem:[#allocation7 + $0x2b0] sm:$0xff]
        %v464 = vld [vmem:[#allocation7 + $0x2b8] sm:$0xff]
        %v465 = vld [vmem:[#allocation7 + $0x2c0] sm:$0xff]
        %v466 = vld [vmem:[#allocation7 + $0x2c8] sm:$0xff]
        %v467 = vld [vmem:[#allocation7 + $0x2d0] sm:$0xff]
        %v468 = vld [vmem:[#allocation7 + $0x2d8] sm:$0xff]
        %v469 = vld [vmem:[#allocation7 + $0x2e0] sm:$0xff]
        %v470 = vld [vmem:[#allocation7 + $0x2e8] sm:$0xff]
        %v471 = vld [vmem:[#allocation7 + $0x2f0] sm:$0xff]
        %v472 = vld [vmem:[#allocation7 + $0x2f8] sm:$0xff]
        %v473 = vld [vmem:[%s282] sm:$0xff]
        %v474 = vld [vmem:[%s282 + $0x8] sm:$0xff]
        %v475 = vld [vmem:[%s282 + $0x10] sm:$0xff]
        %v476 = vld [vmem:[%s282 + $0x18] sm:$0xff]
        %v477 = vld [vmem:[%s282 + $0x20] sm:$0xff]
        %v478 = vld [vmem:[%s282 + $0x28] sm:$0xff]
        %v479 = vld [vmem:[%s282 + $0x30] sm:$0xff]
        %v480 = vld [vmem:[%s282 + $0x38] sm:$0xff]
        %v481 = vld [vmem:[%s282 + $0x40] sm:$0xff]
        %v482 = vld [vmem:[%s282 + $0x48] sm:$0xff]
        %v483 = vld [vmem:[%s282 + $0x50] sm:$0xff]
        %v484 = vld [vmem:[%s282 + $0x58] sm:$0xff]
        %v485 = vld [vmem:[%s282 + $0x60] sm:$0xff]
        %v486 = vld [vmem:[%s282 + $0x68] sm:$0xff]
        %v487 = vld [vmem:[%s282 + $0x70] sm:$0xff]
        %v488 = vld [vmem:[%s282 + $0x78] sm:$0xff]
        %v489 = vld [vmem:[%s282 + $0x80] sm:$0xff]
        %v490 = vld [vmem:[%s282 + $0x88] sm:$0xff]
        %v491 = vld [vmem:[%s282 + $0x90] sm:$0xff]
        %v492 = vld [vmem:[%s282 + $0x98] sm:$0xff]
        %v493 = vld [vmem:[%s282 + $0xa0] sm:$0xff]
        %v494 = vld [vmem:[%s282 + $0xa8] sm:$0xff]
        %v495 = vld [vmem:[%s282 + $0xb0] sm:$0xff]
        %v496 = vld [vmem:[%s282 + $0xb8] sm:$0xff]
        %v497 = vld [vmem:[%s282 + $0xc0] sm:$0xff]
        %v498 = vld [vmem:[%s282 + $0xc8] sm:$0xff]
        %v499 = vld [vmem:[%s282 + $0xd0] sm:$0xff]
        %v500 = vld [vmem:[%s282 + $0xd8] sm:$0xff]
        %v501 = vld [vmem:[%s282 + $0xe0] sm:$0xff]
        %v502 = vld [vmem:[%s282 + $0xe8] sm:$0xff]
        %v503 = vld [vmem:[%s282 + $0xf0] sm:$0xff]
        %v504 = vld [vmem:[%s282 + $0xf8] sm:$0xff]
        %v505 = vld [vmem:[%s282 + $0x100] sm:$0xff]
        %v506 = vld [vmem:[%s282 + $0x108] sm:$0xff]
        %v507 = vld [vmem:[%s282 + $0x110] sm:$0xff]
        %v508 = vld [vmem:[%s282 + $0x118] sm:$0xff]
        %v509 = vld [vmem:[%s282 + $0x120] sm:$0xff]
        %v510 = vld [vmem:[%s282 + $0x128] sm:$0xff]
        %v511 = vld [vmem:[%s282 + $0x130] sm:$0xff]
        %v512 = vld [vmem:[%s282 + $0x138] sm:$0xff]
        %v513 = vld [vmem:[%s282 + $0x140] sm:$0xff]
        %v514 = vld [vmem:[%s282 + $0x148] sm:$0xff]
        %v515 = vld [vmem:[%s282 + $0x150] sm:$0xff]
        %v516 = vld [vmem:[%s282 + $0x158] sm:$0xff]
        %v517 = vld [vmem:[%s282 + $0x160] sm:$0xff]
        %v518 = vld [vmem:[%s282 + $0x168] sm:$0xff]
        %v519 = vld [vmem:[%s282 + $0x170] sm:$0xff]
        %v520 = vld [vmem:[%s282 + $0x178] sm:$0xff]
        %v521 = vld [vmem:[%s282 + $0x180] sm:$0xff]
        %v522 = vld [vmem:[%s282 + $0x188] sm:$0xff]
        %v523 = vld [vmem:[%s282 + $0x190] sm:$0xff]
        %v524 = vld [vmem:[%s282 + $0x198] sm:$0xff]
        %v525 = vld [vmem:[%s282 + $0x1a0] sm:$0xff]
        %v526 = vld [vmem:[%s282 + $0x1a8] sm:$0xff]
        %v527 = vld [vmem:[%s282 + $0x1b0] sm:$0xff]
        %v528 = vld [vmem:[%s282 + $0x1b8] sm:$0xff]
        %v529 = vld [vmem:[%s282 + $0x1c0] sm:$0xff]
        %v530 = vld [vmem:[%s282 + $0x1c8] sm:$0xff]
        %v531 = vld [vmem:[%s282 + $0x1d0] sm:$0xff]
        %v532 = vld [vmem:[%s282 + $0x1d8] sm:$0xff]
        %v533 = vld [vmem:[%s282 + $0x1e0] sm:$0xff]
        %v534 = vld [vmem:[%s282 + $0x1e8] sm:$0xff]
        %v535 = vld [vmem:[%s282 + $0x1f0] sm:$0xff]
        %v536 = vld [vmem:[%s282 + $0x1f8] sm:$0xff]
        %v537 = vld [vmem:[%s282 + $0x200] sm:$0xff]
        %v538 = vld [vmem:[%s282 + $0x208] sm:$0xff]
        %v539 = vld [vmem:[%s282 + $0x210] sm:$0xff]
        %v540 = vld [vmem:[%s282 + $0x218] sm:$0xff]
        %v541 = vld [vmem:[%s282 + $0x220] sm:$0xff]
        %v542 = vld [vmem:[%s282 + $0x228] sm:$0xff]
        %v543 = vld [vmem:[%s282 + $0x230] sm:$0xff]
        %v544 = vld [vmem:[%s282 + $0x238] sm:$0xff]
        %v545 = vld [vmem:[%s282 + $0x240] sm:$0xff]
        %v546 = vld [vmem:[%s282 + $0x248] sm:$0xff]
        %v547 = vld [vmem:[%s282 + $0x250] sm:$0xff]
        %v548 = vld [vmem:[%s282 + $0x258] sm:$0xff]
        %v549 = vld [vmem:[%s282 + $0x260] sm:$0xff]
        %v550 = vld [vmem:[%s282 + $0x268] sm:$0xff]
        %v551 = vld [vmem:[%s282 + $0x270] sm:$0xff]
        %v552 = vld [vmem:[%s282 + $0x278] sm:$0xff]
        %v553 = vld [vmem:[%s282 + $0x280] sm:$0xff]
        %v554 = vld [vmem:[%s282 + $0x288] sm:$0xff]
        %v555 = vld [vmem:[%s282 + $0x290] sm:$0xff]
        %v556 = vld [vmem:[%s282 + $0x298] sm:$0xff]
        %v557 = vld [vmem:[%s282 + $0x2a0] sm:$0xff]
        %v558 = vld [vmem:[%s282 + $0x2a8] sm:$0xff]
        %v559 = vld [vmem:[%s282 + $0x2b0] sm:$0xff]
        %v560 = vld [vmem:[%s282 + $0x2b8] sm:$0xff]
        %v561 = vld [vmem:[%s282 + $0x2c0] sm:$0xff]
        %v562 = vld [vmem:[%s282 + $0x2c8] sm:$0xff]
        %v563 = vld [vmem:[%s282 + $0x2d0] sm:$0xff]
        %v564 = vld [vmem:[%s282 + $0x2d8] sm:$0xff]
        %v565 = vld [vmem:[%s282 + $0x2e0] sm:$0xff]
        %v566 = vld [vmem:[%s282 + $0x2e8] sm:$0xff]
        %v567 = vld [vmem:[%s282 + $0x2f0] sm:$0xff]
        %v568 = vld [vmem:[%s282 + $0x2f8] sm:$0xff]
        %v569 = vld [vmem:[#allocation7 + $0x300] sm:$0xff]
        %v570 = vld [vmem:[#allocation7 + $0x308] sm:$0xff]
        %v571 = vld [vmem:[#allocation7 + $0x310] sm:$0xff]
        %v572 = vld [vmem:[#allocation7 + $0x318] sm:$0xff]
        %v573 = vld [vmem:[#allocation7 + $0x320] sm:$0xff]
        %v574 = vld [vmem:[#allocation7 + $0x328] sm:$0xff]
        %v575 = vld [vmem:[#allocation7 + $0x330] sm:$0xff]
        %v576 = vld [vmem:[#allocation7 + $0x338] sm:$0xff]
        %v577 = vld [vmem:[#allocation7 + $0x340] sm:$0xff]
        %v578 = vld [vmem:[#allocation7 + $0x348] sm:$0xff]
        %v579 = vld [vmem:[#allocation7 + $0x350] sm:$0xff]
        %v580 = vld [vmem:[#allocation7 + $0x358] sm:$0xff]
        %v581 = vld [vmem:[#allocation7 + $0x360] sm:$0xff]
        %v582 = vld [vmem:[#allocation7 + $0x368] sm:$0xff]
        %v583 = vld [vmem:[#allocation7 + $0x370] sm:$0xff]
        %v584 = vld [vmem:[#allocation7 + $0x378] sm:$0xff]
        %v585 = vld [vmem:[#allocation7 + $0x380] sm:$0xff]
        %v586 = vld [vmem:[#allocation7 + $0x388] sm:$0xff]
        %v587 = vld [vmem:[#allocation7 + $0x390] sm:$0xff]
        %v588 = vld [vmem:[#allocation7 + $0x398] sm:$0xff]
        %v589 = vld [vmem:[#allocation7 + $0x3a0] sm:$0xff]
        %v590 = vld [vmem:[#allocation7 + $0x3a8] sm:$0xff]
        %v591 = vld [vmem:[#allocation7 + $0x3b0] sm:$0xff]
        %v592 = vld [vmem:[#allocation7 + $0x3b8] sm:$0xff]
        %v593 = vld [vmem:[#allocation7 + $0x3c0] sm:$0xff]
        %v594 = vld [vmem:[#allocation7 + $0x3c8] sm:$0xff]
        %v595 = vld [vmem:[#allocation7 + $0x3d0] sm:$0xff]
        %v596 = vld [vmem:[#allocation7 + $0x3d8] sm:$0xff]
        %v597 = vld [vmem:[#allocation7 + $0x3e0] sm:$0xff]
        %v598 = vld [vmem:[#allocation7 + $0x3e8] sm:$0xff]
        %v599 = vld [vmem:[#allocation7 + $0x3f0] sm:$0xff]
        %v600 = vld [vmem:[#allocation7 + $0x3f8] sm:$0xff]
        %v601 = vld [vmem:[#allocation7 + $0x400] sm:$0xff]
        %v602 = vld [vmem:[#allocation7 + $0x408] sm:$0xff]
        %v603 = vld [vmem:[#allocation7 + $0x410] sm:$0xff]
        %v604 = vld [vmem:[#allocation7 + $0x418] sm:$0xff]
        %v605 = vld [vmem:[#allocation7 + $0x420] sm:$0xff]
        %v606 = vld [vmem:[#allocation7 + $0x428] sm:$0xff]
        %v607 = vld [vmem:[#allocation7 + $0x430] sm:$0xff]
        %v608 = vld [vmem:[#allocation7 + $0x438] sm:$0xff]
        %v609 = vld [vmem:[#allocation7 + $0x440] sm:$0xff]
        %v610 = vld [vmem:[#allocation7 + $0x448] sm:$0xff]
        %v611 = vld [vmem:[#allocation7 + $0x450] sm:$0xff]
        %v612 = vld [vmem:[#allocation7 + $0x458] sm:$0xff]
        %v613 = vld [vmem:[#allocation7 + $0x460] sm:$0xff]
        %v614 = vld [vmem:[#allocation7 + $0x468] sm:$0xff]
        %v615 = vld [vmem:[#allocation7 + $0x470] sm:$0xff]
        %v616 = vld [vmem:[#allocation7 + $0x478] sm:$0xff]
        %v617 = vld [vmem:[#allocation7 + $0x480] sm:$0xff]
        %v618 = vld [vmem:[#allocation7 + $0x488] sm:$0xff]
        %v619 = vld [vmem:[#allocation7 + $0x490] sm:$0xff]
        %v620 = vld [vmem:[#allocation7 + $0x498] sm:$0xff]
        %v621 = vld [vmem:[#allocation7 + $0x4a0] sm:$0xff]
        %v622 = vld [vmem:[#allocation7 + $0x4a8] sm:$0xff]
        %v623 = vld [vmem:[#allocation7 + $0x4b0] sm:$0xff]
        %v624 = vld [vmem:[#allocation7 + $0x4b8] sm:$0xff]
        %v625 = vld [vmem:[#allocation7 + $0x4c0] sm:$0xff]
        %v626 = vld [vmem:[#allocation7 + $0x4c8] sm:$0xff]
        %v627 = vld [vmem:[#allocation7 + $0x4d0] sm:$0xff]
        %v628 = vld [vmem:[#allocation7 + $0x4d8] sm:$0xff]
        %v629 = vld [vmem:[#allocation7 + $0x4e0] sm:$0xff]
        %v630 = vld [vmem:[#allocation7 + $0x4e8] sm:$0xff]
        %v631 = vld [vmem:[#allocation7 + $0x4f0] sm:$0xff]
        %v632 = vld [vmem:[#allocation7 + $0x4f8] sm:$0xff]
        %v633 = vld [vmem:[#allocation7 + $0x500] sm:$0xff]
        %v634 = vld [vmem:[#allocation7 + $0x508] sm:$0xff]
        %v635 = vld [vmem:[#allocation7 + $0x510] sm:$0xff]
        %v636 = vld [vmem:[#allocation7 + $0x518] sm:$0xff]
        %v637 = vld [vmem:[#allocation7 + $0x520] sm:$0xff]
        %v638 = vld [vmem:[#allocation7 + $0x528] sm:$0xff]
        %v639 = vld [vmem:[#allocation7 + $0x530] sm:$0xff]
        %v640 = vld [vmem:[#allocation7 + $0x538] sm:$0xff]
        %v641 = vld [vmem:[#allocation7 + $0x540] sm:$0xff]
        %v642 = vld [vmem:[#allocation7 + $0x548] sm:$0xff]
        %v643 = vld [vmem:[#allocation7 + $0x550] sm:$0xff]
        %v644 = vld [vmem:[#allocation7 + $0x558] sm:$0xff]
        %v645 = vld [vmem:[#allocation7 + $0x560] sm:$0xff]
        %v646 = vld [vmem:[#allocation7 + $0x568] sm:$0xff]
        %v647 = vld [vmem:[#allocation7 + $0x570] sm:$0xff]
        %v648 = vld [vmem:[#allocation7 + $0x578] sm:$0xff]
        %v649 = vld [vmem:[#allocation7 + $0x580] sm:$0xff]
        %v650 = vld [vmem:[#allocation7 + $0x588] sm:$0xff]
        %v651 = vld [vmem:[#allocation7 + $0x590] sm:$0xff]
        %v652 = vld [vmem:[#allocation7 + $0x598] sm:$0xff]
        %v653 = vld [vmem:[#allocation7 + $0x5a0] sm:$0xff]
        %v654 = vld [vmem:[#allocation7 + $0x5a8] sm:$0xff]
        %v655 = vld [vmem:[#allocation7 + $0x5b0] sm:$0xff]
        %v656 = vld [vmem:[#allocation7 + $0x5b8] sm:$0xff]
        %v657 = vld [vmem:[#allocation7 + $0x5c0] sm:$0xff]
        %v658 = vld [vmem:[#allocation7 + $0x5c8] sm:$0xff]
        %v659 = vld [vmem:[#allocation7 + $0x5d0] sm:$0xff]
        %v660 = vld [vmem:[#allocation7 + $0x5d8] sm:$0xff]
        %v661 = vld [vmem:[#allocation7 + $0x5e0] sm:$0xff]
        %v662 = vld [vmem:[#allocation7 + $0x5e8] sm:$0xff]
        %v663 = vld [vmem:[#allocation7 + $0x5f0] sm:$0xff]
        %v664 = vld [vmem:[#allocation7 + $0x5f8] sm:$0xff]
        %v665 = vld [vmem:[#allocation7 + $0x600] sm:$0xff]
        %v666 = vld [vmem:[#allocation7 + $0x608] sm:$0xff]
        %v667 = vld [vmem:[#allocation7 + $0x610] sm:$0xff]
        %v668 = vld [vmem:[#allocation7 + $0x618] sm:$0xff]
        %v669 = vld [vmem:[#allocation7 + $0x620] sm:$0xff]
        %v670 = vld [vmem:[#allocation7 + $0x628] sm:$0xff]
        %v671 = vld [vmem:[#allocation7 + $0x630] sm:$0xff]
        %v672 = vld [vmem:[#allocation7 + $0x638] sm:$0xff]
        %v673 = vld [vmem:[#allocation7 + $0x640] sm:$0xff]
        %v674 = vld [vmem:[#allocation7 + $0x648] sm:$0xff]
        %v675 = vld [vmem:[#allocation7 + $0x650] sm:$0xff]
        %v676 = vld [vmem:[#allocation7 + $0x658] sm:$0xff]
        %v677 = vld [vmem:[#allocation7 + $0x660] sm:$0xff]
        %v678 = vld [vmem:[#allocation7 + $0x668] sm:$0xff]
        %v679 = vld [vmem:[#allocation7 + $0x670] sm:$0xff]
        %v680 = vld [vmem:[#allocation7 + $0x678] sm:$0xff]
        %v681 = vld [vmem:[#allocation7 + $0x680] sm:$0xff]
        %v682 = vld [vmem:[#allocation7 + $0x688] sm:$0xff]
        %v683 = vld [vmem:[#allocation7 + $0x690] sm:$0xff]
        %v684 = vld [vmem:[#allocation7 + $0x698] sm:$0xff]
        %v685 = vld [vmem:[#allocation7 + $0x6a0] sm:$0xff]
        %v686 = vld [vmem:[#allocation7 + $0x6a8] sm:$0xff]
        %v687 = vld [vmem:[#allocation7 + $0x6b0] sm:$0xff]
        %v688 = vld [vmem:[#allocation7 + $0x6b8] sm:$0xff]
        %v689 = vld [vmem:[#allocation7 + $0x6c0] sm:$0xff]
        %v690 = vld [vmem:[#allocation7 + $0x6c8] sm:$0xff]
        %v691 = vld [vmem:[#allocation7 + $0x6d0] sm:$0xff]
        %v692 = vld [vmem:[#allocation7 + $0x6d8] sm:$0xff]
        %v693 = vld [vmem:[#allocation7 + $0x6e0] sm:$0xff]
        %v694 = vld [vmem:[#allocation7 + $0x6e8] sm:$0xff]
        %v695 = vld [vmem:[#allocation7 + $0x6f0] sm:$0xff]
        %v696 = vld [vmem:[#allocation7 + $0x6f8] sm:$0xff]
        %v697 = vld [vmem:[#allocation7 + $0x700] sm:$0xff]
        %v698 = vld [vmem:[#allocation7 + $0x708] sm:$0xff]
        %v699 = vld [vmem:[#allocation7 + $0x710] sm:$0xff]
        %v700 = vld [vmem:[#allocation7 + $0x718] sm:$0xff]
        %v701 = vld [vmem:[#allocation7 + $0x720] sm:$0xff]
        %v702 = vld [vmem:[#allocation7 + $0x728] sm:$0xff]
        %v703 = vld [vmem:[#allocation7 + $0x730] sm:$0xff]
        %v704 = vld [vmem:[#allocation7 + $0x738] sm:$0xff]
        %v705 = vld [vmem:[#allocation7 + $0x740] sm:$0xff]
        %v706 = vld [vmem:[#allocation7 + $0x748] sm:$0xff]
        %v707 = vld [vmem:[#allocation7 + $0x750] sm:$0xff]
        %v708 = vld [vmem:[#allocation7 + $0x758] sm:$0xff]
        %v709 = vld [vmem:[#allocation7 + $0x760] sm:$0xff]
        %v710 = vld [vmem:[#allocation7 + $0x768] sm:$0xff]
        %v711 = vld [vmem:[#allocation7 + $0x770] sm:$0xff]
        %v712 = vld [vmem:[#allocation7 + $0x778] sm:$0xff]
        %v713 = vld [vmem:[#allocation7 + $0x780] sm:$0xff]
        %v714 = vld [vmem:[#allocation7 + $0x788] sm:$0xff]
        %v715 = vld [vmem:[#allocation7 + $0x790] sm:$0xff]
        %v716 = vld [vmem:[#allocation7 + $0x798] sm:$0xff]
        %v717 = vld [vmem:[#allocation7 + $0x7a0] sm:$0xff]
        %v718 = vld [vmem:[#allocation7 + $0x7a8] sm:$0xff]
        %v719 = vld [vmem:[#allocation7 + $0x7b0] sm:$0xff]
        %v720 = vld [vmem:[#allocation7 + $0x7b8] sm:$0xff]
        %v721 = vld [vmem:[#allocation7 + $0x7c0] sm:$0xff]
        %v722 = vld [vmem:[#allocation7 + $0x7c8] sm:$0xff]
        %v723 = vld [vmem:[#allocation7 + $0x7d0] sm:$0xff]
        %v724 = vld [vmem:[#allocation7 + $0x7d8] sm:$0xff]
        %v725 = vld [vmem:[#allocation7 + $0x7e0] sm:$0xff]
        %v726 = vld [vmem:[#allocation7 + $0x7e8] sm:$0xff]
        %v727 = vld [vmem:[#allocation7 + $0x7f0] sm:$0xff]
        %v728 = vld [vmem:[#allocation7 + $0x7f8] sm:$0xff]
        %v729 = vld [vmem:[#allocation7 + $0x800] sm:$0xff]
        %v730 = vld [vmem:[#allocation7 + $0x808] sm:$0xff]
        %v731 = vld [vmem:[#allocation7 + $0x810] sm:$0xff]
        %v732 = vld [vmem:[#allocation7 + $0x818] sm:$0xff]
        %v733 = vld [vmem:[#allocation7 + $0x820] sm:$0xff]
        %v734 = vld [vmem:[#allocation7 + $0x828] sm:$0xff]
        %v735 = vld [vmem:[#allocation7 + $0x830] sm:$0xff]
        %v736 = vld [vmem:[#allocation7 + $0x838] sm:$0xff]
        %v737 = vld [vmem:[#allocation7 + $0x840] sm:$0xff]
        %v738 = vld [vmem:[#allocation7 + $0x848] sm:$0xff]
        %v739 = vld [vmem:[#allocation7 + $0x850] sm:$0xff]
        %v740 = vld [vmem:[#allocation7 + $0x858] sm:$0xff]
        %v741 = vld [vmem:[#allocation7 + $0x860] sm:$0xff]
        %v742 = vld [vmem:[#allocation7 + $0x868] sm:$0xff]
        %v743 = vld [vmem:[#allocation7 + $0x870] sm:$0xff]
        %v744 = vld [vmem:[#allocation7 + $0x878] sm:$0xff]
        %v745 = vld [vmem:[#allocation7 + $0x880] sm:$0xff]
        %v746 = vld [vmem:[#allocation7 + $0x888] sm:$0xff]
        %v747 = vld [vmem:[#allocation7 + $0x890] sm:$0xff]
        %v748 = vld [vmem:[#allocation7 + $0x898] sm:$0xff]
        %v749 = vld [vmem:[#allocation7 + $0x8a0] sm:$0xff]
        %v750 = vld [vmem:[#allocation7 + $0x8a8] sm:$0xff]
        %v751 = vld [vmem:[#allocation7 + $0x8b0] sm:$0xff]
        %v752 = vld [vmem:[#allocation7 + $0x8b8] sm:$0xff]
        %v753 = vld [vmem:[#allocation7 + $0x8c0] sm:$0xff]
        %v754 = vld [vmem:[#allocation7 + $0x8c8] sm:$0xff]
        %v755 = vld [vmem:[#allocation7 + $0x8d0] sm:$0xff]
        %v756 = vld [vmem:[#allocation7 + $0x8d8] sm:$0xff]
        %v757 = vld [vmem:[#allocation7 + $0x8e0] sm:$0xff]
        %v758 = vld [vmem:[#allocation7 + $0x8e8] sm:$0xff]
        %v759 = vld [vmem:[#allocation7 + $0x8f0] sm:$0xff]
        %v760 = vld [vmem:[#allocation7 + $0x8f8] sm:$0xff]
        %v857 = vunpack.c.l.b16 %v473
        %v858 = vunpack.c.h.b16 %v473
        %v859 = vunpack.c.l.b16 %v474
        %v860 = vunpack.c.h.b16 %v474
        %v861 = vunpack.c.l.b16 %v475
        %v862 = vunpack.c.h.b16 %v475
        %v863 = vunpack.c.l.b16 %v476
        %v864 = vunpack.c.h.b16 %v476
        %v865 = vunpack.c.l.b16 %v477
        %v866 = vunpack.c.h.b16 %v477
        %v867 = vunpack.c.l.b16 %v478
        %v868 = vunpack.c.h.b16 %v478
        %v869 = vunpack.c.l.b16 %v479
        %v870 = vunpack.c.h.b16 %v479
        %v871 = vunpack.c.l.b16 %v480
        %v872 = vunpack.c.h.b16 %v480
        %v873 = vunpack.c.l.b16 %v481
        %v874 = vunpack.c.h.b16 %v481
        %v875 = vunpack.c.l.b16 %v482
        %v876 = vunpack.c.h.b16 %v482
        %v877 = vunpack.c.l.b16 %v483
        %v878 = vunpack.c.h.b16 %v483
        %v879 = vunpack.c.l.b16 %v484
        %v880 = vunpack.c.h.b16 %v484
        %v881 = vunpack.c.l.b16 %v485
        %v882 = vunpack.c.h.b16 %v485
        %v883 = vunpack.c.l.b16 %v486
        %v884 = vunpack.c.h.b16 %v486
        %v885 = vunpack.c.l.b16 %v487
        %v886 = vunpack.c.h.b16 %v487
        %v887 = vunpack.c.l.b16 %v488
        %v888 = vunpack.c.h.b16 %v488
        %v889 = vunpack.c.l.b16 %v489
        %v890 = vunpack.c.h.b16 %v489
        %v891 = vunpack.c.l.b16 %v490
        %v892 = vunpack.c.h.b16 %v490
        %v893 = vunpack.c.l.b16 %v491
        %v894 = vunpack.c.h.b16 %v491
        %v895 = vunpack.c.l.b16 %v492
        %v896 = vunpack.c.h.b16 %v492
        %v897 = vunpack.c.l.b16 %v493
        %v898 = vunpack.c.h.b16 %v493
        %v899 = vunpack.c.l.b16 %v494
        %v900 = vunpack.c.h.b16 %v494
        %v901 = vunpack.c.l.b16 %v495
        %v902 = vunpack.c.h.b16 %v495
        %v903 = vunpack.c.l.b16 %v496
        %v904 = vunpack.c.h.b16 %v496
        %v905 = vunpack.c.l.b16 %v497
        %v906 = vunpack.c.h.b16 %v497
        %v907 = vunpack.c.l.b16 %v498
        %v908 = vunpack.c.h.b16 %v498
        %v909 = vunpack.c.l.b16 %v499
        %v910 = vunpack.c.h.b16 %v499
        %v911 = vunpack.c.l.b16 %v500
        %v912 = vunpack.c.h.b16 %v500
        %v913 = vunpack.c.l.b16 %v501
        %v914 = vunpack.c.h.b16 %v501
        %v915 = vunpack.c.l.b16 %v502
        %v916 = vunpack.c.h.b16 %v502
        %v917 = vunpack.c.l.b16 %v503
        %v918 = vunpack.c.h.b16 %v503
        %v919 = vunpack.c.l.b16 %v504
        %v920 = vunpack.c.h.b16 %v504
        %v921 = vunpack.c.l.b16 %v505
        %v922 = vunpack.c.h.b16 %v505
        %v923 = vunpack.c.l.b16 %v506
        %v924 = vunpack.c.h.b16 %v506
        %v925 = vunpack.c.l.b16 %v507
        %v926 = vunpack.c.h.b16 %v507
        %v927 = vunpack.c.l.b16 %v508
        %v928 = vunpack.c.h.b16 %v508
        %v929 = vunpack.c.l.b16 %v509
        %v930 = vunpack.c.h.b16 %v509
        %v931 = vunpack.c.l.b16 %v510
        %v932 = vunpack.c.h.b16 %v510
        %v933 = vunpack.c.l.b16 %v511
        %v934 = vunpack.c.h.b16 %v511
        %v935 = vunpack.c.l.b16 %v512
        %v936 = vunpack.c.h.b16 %v512
        %v937 = vunpack.c.l.b16 %v513
        %v938 = vunpack.c.h.b16 %v513
        %v939 = vunpack.c.l.b16 %v514
        %v940 = vunpack.c.h.b16 %v514
        %v941 = vunpack.c.l.b16 %v515
        %v942 = vunpack.c.h.b16 %v515
        %v943 = vunpack.c.l.b16 %v516
        %v944 = vunpack.c.h.b16 %v516
        %v945 = vunpack.c.l.b16 %v517
        %v946 = vunpack.c.h.b16 %v517
        %v947 = vunpack.c.l.b16 %v518
        %v948 = vunpack.c.h.b16 %v518
        %v949 = vunpack.c.l.b16 %v519
        %v950 = vunpack.c.h.b16 %v519
        %v951 = vunpack.c.l.b16 %v520
        %v952 = vunpack.c.h.b16 %v520
        %v953 = vunpack.c.l.b16 %v521
        %v954 = vunpack.c.h.b16 %v521
        %v955 = vunpack.c.l.b16 %v522
        %v956 = vunpack.c.h.b16 %v522
        %v957 = vunpack.c.l.b16 %v523
        %v958 = vunpack.c.h.b16 %v523
        %v959 = vunpack.c.l.b16 %v524
        %v960 = vunpack.c.h.b16 %v524
        %v961 = vunpack.c.l.b16 %v525
        %v962 = vunpack.c.h.b16 %v525
        %v963 = vunpack.c.l.b16 %v526
        %v964 = vunpack.c.h.b16 %v526
        %v965 = vunpack.c.l.b16 %v527
        %v966 = vunpack.c.h.b16 %v527
        %v967 = vunpack.c.l.b16 %v528
        %v968 = vunpack.c.h.b16 %v528
        %v969 = vunpack.c.l.b16 %v529
        %v970 = vunpack.c.h.b16 %v529
        %v971 = vunpack.c.l.b16 %v530
        %v972 = vunpack.c.h.b16 %v530
        %v973 = vunpack.c.l.b16 %v531
        %v974 = vunpack.c.h.b16 %v531
        %v975 = vunpack.c.l.b16 %v532
        %v976 = vunpack.c.h.b16 %v532
        %v977 = vunpack.c.l.b16 %v533
        %v978 = vunpack.c.h.b16 %v533
        %v979 = vunpack.c.l.b16 %v534
        %v980 = vunpack.c.h.b16 %v534
        %v981 = vunpack.c.l.b16 %v535
        %v982 = vunpack.c.h.b16 %v535
        %v983 = vunpack.c.l.b16 %v536
        %v984 = vunpack.c.h.b16 %v536
        %v985 = vunpack.c.l.b16 %v537
        %v986 = vunpack.c.h.b16 %v537
        %v987 = vunpack.c.l.b16 %v538
        %v988 = vunpack.c.h.b16 %v538
        %v989 = vunpack.c.l.b16 %v539
        %v990 = vunpack.c.h.b16 %v539
        %v991 = vunpack.c.l.b16 %v540
        %v992 = vunpack.c.h.b16 %v540
        %v993 = vunpack.c.l.b16 %v541
        %v994 = vunpack.c.h.b16 %v541
        %v995 = vunpack.c.l.b16 %v542
        %v996 = vunpack.c.h.b16 %v542
        %v997 = vunpack.c.l.b16 %v543
        %v998 = vunpack.c.h.b16 %v543
        %v999 = vunpack.c.l.b16 %v544
        %v1000 = vunpack.c.h.b16 %v544
        %v1001 = vunpack.c.l.b16 %v545
        %v1002 = vunpack.c.h.b16 %v545
        %v1003 = vunpack.c.l.b16 %v546
        %v1004 = vunpack.c.h.b16 %v546
        %v1005 = vunpack.c.l.b16 %v547
        %v1006 = vunpack.c.h.b16 %v547
        %v1007 = vunpack.c.l.b16 %v548
        %v1008 = vunpack.c.h.b16 %v548
        %v1009 = vunpack.c.l.b16 %v549
        %v1010 = vunpack.c.h.b16 %v549
        %v1011 = vunpack.c.l.b16 %v550
        %v1012 = vunpack.c.h.b16 %v550
        %v1013 = vunpack.c.l.b16 %v551
        %v1014 = vunpack.c.h.b16 %v551
        %v1015 = vunpack.c.l.b16 %v552
        %v1016 = vunpack.c.h.b16 %v552
        %v1017 = vunpack.c.l.b16 %v553
        %v1018 = vunpack.c.h.b16 %v553
        %v1019 = vunpack.c.l.b16 %v554
        %v1020 = vunpack.c.h.b16 %v554
        %v1021 = vunpack.c.l.b16 %v555
        %v1022 = vunpack.c.h.b16 %v555
        %v1023 = vunpack.c.l.b16 %v556
        %v1024 = vunpack.c.h.b16 %v556
        %v1025 = vunpack.c.l.b16 %v557
        %v1026 = vunpack.c.h.b16 %v557
        %v1027 = vunpack.c.l.b16 %v558
        %v1028 = vunpack.c.h.b16 %v558
        %v1029 = vunpack.c.l.b16 %v559
        %v1030 = vunpack.c.h.b16 %v559
        %v1031 = vunpack.c.l.b16 %v560
        %v1032 = vunpack.c.h.b16 %v560
        %v1033 = vunpack.c.l.b16 %v561
        %v1034 = vunpack.c.h.b16 %v561
        %v1035 = vunpack.c.l.b16 %v562
        %v1036 = vunpack.c.h.b16 %v562
        %v1037 = vunpack.c.l.b16 %v563
        %v1038 = vunpack.c.h.b16 %v563
        %v1039 = vunpack.c.l.b16 %v564
        %v1040 = vunpack.c.h.b16 %v564
        %v1041 = vunpack.c.l.b16 %v565
        %v1042 = vunpack.c.h.b16 %v565
        %v1043 = vunpack.c.l.b16 %v566
        %v1044 = vunpack.c.h.b16 %v566
        %v1045 = vunpack.c.l.b16 %v567
        %v1046 = vunpack.c.h.b16 %v567
        %v1047 = vunpack.c.l.b16 %v568
        %v1048 = vunpack.c.h.b16 %v568
        %v1049 = vpack.c.b16 %v869, %v857
        %v1050 = vpack.c.b16 %v870, %v858
        %v1051 = vpack.c.b16 %v871, %v859
        %v1052 = vpack.c.b16 %v872, %v860
        %v1053 = vpack.c.b16 %v873, %v861
        %v1054 = vpack.c.b16 %v874, %v862
        %v1055 = vpack.c.b16 %v875, %v863
        %v1056 = vpack.c.b16 %v876, %v864
        %v1057 = vpack.c.b16 %v877, %v865
        %v1058 = vpack.c.b16 %v878, %v866
        %v1059 = vpack.c.b16 %v879, %v867
        %v1060 = vpack.c.b16 %v880, %v868
        %v1061 = vpack.c.b16 %v893, %v881
        %v1062 = vpack.c.b16 %v894, %v882
        %v1063 = vpack.c.b16 %v895, %v883
        %v1064 = vpack.c.b16 %v896, %v884
        %v1065 = vpack.c.b16 %v897, %v885
        %v1066 = vpack.c.b16 %v898, %v886
        %v1067 = vpack.c.b16 %v899, %v887
        %v1068 = vpack.c.b16 %v900, %v888
        %v1069 = vpack.c.b16 %v901, %v889
        %v1070 = vpack.c.b16 %v902, %v890
        %v1071 = vpack.c.b16 %v903, %v891
        %v1072 = vpack.c.b16 %v904, %v892
        %v1073 = vpack.c.b16 %v917, %v905
        %v1074 = vpack.c.b16 %v918, %v906
        %v1075 = vpack.c.b16 %v919, %v907
        %v1076 = vpack.c.b16 %v920, %v908
        %v1077 = vpack.c.b16 %v921, %v909
        %v1078 = vpack.c.b16 %v922, %v910
        %v1079 = vpack.c.b16 %v923, %v911
        %v1080 = vpack.c.b16 %v924, %v912
        %v1081 = vpack.c.b16 %v925, %v913
        %v1082 = vpack.c.b16 %v926, %v914
        %v1083 = vpack.c.b16 %v927, %v915
        %v1084 = vpack.c.b16 %v928, %v916
        %v1085 = vpack.c.b16 %v941, %v929
        %v1086 = vpack.c.b16 %v942, %v930
        %v1087 = vpack.c.b16 %v943, %v931
        %v1088 = vpack.c.b16 %v944, %v932
        %v1089 = vpack.c.b16 %v945, %v933
        %v1090 = vpack.c.b16 %v946, %v934
        %v1091 = vpack.c.b16 %v947, %v935
        %v1092 = vpack.c.b16 %v948, %v936
        %v1093 = vpack.c.b16 %v949, %v937
        %v1094 = vpack.c.b16 %v950, %v938
        %v1095 = vpack.c.b16 %v951, %v939
        %v1096 = vpack.c.b16 %v952, %v940
        %v1097 = vpack.c.b16 %v965, %v953
        %v1098 = vpack.c.b16 %v966, %v954
        %v1099 = vpack.c.b16 %v967, %v955
        %v1100 = vpack.c.b16 %v968, %v956
        %v1101 = vpack.c.b16 %v969, %v957
        %v1102 = vpack.c.b16 %v970, %v958
        %v1103 = vpack.c.b16 %v971, %v959
        %v1104 = vpack.c.b16 %v972, %v960
        %v1105 = vpack.c.b16 %v973, %v961
        %v1106 = vpack.c.b16 %v974, %v962
        %v1107 = vpack.c.b16 %v975, %v963
        %v1108 = vpack.c.b16 %v976, %v964
        %v1109 = vpack.c.b16 %v989, %v977
        %v1110 = vpack.c.b16 %v990, %v978
        %v1111 = vpack.c.b16 %v991, %v979
        %v1112 = vpack.c.b16 %v992, %v980
        %v1113 = vpack.c.b16 %v993, %v981
        %v1114 = vpack.c.b16 %v994, %v982
        %v1115 = vpack.c.b16 %v995, %v983
        %v1116 = vpack.c.b16 %v996, %v984
        %v1117 = vpack.c.b16 %v997, %v985
        %v1118 = vpack.c.b16 %v998, %v986
        %v1119 = vpack.c.b16 %v999, %v987
        %v1120 = vpack.c.b16 %v1000, %v988
        %v1121 = vpack.c.b16 %v1013, %v1001
        %v1122 = vpack.c.b16 %v1014, %v1002
        %v1123 = vpack.c.b16 %v1015, %v1003
        %v1124 = vpack.c.b16 %v1016, %v1004
        %v1125 = vpack.c.b16 %v1017, %v1005
        %v1126 = vpack.c.b16 %v1018, %v1006
        %v1127 = vpack.c.b16 %v1019, %v1007
        %v1128 = vpack.c.b16 %v1020, %v1008
        %v1129 = vpack.c.b16 %v1021, %v1009
        %v1130 = vpack.c.b16 %v1022, %v1010
        %v1131 = vpack.c.b16 %v1023, %v1011
        %v1132 = vpack.c.b16 %v1024, %v1012
        %v1133 = vpack.c.b16 %v1037, %v1025
        %v1134 = vpack.c.b16 %v1038, %v1026
        %v1135 = vpack.c.b16 %v1039, %v1027
        %v1136 = vpack.c.b16 %v1040, %v1028
        %v1137 = vpack.c.b16 %v1041, %v1029
        %v1138 = vpack.c.b16 %v1042, %v1030
        %v1139 = vpack.c.b16 %v1043, %v1031
        %v1140 = vpack.c.b16 %v1044, %v1032
        %v1141 = vpack.c.b16 %v1045, %v1033
        %v1142 = vpack.c.b16 %v1046, %v1034
        %v1143 = vpack.c.b16 %v1047, %v1035
        %v1144 = vpack.c.b16 %v1048, %v1036
        %v1433 = vunpack.c.l.b16 %v569
        %v1434 = vunpack.c.h.b16 %v569
        %v1435 = vunpack.c.l.b16 %v570
        %v1436 = vunpack.c.h.b16 %v570
        %v1437 = vunpack.c.l.b16 %v571
        %v1438 = vunpack.c.h.b16 %v571
        %v1439 = vunpack.c.l.b16 %v572
        %v1440 = vunpack.c.h.b16 %v572
        %v1441 = vunpack.c.l.b16 %v573
        %v1442 = vunpack.c.h.b16 %v573
        %v1443 = vunpack.c.l.b16 %v574
        %v1444 = vunpack.c.h.b16 %v574
        %v1445 = vunpack.c.l.b16 %v575
        %v1446 = vunpack.c.h.b16 %v575
        %v1447 = vunpack.c.l.b16 %v576
        %v1448 = vunpack.c.h.b16 %v576
        %v1449 = vunpack.c.l.b16 %v577
        %v1450 = vunpack.c.h.b16 %v577
        %v1451 = vunpack.c.l.b16 %v578
        %v1452 = vunpack.c.h.b16 %v578
        %v1453 = vunpack.c.l.b16 %v579
        %v1454 = vunpack.c.h.b16 %v579
        %v1455 = vunpack.c.l.b16 %v580
        %v1456 = vunpack.c.h.b16 %v580
        %v1457 = vunpack.c.l.b16 %v581
        %v1458 = vunpack.c.h.b16 %v581
        %v1459 = vunpack.c.l.b16 %v582
        %v1460 = vunpack.c.h.b16 %v582
        %v1461 = vunpack.c.l.b16 %v583
        %v1462 = vunpack.c.h.b16 %v583
        %v1463 = vunpack.c.l.b16 %v584
        %v1464 = vunpack.c.h.b16 %v584
        %v1465 = vunpack.c.l.b16 %v585
        %v1466 = vunpack.c.h.b16 %v585
        %v1467 = vunpack.c.l.b16 %v586
        %v1468 = vunpack.c.h.b16 %v586
        %v1469 = vunpack.c.l.b16 %v587
        %v1470 = vunpack.c.h.b16 %v587
        %v1471 = vunpack.c.l.b16 %v588
        %v1472 = vunpack.c.h.b16 %v588
        %v1473 = vunpack.c.l.b16 %v589
        %v1474 = vunpack.c.h.b16 %v589
        %v1475 = vunpack.c.l.b16 %v590
        %v1476 = vunpack.c.h.b16 %v590
        %v1477 = vunpack.c.l.b16 %v591
        %v1478 = vunpack.c.h.b16 %v591
        %v1479 = vunpack.c.l.b16 %v592
        %v1480 = vunpack.c.h.b16 %v592
        %v1481 = vunpack.c.l.b16 %v593
        %v1482 = vunpack.c.h.b16 %v593
        %v1483 = vunpack.c.l.b16 %v594
        %v1484 = vunpack.c.h.b16 %v594
        %v1485 = vunpack.c.l.b16 %v595
        %v1486 = vunpack.c.h.b16 %v595
        %v1487 = vunpack.c.l.b16 %v596
        %v1488 = vunpack.c.h.b16 %v596
        %v1489 = vunpack.c.l.b16 %v597
        %v1490 = vunpack.c.h.b16 %v597
        %v1491 = vunpack.c.l.b16 %v598
        %v1492 = vunpack.c.h.b16 %v598
        %v1493 = vunpack.c.l.b16 %v599
        %v1494 = vunpack.c.h.b16 %v599
        %v1495 = vunpack.c.l.b16 %v600
        %v1496 = vunpack.c.h.b16 %v600
        %v1497 = vunpack.c.l.b16 %v601
        %v1498 = vunpack.c.h.b16 %v601
        %v1499 = vunpack.c.l.b16 %v602
        %v1500 = vunpack.c.h.b16 %v602
        %v1501 = vunpack.c.l.b16 %v603
        %v1502 = vunpack.c.h.b16 %v603
        %v1503 = vunpack.c.l.b16 %v604
        %v1504 = vunpack.c.h.b16 %v604
        %v1505 = vunpack.c.l.b16 %v605
        %v1506 = vunpack.c.h.b16 %v605
        %v1507 = vunpack.c.l.b16 %v606
        %v1508 = vunpack.c.h.b16 %v606
        %v1509 = vunpack.c.l.b16 %v607
        %v1510 = vunpack.c.h.b16 %v607
        %v1511 = vunpack.c.l.b16 %v608
        %v1512 = vunpack.c.h.b16 %v608
        %v1513 = vunpack.c.l.b16 %v609
        %v1514 = vunpack.c.h.b16 %v609
        %v1515 = vunpack.c.l.b16 %v610
        %v1516 = vunpack.c.h.b16 %v610
        %v1517 = vunpack.c.l.b16 %v611
        %v1518 = vunpack.c.h.b16 %v611
        %v1519 = vunpack.c.l.b16 %v612
        %v1520 = vunpack.c.h.b16 %v612
        %v1521 = vunpack.c.l.b16 %v613
        %v1522 = vunpack.c.h.b16 %v613
        %v1523 = vunpack.c.l.b16 %v614
        %v1524 = vunpack.c.h.b16 %v614
        %v1525 = vunpack.c.l.b16 %v615
        %v1526 = vunpack.c.h.b16 %v615
        %v1527 = vunpack.c.l.b16 %v616
        %v1528 = vunpack.c.h.b16 %v616
        %v1529 = vunpack.c.l.b16 %v617
        %v1530 = vunpack.c.h.b16 %v617
        %v1531 = vunpack.c.l.b16 %v618
        %v1532 = vunpack.c.h.b16 %v618
        %v1533 = vunpack.c.l.b16 %v619
        %v1534 = vunpack.c.h.b16 %v619
        %v1535 = vunpack.c.l.b16 %v620
        %v1536 = vunpack.c.h.b16 %v620
        %v1537 = vunpack.c.l.b16 %v621
        %v1538 = vunpack.c.h.b16 %v621
        %v1539 = vunpack.c.l.b16 %v622
        %v1540 = vunpack.c.h.b16 %v622
        %v1541 = vunpack.c.l.b16 %v623
        %v1542 = vunpack.c.h.b16 %v623
        %v1543 = vunpack.c.l.b16 %v624
        %v1544 = vunpack.c.h.b16 %v624
        %v1545 = vunpack.c.l.b16 %v625
        %v1546 = vunpack.c.h.b16 %v625
        %v1547 = vunpack.c.l.b16 %v626
        %v1548 = vunpack.c.h.b16 %v626
        %v1549 = vunpack.c.l.b16 %v627
        %v1550 = vunpack.c.h.b16 %v627
        %v1551 = vunpack.c.l.b16 %v628
        %v1552 = vunpack.c.h.b16 %v628
        %v1553 = vunpack.c.l.b16 %v629
        %v1554 = vunpack.c.h.b16 %v629
        %v1555 = vunpack.c.l.b16 %v630
        %v1556 = vunpack.c.h.b16 %v630
        %v1557 = vunpack.c.l.b16 %v631
        %v1558 = vunpack.c.h.b16 %v631
        %v1559 = vunpack.c.l.b16 %v632
        %v1560 = vunpack.c.h.b16 %v632
        %v1561 = vunpack.c.l.b16 %v633
        %v1562 = vunpack.c.h.b16 %v633
        %v1563 = vunpack.c.l.b16 %v634
        %v1564 = vunpack.c.h.b16 %v634
        %v1565 = vunpack.c.l.b16 %v635
        %v1566 = vunpack.c.h.b16 %v635
        %v1567 = vunpack.c.l.b16 %v636
        %v1568 = vunpack.c.h.b16 %v636
        %v1569 = vunpack.c.l.b16 %v637
        %v1570 = vunpack.c.h.b16 %v637
        %v1571 = vunpack.c.l.b16 %v638
        %v1572 = vunpack.c.h.b16 %v638
        %v1573 = vunpack.c.l.b16 %v639
        %v1574 = vunpack.c.h.b16 %v639
        %v1575 = vunpack.c.l.b16 %v640
        %v1576 = vunpack.c.h.b16 %v640
        %v1577 = vunpack.c.l.b16 %v641
        %v1578 = vunpack.c.h.b16 %v641
        %v1579 = vunpack.c.l.b16 %v642
        %v1580 = vunpack.c.h.b16 %v642
        %v1581 = vunpack.c.l.b16 %v643
        %v1582 = vunpack.c.h.b16 %v643
        %v1583 = vunpack.c.l.b16 %v644
        %v1584 = vunpack.c.h.b16 %v644
        %v1585 = vunpack.c.l.b16 %v645
        %v1586 = vunpack.c.h.b16 %v645
        %v1587 = vunpack.c.l.b16 %v646
        %v1588 = vunpack.c.h.b16 %v646
        %v1589 = vunpack.c.l.b16 %v647
        %v1590 = vunpack.c.h.b16 %v647
        %v1591 = vunpack.c.l.b16 %v648
        %v1592 = vunpack.c.h.b16 %v648
        %v1593 = vunpack.c.l.b16 %v649
        %v1594 = vunpack.c.h.b16 %v649
        %v1595 = vunpack.c.l.b16 %v650
        %v1596 = vunpack.c.h.b16 %v650
        %v1597 = vunpack.c.l.b16 %v651
        %v1598 = vunpack.c.h.b16 %v651
        %v1599 = vunpack.c.l.b16 %v652
        %v1600 = vunpack.c.h.b16 %v652
        %v1601 = vunpack.c.l.b16 %v653
        %v1602 = vunpack.c.h.b16 %v653
        %v1603 = vunpack.c.l.b16 %v654
        %v1604 = vunpack.c.h.b16 %v654
        %v1605 = vunpack.c.l.b16 %v655
        %v1606 = vunpack.c.h.b16 %v655
        %v1607 = vunpack.c.l.b16 %v656
        %v1608 = vunpack.c.h.b16 %v656
        %v1609 = vunpack.c.l.b16 %v657
        %v1610 = vunpack.c.h.b16 %v657
        %v1611 = vunpack.c.l.b16 %v658
        %v1612 = vunpack.c.h.b16 %v658
        %v1613 = vunpack.c.l.b16 %v659
        %v1614 = vunpack.c.h.b16 %v659
        %v1615 = vunpack.c.l.b16 %v660
        %v1616 = vunpack.c.h.b16 %v660
        %v1617 = vunpack.c.l.b16 %v661
        %v1618 = vunpack.c.h.b16 %v661
        %v1619 = vunpack.c.l.b16 %v662
        %v1620 = vunpack.c.h.b16 %v662
        %v1621 = vunpack.c.l.b16 %v663
        %v1622 = vunpack.c.h.b16 %v663
        %v1623 = vunpack.c.l.b16 %v664
        %v1624 = vunpack.c.h.b16 %v664
        %v1625 = vunpack.c.l.b16 %v665
        %v1626 = vunpack.c.h.b16 %v665
        %v1627 = vunpack.c.l.b16 %v666
        %v1628 = vunpack.c.h.b16 %v666
        %v1629 = vunpack.c.l.b16 %v667
        %v1630 = vunpack.c.h.b16 %v667
        %v1631 = vunpack.c.l.b16 %v668
        %v1632 = vunpack.c.h.b16 %v668
        %v1633 = vunpack.c.l.b16 %v669
        %v1634 = vunpack.c.h.b16 %v669
        %v1635 = vunpack.c.l.b16 %v670
        %v1636 = vunpack.c.h.b16 %v670
        %v1637 = vunpack.c.l.b16 %v671
        %v1638 = vunpack.c.h.b16 %v671
        %v1639 = vunpack.c.l.b16 %v672
        %v1640 = vunpack.c.h.b16 %v672
        %v1641 = vunpack.c.l.b16 %v673
        %v1642 = vunpack.c.h.b16 %v673
        %v1643 = vunpack.c.l.b16 %v674
        %v1644 = vunpack.c.h.b16 %v674
        %v1645 = vunpack.c.l.b16 %v675
        %v1646 = vunpack.c.h.b16 %v675
        %v1647 = vunpack.c.l.b16 %v676
        %v1648 = vunpack.c.h.b16 %v676
        %v1649 = vunpack.c.l.b16 %v677
        %v1650 = vunpack.c.h.b16 %v677
        %v1651 = vunpack.c.l.b16 %v678
        %v1652 = vunpack.c.h.b16 %v678
        %v1653 = vunpack.c.l.b16 %v679
        %v1654 = vunpack.c.h.b16 %v679
        %v1655 = vunpack.c.l.b16 %v680
        %v1656 = vunpack.c.h.b16 %v680
        %v1657 = vunpack.c.l.b16 %v681
        %v1658 = vunpack.c.h.b16 %v681
        %v1659 = vunpack.c.l.b16 %v682
        %v1660 = vunpack.c.h.b16 %v682
        %v1661 = vunpack.c.l.b16 %v683
        %v1662 = vunpack.c.h.b16 %v683
        %v1663 = vunpack.c.l.b16 %v684
        %v1664 = vunpack.c.h.b16 %v684
        %v1665 = vunpack.c.l.b16 %v685
        %v1666 = vunpack.c.h.b16 %v685
        %v1667 = vunpack.c.l.b16 %v686
        %v1668 = vunpack.c.h.b16 %v686
        %v1669 = vunpack.c.l.b16 %v687
        %v1670 = vunpack.c.h.b16 %v687
        %v1671 = vunpack.c.l.b16 %v688
        %v1672 = vunpack.c.h.b16 %v688
        %v1673 = vunpack.c.l.b16 %v689
        %v1674 = vunpack.c.h.b16 %v689
        %v1675 = vunpack.c.l.b16 %v690
        %v1676 = vunpack.c.h.b16 %v690
        %v1677 = vunpack.c.l.b16 %v691
        %v1678 = vunpack.c.h.b16 %v691
        %v1679 = vunpack.c.l.b16 %v692
        %v1680 = vunpack.c.h.b16 %v692
        %v1681 = vunpack.c.l.b16 %v693
        %v1682 = vunpack.c.h.b16 %v693
        %v1683 = vunpack.c.l.b16 %v694
        %v1684 = vunpack.c.h.b16 %v694
        %v1685 = vunpack.c.l.b16 %v695
        %v1686 = vunpack.c.h.b16 %v695
        %v1687 = vunpack.c.l.b16 %v696
        %v1688 = vunpack.c.h.b16 %v696
        %v1689 = vunpack.c.l.b16 %v697
        %v1690 = vunpack.c.h.b16 %v697
        %v1691 = vunpack.c.l.b16 %v698
        %v1692 = vunpack.c.h.b16 %v698
        %v1693 = vunpack.c.l.b16 %v699
        %v1694 = vunpack.c.h.b16 %v699
        %v1695 = vunpack.c.l.b16 %v700
        %v1696 = vunpack.c.h.b16 %v700
        %v1697 = vunpack.c.l.b16 %v701
        %v1698 = vunpack.c.h.b16 %v701
        %v1699 = vunpack.c.l.b16 %v702
        %v1700 = vunpack.c.h.b16 %v702
        %v1701 = vunpack.c.l.b16 %v703
        %v1702 = vunpack.c.h.b16 %v703
        %v1703 = vunpack.c.l.b16 %v704
        %v1704 = vunpack.c.h.b16 %v704
        %v1705 = vunpack.c.l.b16 %v705
        %v1706 = vunpack.c.h.b16 %v705
        %v1707 = vunpack.c.l.b16 %v706
        %v1708 = vunpack.c.h.b16 %v706
        %v1709 = vunpack.c.l.b16 %v707
        %v1710 = vunpack.c.h.b16 %v707
        %v1711 = vunpack.c.l.b16 %v708
        %v1712 = vunpack.c.h.b16 %v708
        %v1713 = vunpack.c.l.b16 %v709
        %v1714 = vunpack.c.h.b16 %v709
        %v1715 = vunpack.c.l.b16 %v710
        %v1716 = vunpack.c.h.b16 %v710
        %v1717 = vunpack.c.l.b16 %v711
        %v1718 = vunpack.c.h.b16 %v711
        %v1719 = vunpack.c.l.b16 %v712
        %v1720 = vunpack.c.h.b16 %v712
        %v1721 = vunpack.c.l.b16 %v713
        %v1722 = vunpack.c.h.b16 %v713
        %v1723 = vunpack.c.l.b16 %v714
        %v1724 = vunpack.c.h.b16 %v714
        %v1725 = vunpack.c.l.b16 %v715
        %v1726 = vunpack.c.h.b16 %v715
        %v1727 = vunpack.c.l.b16 %v716
        %v1728 = vunpack.c.h.b16 %v716
        %v1729 = vunpack.c.l.b16 %v717
        %v1730 = vunpack.c.h.b16 %v717
        %v1731 = vunpack.c.l.b16 %v718
        %v1732 = vunpack.c.h.b16 %v718
        %v1733 = vunpack.c.l.b16 %v719
        %v1734 = vunpack.c.h.b16 %v719
        %v1735 = vunpack.c.l.b16 %v720
        %v1736 = vunpack.c.h.b16 %v720
        %v1737 = vunpack.c.l.b16 %v721
        %v1738 = vunpack.c.h.b16 %v721
        %v1739 = vunpack.c.l.b16 %v722
        %v1740 = vunpack.c.h.b16 %v722
        %v1741 = vunpack.c.l.b16 %v723
        %v1742 = vunpack.c.h.b16 %v723
        %v1743 = vunpack.c.l.b16 %v724
        %v1744 = vunpack.c.h.b16 %v724
        %v1745 = vunpack.c.l.b16 %v725
        %v1746 = vunpack.c.h.b16 %v725
        %v1747 = vunpack.c.l.b16 %v726
        %v1748 = vunpack.c.h.b16 %v726
        %v1749 = vunpack.c.l.b16 %v727
        %v1750 = vunpack.c.h.b16 %v727
        %v1751 = vunpack.c.l.b16 %v728
        %v1752 = vunpack.c.h.b16 %v728
        %v1753 = vunpack.c.l.b16 %v729
        %v1754 = vunpack.c.h.b16 %v729
        %v1755 = vunpack.c.l.b16 %v730
        %v1756 = vunpack.c.h.b16 %v730
        %v1757 = vunpack.c.l.b16 %v731
        %v1758 = vunpack.c.h.b16 %v731
        %v1759 = vunpack.c.l.b16 %v732
        %v1760 = vunpack.c.h.b16 %v732
        %v1761 = vunpack.c.l.b16 %v733
        %v1762 = vunpack.c.h.b16 %v733
        %v1763 = vunpack.c.l.b16 %v734
        %v1764 = vunpack.c.h.b16 %v734
        %v1765 = vunpack.c.l.b16 %v735
        %v1766 = vunpack.c.h.b16 %v735
        %v1767 = vunpack.c.l.b16 %v736
        %v1768 = vunpack.c.h.b16 %v736
        %v1769 = vunpack.c.l.b16 %v737
        %v1770 = vunpack.c.h.b16 %v737
        %v1771 = vunpack.c.l.b16 %v738
        %v1772 = vunpack.c.h.b16 %v738
        %v1773 = vunpack.c.l.b16 %v739
        %v1774 = vunpack.c.h.b16 %v739
        %v1775 = vunpack.c.l.b16 %v740
        %v1776 = vunpack.c.h.b16 %v740
        %v1777 = vunpack.c.l.b16 %v741
        %v1778 = vunpack.c.h.b16 %v741
        %v1779 = vunpack.c.l.b16 %v742
        %v1780 = vunpack.c.h.b16 %v742
        %v1781 = vunpack.c.l.b16 %v743
        %v1782 = vunpack.c.h.b16 %v743
        %v1783 = vunpack.c.l.b16 %v744
        %v1784 = vunpack.c.h.b16 %v744
        %v1785 = vunpack.c.l.b16 %v745
        %v1786 = vunpack.c.h.b16 %v745
        %v1787 = vunpack.c.l.b16 %v746
        %v1788 = vunpack.c.h.b16 %v746
        %v1789 = vunpack.c.l.b16 %v747
        %v1790 = vunpack.c.h.b16 %v747
        %v1791 = vunpack.c.l.b16 %v748
        %v1792 = vunpack.c.h.b16 %v748
        %v1793 = vunpack.c.l.b16 %v749
        %v1794 = vunpack.c.h.b16 %v749
        %v1795 = vunpack.c.l.b16 %v750
        %v1796 = vunpack.c.h.b16 %v750
        %v1797 = vunpack.c.l.b16 %v751
        %v1798 = vunpack.c.h.b16 %v751
        %v1799 = vunpack.c.l.b16 %v752
        %v1800 = vunpack.c.h.b16 %v752
        %v1801 = vunpack.c.l.b16 %v753
        %v1802 = vunpack.c.h.b16 %v753
        %v1803 = vunpack.c.l.b16 %v754
        %v1804 = vunpack.c.h.b16 %v754
        %v1805 = vunpack.c.l.b16 %v755
        %v1806 = vunpack.c.h.b16 %v755
        %v1807 = vunpack.c.l.b16 %v756
        %v1808 = vunpack.c.h.b16 %v756
        %v1809 = vunpack.c.l.b16 %v757
        %v1810 = vunpack.c.h.b16 %v757
        %v1811 = vunpack.c.l.b16 %v758
        %v1812 = vunpack.c.h.b16 %v758
        %v1813 = vunpack.c.l.b16 %v759
        %v1814 = vunpack.c.h.b16 %v759
        %v1815 = vunpack.c.l.b16 %v760
        %v1816 = vunpack.c.h.b16 %v760
        %v1817 = vpack.c.b16 %v1435, %v1433
        %v1818 = vpack.c.b16 %v1436, %v1434
        %v1819 = vpack.c.b16 %v1439, %v1437
        %v1820 = vpack.c.b16 %v1440, %v1438
        %v1821 = vpack.c.b16 %v1443, %v1441
        %v1822 = vpack.c.b16 %v1444, %v1442
        %v1823 = vpack.c.b16 %v1447, %v1445
        %v1824 = vpack.c.b16 %v1448, %v1446
        %v1825 = vpack.c.b16 %v1451, %v1449
        %v1826 = vpack.c.b16 %v1452, %v1450
        %v1827 = vpack.c.b16 %v1455, %v1453
        %v1828 = vpack.c.b16 %v1456, %v1454
        %v1829 = vpack.c.b16 %v1459, %v1457
        %v1830 = vpack.c.b16 %v1460, %v1458
        %v1831 = vpack.c.b16 %v1463, %v1461
        %v1832 = vpack.c.b16 %v1464, %v1462
        %v1833 = vpack.c.b16 %v1467, %v1465
        %v1834 = vpack.c.b16 %v1468, %v1466
        %v1835 = vpack.c.b16 %v1471, %v1469
        %v1836 = vpack.c.b16 %v1472, %v1470
        %v1837 = vpack.c.b16 %v1475, %v1473
        %v1838 = vpack.c.b16 %v1476, %v1474
        %v1839 = vpack.c.b16 %v1479, %v1477
        %v1840 = vpack.c.b16 %v1480, %v1478
        %v1841 = vpack.c.b16 %v1483, %v1481
        %v1842 = vpack.c.b16 %v1484, %v1482
        %v1843 = vpack.c.b16 %v1487, %v1485
        %v1844 = vpack.c.b16 %v1488, %v1486
        %v1845 = vpack.c.b16 %v1491, %v1489
        %v1846 = vpack.c.b16 %v1492, %v1490
        %v1847 = vpack.c.b16 %v1495, %v1493
        %v1848 = vpack.c.b16 %v1496, %v1494
        %v1849 = vpack.c.b16 %v1499, %v1497
        %v1850 = vpack.c.b16 %v1500, %v1498
        %v1851 = vpack.c.b16 %v1503, %v1501
        %v1852 = vpack.c.b16 %v1504, %v1502
        %v1853 = vpack.c.b16 %v1507, %v1505
        %v1854 = vpack.c.b16 %v1508, %v1506
        %v1855 = vpack.c.b16 %v1511, %v1509
        %v1856 = vpack.c.b16 %v1512, %v1510
        %v1857 = vpack.c.b16 %v1515, %v1513
        %v1858 = vpack.c.b16 %v1516, %v1514
        %v1859 = vpack.c.b16 %v1519, %v1517
        %v1860 = vpack.c.b16 %v1520, %v1518
        %v1861 = vpack.c.b16 %v1523, %v1521
        %v1862 = vpack.c.b16 %v1524, %v1522
        %v1863 = vpack.c.b16 %v1527, %v1525
        %v1864 = vpack.c.b16 %v1528, %v1526
        %v1865 = vpack.c.b16 %v1531, %v1529
        %v1866 = vpack.c.b16 %v1532, %v1530
        %v1867 = vpack.c.b16 %v1535, %v1533
        %v1868 = vpack.c.b16 %v1536, %v1534
        %v1869 = vpack.c.b16 %v1539, %v1537
        %v1870 = vpack.c.b16 %v1540, %v1538
        %v1871 = vpack.c.b16 %v1543, %v1541
        %v1872 = vpack.c.b16 %v1544, %v1542
        %v1873 = vpack.c.b16 %v1547, %v1545
        %v1874 = vpack.c.b16 %v1548, %v1546
        %v1875 = vpack.c.b16 %v1551, %v1549
        %v1876 = vpack.c.b16 %v1552, %v1550
        %v1877 = vpack.c.b16 %v1555, %v1553
        %v1878 = vpack.c.b16 %v1556, %v1554
        %v1879 = vpack.c.b16 %v1559, %v1557
        %v1880 = vpack.c.b16 %v1560, %v1558
        %v1881 = vpack.c.b16 %v1563, %v1561
        %v1882 = vpack.c.b16 %v1564, %v1562
        %v1883 = vpack.c.b16 %v1567, %v1565
        %v1884 = vpack.c.b16 %v1568, %v1566
        %v1885 = vpack.c.b16 %v1571, %v1569
        %v1886 = vpack.c.b16 %v1572, %v1570
        %v1887 = vpack.c.b16 %v1575, %v1573
        %v1888 = vpack.c.b16 %v1576, %v1574
        %v1889 = vpack.c.b16 %v1579, %v1577
        %v1890 = vpack.c.b16 %v1580, %v1578
        %v1891 = vpack.c.b16 %v1583, %v1581
        %v1892 = vpack.c.b16 %v1584, %v1582
        %v1893 = vpack.c.b16 %v1587, %v1585
        %v1894 = vpack.c.b16 %v1588, %v1586
        %v1895 = vpack.c.b16 %v1591, %v1589
        %v1896 = vpack.c.b16 %v1592, %v1590
        %v1897 = vpack.c.b16 %v1595, %v1593
        %v1898 = vpack.c.b16 %v1596, %v1594
        %v1899 = vpack.c.b16 %v1599, %v1597
        %v1900 = vpack.c.b16 %v1600, %v1598
        %v1901 = vpack.c.b16 %v1603, %v1601
        %v1902 = vpack.c.b16 %v1604, %v1602
        %v1903 = vpack.c.b16 %v1607, %v1605
        %v1904 = vpack.c.b16 %v1608, %v1606
        %v1905 = vpack.c.b16 %v1611, %v1609
        %v1906 = vpack.c.b16 %v1612, %v1610
        %v1907 = vpack.c.b16 %v1615, %v1613
        %v1908 = vpack.c.b16 %v1616, %v1614
        %v1909 = vpack.c.b16 %v1619, %v1617
        %v1910 = vpack.c.b16 %v1620, %v1618
        %v1911 = vpack.c.b16 %v1623, %v1621
        %v1912 = vpack.c.b16 %v1624, %v1622
        %v1913 = vpack.c.b16 %v1627, %v1625
        %v1914 = vpack.c.b16 %v1628, %v1626
        %v1915 = vpack.c.b16 %v1631, %v1629
        %v1916 = vpack.c.b16 %v1632, %v1630
        %v1917 = vpack.c.b16 %v1635, %v1633
        %v1918 = vpack.c.b16 %v1636, %v1634
        %v1919 = vpack.c.b16 %v1639, %v1637
        %v1920 = vpack.c.b16 %v1640, %v1638
        %v1921 = vpack.c.b16 %v1643, %v1641
        %v1922 = vpack.c.b16 %v1644, %v1642
        %v1923 = vpack.c.b16 %v1647, %v1645
        %v1924 = vpack.c.b16 %v1648, %v1646
        %v1925 = vpack.c.b16 %v1651, %v1649
        %v1926 = vpack.c.b16 %v1652, %v1650
        %v1927 = vpack.c.b16 %v1655, %v1653
        %v1928 = vpack.c.b16 %v1656, %v1654
        %v1929 = vpack.c.b16 %v1659, %v1657
        %v1930 = vpack.c.b16 %v1660, %v1658
        %v1931 = vpack.c.b16 %v1663, %v1661
        %v1932 = vpack.c.b16 %v1664, %v1662
        %v1933 = vpack.c.b16 %v1667, %v1665
        %v1934 = vpack.c.b16 %v1668, %v1666
        %v1935 = vpack.c.b16 %v1671, %v1669
        %v1936 = vpack.c.b16 %v1672, %v1670
        %v1937 = vpack.c.b16 %v1675, %v1673
        %v1938 = vpack.c.b16 %v1676, %v1674
        %v1939 = vpack.c.b16 %v1679, %v1677
        %v1940 = vpack.c.b16 %v1680, %v1678
        %v1941 = vpack.c.b16 %v1683, %v1681
        %v1942 = vpack.c.b16 %v1684, %v1682
        %v1943 = vpack.c.b16 %v1687, %v1685
        %v1944 = vpack.c.b16 %v1688, %v1686
        %v1945 = vpack.c.b16 %v1691, %v1689
        %v1946 = vpack.c.b16 %v1692, %v1690
        %v1947 = vpack.c.b16 %v1695, %v1693
        %v1948 = vpack.c.b16 %v1696, %v1694
        %v1949 = vpack.c.b16 %v1699, %v1697
        %v1950 = vpack.c.b16 %v1700, %v1698
        %v1951 = vpack.c.b16 %v1703, %v1701
        %v1952 = vpack.c.b16 %v1704, %v1702
        %v1953 = vpack.c.b16 %v1707, %v1705
        %v1954 = vpack.c.b16 %v1708, %v1706
        %v1955 = vpack.c.b16 %v1711, %v1709
        %v1956 = vpack.c.b16 %v1712, %v1710
        %v1957 = vpack.c.b16 %v1715, %v1713
        %v1958 = vpack.c.b16 %v1716, %v1714
        %v1959 = vpack.c.b16 %v1719, %v1717
        %v1960 = vpack.c.b16 %v1720, %v1718
        %v1961 = vpack.c.b16 %v1723, %v1721
        %v1962 = vpack.c.b16 %v1724, %v1722
        %v1963 = vpack.c.b16 %v1727, %v1725
        %v1964 = vpack.c.b16 %v1728, %v1726
        %v1965 = vpack.c.b16 %v1731, %v1729
        %v1966 = vpack.c.b16 %v1732, %v1730
        %v1967 = vpack.c.b16 %v1735, %v1733
        %v1968 = vpack.c.b16 %v1736, %v1734
        %v1969 = vpack.c.b16 %v1739, %v1737
        %v1970 = vpack.c.b16 %v1740, %v1738
        %v1971 = vpack.c.b16 %v1743, %v1741
        %v1972 = vpack.c.b16 %v1744, %v1742
        %v1973 = vpack.c.b16 %v1747, %v1745
        %v1974 = vpack.c.b16 %v1748, %v1746
        %v1975 = vpack.c.b16 %v1751, %v1749
        %v1976 = vpack.c.b16 %v1752, %v1750
        %v1977 = vpack.c.b16 %v1755, %v1753
        %v1978 = vpack.c.b16 %v1756, %v1754
        %v1979 = vpack.c.b16 %v1759, %v1757
        %v1980 = vpack.c.b16 %v1760, %v1758
        %v1981 = vpack.c.b16 %v1763, %v1761
        %v1982 = vpack.c.b16 %v1764, %v1762
        %v1983 = vpack.c.b16 %v1767, %v1765
        %v1984 = vpack.c.b16 %v1768, %v1766
        %v1985 = vpack.c.b16 %v1771, %v1769
        %v1986 = vpack.c.b16 %v1772, %v1770
        %v1987 = vpack.c.b16 %v1775, %v1773
        %v1988 = vpack.c.b16 %v1776, %v1774
        %v1989 = vpack.c.b16 %v1779, %v1777
        %v1990 = vpack.c.b16 %v1780, %v1778
        %v1991 = vpack.c.b16 %v1783, %v1781
        %v1992 = vpack.c.b16 %v1784, %v1782
        %v1993 = vpack.c.b16 %v1787, %v1785
        %v1994 = vpack.c.b16 %v1788, %v1786
        %v1995 = vpack.c.b16 %v1791, %v1789
        %v1996 = vpack.c.b16 %v1792, %v1790
        %v1997 = vpack.c.b16 %v1795, %v1793
        %v1998 = vpack.c.b16 %v1796, %v1794
        %v1999 = vpack.c.b16 %v1799, %v1797
        %v2000 = vpack.c.b16 %v1800, %v1798
        %v2001 = vpack.c.b16 %v1803, %v1801
        %v2002 = vpack.c.b16 %v1804, %v1802
        %v2003 = vpack.c.b16 %v1807, %v1805
        %v2004 = vpack.c.b16 %v1808, %v1806
        %v2005 = vpack.c.b16 %v1811, %v1809
        %v2006 = vpack.c.b16 %v1812, %v1810
        %v2007 = vpack.c.b16 %v1815, %v1813
        %v2008 = vpack.c.b16 %v1816, %v1814
        %2201 = vmatprep.subr.bf16.mxu0 %v1818
        %2202 = vmatpush1.bf16.msra.mxu0 %v1817
        %2203 = vmatprep.subr.bf16.mxu0 %v1820
        %2204 = vmatpush1.bf16.msra.mxu0 %v1819
        %2205 = vmatprep.subr.bf16.mxu0 %v1822
        %2206 = vmatpush1.bf16.msra.mxu0 %v1821
        %2207 = vmatprep.subr.bf16.mxu0 %v1824
        %2208 = vmatpush1.bf16.msra.mxu0 %v1823
        %2209 = vmatprep.subr.bf16.mxu0 %v1826
        %2210 = vmatpush1.bf16.msra.mxu0 %v1825
        %2211 = vmatprep.subr.bf16.mxu0 %v1828
        %2212 = vmatpush1.bf16.msra.mxu0 %v1827
        %2213 = vmatprep.subr.bf16.mxu0 %v1830
        %2214 = vmatpush1.bf16.msra.mxu0 %v1829
        %2215 = vmatprep.subr.bf16.mxu0 %v1832
        %2216 = vmatpush1.bf16.msra.mxu0 %v1831
        %2217 = vmatprep.subr.bf16.mxu0 %v1834
        %2218 = vmatpush1.bf16.msra.mxu0 %v1833
        %2219 = vmatprep.subr.bf16.mxu0 %v1836
        %2220 = vmatpush1.bf16.msra.mxu0 %v1835
        %2221 = vmatprep.subr.bf16.mxu0 %v1838
        %2222 = vmatpush1.bf16.msra.mxu0 %v1837
        %2223 = vmatprep.subr.bf16.mxu0 %v1840
        %2224 = vmatpush1.bf16.msra.mxu0 %v1839
        %2225 = vmatprep.subr.bf16.mxu0 %v1842
        %2226 = vmatpush1.bf16.msra.mxu0 %v1841
        %2227 = vmatprep.subr.bf16.mxu0 %v1844
        %2228 = vmatpush1.bf16.msra.mxu0 %v1843
        %2229 = vmatprep.subr.bf16.mxu0 %v1846
        %2230 = vmatpush1.bf16.msra.mxu0 %v1845
        %2231 = vmatprep.subr.bf16.mxu0 %v1848
        %2232 = vmatpush1.bf16.msra.mxu0 %v1847
        %2233 = vmatprep.mubr.bf16.mxu0 %v1050
        %2234 = vmatmul.mubr.bf16.gmra.mrb[0].mxu0 %v1049
        %v2235 = vpop.f32.mrb[0].mxu0
        %v2236 = vadd.f32 0.0, %v2235
        %v2237 = vpop.f32.mrb[0].mxu0
        %v2238 = vadd.f32 0.0, %v2237
        %v2239 = vpop.f32.mrb[0].mxu0
        %v2240 = vadd.f32 0.0, %v2239
        %v2241 = vpop.f32.mrb[0].mxu0
        %v2242 = vadd.f32 0.0, %v2241
        %2243 = vmatprep.mubr.bf16.mxu0 %v1062
        %2244 = vmatmul.mubr.bf16.gmra.mrb[0].mxu0 %v1061
        %v2245 = vpop.f32.mrb[0].mxu0
        %v2246 = vadd.f32 0.0, %v2245
        %v2247 = vpop.f32.mrb[0].mxu0
        %v2248 = vadd.f32 0.0, %v2247
        %v2249 = vpop.f32.mrb[0].mxu0
        %v2250 = vadd.f32 0.0, %v2249
        %v2251 = vpop.f32.mrb[0].mxu0
        %v2252 = vadd.f32 0.0, %v2251
        %2253 = vmatprep.mubr.bf16.mxu0 %v1074
        %2254 = vmatmul.mubr.bf16.gmra.mrb[0].mxu0 %v1073
        %v2255 = vpop.f32.mrb[0].mxu0
        %v2256 = vadd.f32 0.0, %v2255
        %v2257 = vpop.f32.mrb[0].mxu0
        %v2258 = vadd.f32 0.0, %v2257
        %v2259 = vpop.f32.mrb[0].mxu0
        %v2260 = vadd.f32 0.0, %v2259
        %v2261 = vpop.f32.mrb[0].mxu0
        %v2262 = vadd.f32 0.0, %v2261
        %2263 = vmatprep.mubr.bf16.mxu0 %v1086
        %2264 = vmatmul.mubr.bf16.gmra.mrb[0].mxu0 %v1085
        %v2265 = vpop.f32.mrb[0].mxu0
        %v2266 = vadd.f32 0.0, %v2265
        %v2267 = vpop.f32.mrb[0].mxu0
        %v2268 = vadd.f32 0.0, %v2267
        %v2269 = vpop.f32.mrb[0].mxu0
        %v2270 = vadd.f32 0.0, %v2269
        %v2271 = vpop.f32.mrb[0].mxu0
        %v2272 = vadd.f32 0.0, %v2271
        %2273 = vmatprep.mubr.bf16.mxu0 %v1098
        %2274 = vmatmul.mubr.bf16.gmra.mrb[0].mxu0 %v1097
        %v2275 = vpop.f32.mrb[0].mxu0
        %v2276 = vadd.f32 0.0, %v2275
        %v2277 = vpop.f32.mrb[0].mxu0
        %v2278 = vadd.f32 0.0, %v2277
        %v2279 = vpop.f32.mrb[0].mxu0
        %v2280 = vadd.f32 0.0, %v2279
        %v2281 = vpop.f32.mrb[0].mxu0
        %v2282 = vadd.f32 0.0, %v2281
        %2283 = vmatprep.mubr.bf16.mxu0 %v1110
        %2284 = vmatmul.mubr.bf16.gmra.mrb[0].mxu0 %v1109
        %v2285 = vpop.f32.mrb[0].mxu0
        %v2286 = vadd.f32 0.0, %v2285
        %v2287 = vpop.f32.mrb[0].mxu0
        %v2288 = vadd.f32 0.0, %v2287
        %v2289 = vpop.f32.mrb[0].mxu0
        %v2290 = vadd.f32 0.0, %v2289
        %v2291 = vpop.f32.mrb[0].mxu0
        %v2292 = vadd.f32 0.0, %v2291
        %2293 = vmatprep.mubr.bf16.mxu0 %v1122
        %2294 = vmatmul.mubr.bf16.gmra.mrb[0].mxu0 %v1121
        %v2295 = vpop.f32.mrb[0].mxu0
        %v2296 = vadd.f32 0.0, %v2295
        %v2297 = vpop.f32.mrb[0].mxu0
        %v2298 = vadd.f32 0.0, %v2297
        %v2299 = vpop.f32.mrb[0].mxu0
        %v2300 = vadd.f32 0.0, %v2299
        %v2301 = vpop.f32.mrb[0].mxu0
        %v2302 = vadd.f32 0.0, %v2301
        %2303 = vmatprep.mubr.bf16.mxu0 %v1134
        %2304 = vmatmul.mubr.bf16.gmra.mrb[0].mxu0 %v1133
        %v2305 = vpop.f32.mrb[0].mxu0
        %v2306 = vadd.f32 0.0, %v2305
        %v2307 = vpop.f32.mrb[0].mxu0
        %v2308 = vadd.f32 0.0, %v2307
        %v2309 = vpop.f32.mrb[0].mxu0
        %v2310 = vadd.f32 0.0, %v2309
        %v2311 = vpop.f32.mrb[0].mxu0
        %v2312 = vadd.f32 0.0, %v2311
        %2313 = vdwg.mxu0
        %2314 = vmatprep.subr.bf16.mxu0 %v1850
        %2315 = vmatpush1.bf16.msra.mxu0 %v1849
        %2316 = vmatprep.subr.bf16.mxu0 %v1852
        %2317 = vmatpush1.bf16.msra.mxu0 %v1851
        %2318 = vmatprep.subr.bf16.mxu0 %v1854
        %2319 = vmatpush1.bf16.msra.mxu0 %v1853
        %2320 = vmatprep.subr.bf16.mxu0 %v1856
        %2321 = vmatpush1.bf16.msra.mxu0 %v1855
        %2322 = vmatprep.subr.bf16.mxu0 %v1858
        %2323 = vmatpush1.bf16.msra.mxu0 %v1857
        %2324 = vmatprep.subr.bf16.mxu0 %v1860
        %2325 = vmatpush1.bf16.msra.mxu0 %v1859
        %2326 = vmatprep.subr.bf16.mxu0 %v1862
        %2327 = vmatpush1.bf16.msra.mxu0 %v1861
        %2328 = vmatprep.subr.bf16.mxu0 %v1864
        %2329 = vmatpush1.bf16.msra.mxu0 %v1863
        %2330 = vmatprep.subr.bf16.mxu0 %v1866
        %2331 = vmatpush1.bf16.msra.mxu0 %v1865
        %2332 = vmatprep.subr.bf16.mxu0 %v1868
        %2333 = vmatpush1.bf16.msra.mxu0 %v1867
        %2334 = vmatprep.subr.bf16.mxu0 %v1870
        %2335 = vmatpush1.bf16.msra.mxu0 %v1869
        %2336 = vmatprep.subr.bf16.mxu0 %v1872
        %2337 = vmatpush1.bf16.msra.mxu0 %v1871
        %2338 = vmatprep.subr.bf16.mxu0 %v1874
        %2339 = vmatpush1.bf16.msra.mxu0 %v1873
        %2340 = vmatprep.subr.bf16.mxu0 %v1876
        %2341 = vmatpush1.bf16.msra.mxu0 %v1875
        %2342 = vmatprep.subr.bf16.mxu0 %v1878
        %2343 = vmatpush1.bf16.msra.mxu0 %v1877
        %2344 = vmatprep.subr.bf16.mxu0 %v1880
        %2345 = vmatpush1.bf16.msra.mxu0 %v1879
        %2346 = vmatprep.mubr.bf16.mxu0 %v1052
        %2347 = vmatmul.mubr.bf16.gmra.mrb[0].mxu0 %v1051
        %v2348 = vpop.f32.mrb[0].mxu0
        %v2349 = vadd.f32 %v2236, %v2348
        %v2350 = vpop.f32.mrb[0].mxu0
        %v2351 = vadd.f32 %v2238, %v2350
        %v2352 = vpop.f32.mrb[0].mxu0
        %v2353 = vadd.f32 %v2240, %v2352
        %v2354 = vpop.f32.mrb[0].mxu0
        %v2355 = vadd.f32 %v2242, %v2354
        %2356 = vmatprep.mubr.bf16.mxu0 %v1064
        %2357 = vmatmul.mubr.bf16.gmra.mrb[0].mxu0 %v1063
        %v2358 = vpop.f32.mrb[0].mxu0
        %v2359 = vadd.f32 %v2246, %v2358
        %v2360 = vpop.f32.mrb[0].mxu0
        %v2361 = vadd.f32 %v2248, %v2360
        %v2362 = vpop.f32.mrb[0].mxu0
        %v2363 = vadd.f32 %v2250, %v2362
        %v2364 = vpop.f32.mrb[0].mxu0
        %v2365 = vadd.f32 %v2252, %v2364
        %2366 = vmatprep.mubr.bf16.mxu0 %v1076
        %2367 = vmatmul.mubr.bf16.gmra.mrb[0].mxu0 %v1075
        %v2368 = vpop.f32.mrb[0].mxu0
        %v2369 = vadd.f32 %v2256, %v2368
        %v2370 = vpop.f32.mrb[0].mxu0
        %v2371 = vadd.f32 %v2258, %v2370
        %v2372 = vpop.f32.mrb[0].mxu0
        %v2373 = vadd.f32 %v2260, %v2372
        %v2374 = vpop.f32.mrb[0].mxu0
        %v2375 = vadd.f32 %v2262, %v2374
        %2376 = vmatprep.mubr.bf16.mxu0 %v1088
        %2377 = vmatmul.mubr.bf16.gmra.mrb[0].mxu0 %v1087
        %v2378 = vpop.f32.mrb[0].mxu0
        %v2379 = vadd.f32 %v2266, %v2378
        %v2380 = vpop.f32.mrb[0].mxu0
        %v2381 = vadd.f32 %v2268, %v2380
        %v2382 = vpop.f32.mrb[0].mxu0
        %v2383 = vadd.f32 %v2270, %v2382
        %v2384 = vpop.f32.mrb[0].mxu0
        %v2385 = vadd.f32 %v2272, %v2384
        %2386 = vmatprep.mubr.bf16.mxu0 %v1100
        %2387 = vmatmul.mubr.bf16.gmra.mrb[0].mxu0 %v1099
        %v2388 = vpop.f32.mrb[0].mxu0
        %v2389 = vadd.f32 %v2276, %v2388
        %v2390 = vpop.f32.mrb[0].mxu0
        %v2391 = vadd.f32 %v2278, %v2390
        %v2392 = vpop.f32.mrb[0].mxu0
        %v2393 = vadd.f32 %v2280, %v2392
        %v2394 = vpop.f32.mrb[0].mxu0
        %v2395 = vadd.f32 %v2282, %v2394
        %2396 = vmatprep.mubr.bf16.mxu0 %v1112
        %2397 = vmatmul.mubr.bf16.gmra.mrb[0].mxu0 %v1111
        %v2398 = vpop.f32.mrb[0].mxu0
        %v2399 = vadd.f32 %v2286, %v2398
        %v2400 = vpop.f32.mrb[0].mxu0
        %v2401 = vadd.f32 %v2288, %v2400
        %v2402 = vpop.f32.mrb[0].mxu0
        %v2403 = vadd.f32 %v2290, %v2402
        %v2404 = vpop.f32.mrb[0].mxu0
        %v2405 = vadd.f32 %v2292, %v2404
        %2406 = vmatprep.mubr.bf16.mxu0 %v1124
        %2407 = vmatmul.mubr.bf16.gmra.mrb[0].mxu0 %v1123
        %v2408 = vpop.f32.mrb[0].mxu0
        %v2409 = vadd.f32 %v2296, %v2408
        %v2410 = vpop.f32.mrb[0].mxu0
        %v2411 = vadd.f32 %v2298, %v2410
        %v2412 = vpop.f32.mrb[0].mxu0
        %v2413 = vadd.f32 %v2300, %v2412
        %v2414 = vpop.f32.mrb[0].mxu0
        %v2415 = vadd.f32 %v2302, %v2414
        %2416 = vmatprep.mubr.bf16.mxu0 %v1136
        %2417 = vmatmul.mubr.bf16.gmra.mrb[0].mxu0 %v1135
        %v2418 = vpop.f32.mrb[0].mxu0
        %v2419 = vadd.f32 %v2306, %v2418
        %v2420 = vpop.f32.mrb[0].mxu0
        %v2421 = vadd.f32 %v2308, %v2420
        %v2422 = vpop.f32.mrb[0].mxu0
        %v2423 = vadd.f32 %v2310, %v2422
        %v2424 = vpop.f32.mrb[0].mxu0
        %v2425 = vadd.f32 %v2312, %v2424
        %2426 = vdwg.mxu0
        %2427 = vmatprep.subr.bf16.mxu0 %v1882
        %2428 = vmatpush1.bf16.msra.mxu0 %v1881
        %2429 = vmatprep.subr.bf16.mxu0 %v1884
        %2430 = vmatpush1.bf16.msra.mxu0 %v1883
        %2431 = vmatprep.subr.bf16.mxu0 %v1886
        %2432 = vmatpush1.bf16.msra.mxu0 %v1885
        %2433 = vmatprep.subr.bf16.mxu0 %v1888
        %2434 = vmatpush1.bf16.msra.mxu0 %v1887
        %2435 = vmatprep.subr.bf16.mxu0 %v1890
        %2436 = vmatpush1.bf16.msra.mxu0 %v1889
        %2437 = vmatprep.subr.bf16.mxu0 %v1892
        %2438 = vmatpush1.bf16.msra.mxu0 %v1891
        %2439 = vmatprep.subr.bf16.mxu0 %v1894
        %2440 = vmatpush1.bf16.msra.mxu0 %v1893
        %2441 = vmatprep.subr.bf16.mxu0 %v1896
        %2442 = vmatpush1.bf16.msra.mxu0 %v1895
        %2443 = vmatprep.subr.bf16.mxu0 %v1898
        %2444 = vmatpush1.bf16.msra.mxu0 %v1897
        %2445 = vmatprep.subr.bf16.mxu0 %v1900
        %2446 = vmatpush1.bf16.msra.mxu0 %v1899
        %2447 = vmatprep.subr.bf16.mxu0 %v1902
        %2448 = vmatpush1.bf16.msra.mxu0 %v1901
        %2449 = vmatprep.subr.bf16.mxu0 %v1904
        %2450 = vmatpush1.bf16.msra.mxu0 %v1903
        %2451 = vmatprep.subr.bf16.mxu0 %v1906
        %2452 = vmatpush1.bf16.msra.mxu0 %v1905
        %2453 = vmatprep.subr.bf16.mxu0 %v1908
        %2454 = vmatpush1.bf16.msra.mxu0 %v1907
        %2455 = vmatprep.subr.bf16.mxu0 %v1910
        %2456 = vmatpush1.bf16.msra.mxu0 %v1909
        %2457 = vmatprep.subr.bf16.mxu0 %v1912
        %2458 = vmatpush1.bf16.msra.mxu0 %v1911
        %2459 = vmatprep.mubr.bf16.mxu0 %v1054
        %2460 = vmatmul.mubr.bf16.gmra.mrb[0].mxu0 %v1053
        %v2461 = vpop.f32.mrb[0].mxu0
        %v2462 = vadd.f32 %v2349, %v2461
        %v2463 = vpop.f32.mrb[0].mxu0
        %v2464 = vadd.f32 %v2351, %v2463
        %v2465 = vpop.f32.mrb[0].mxu0
        %v2466 = vadd.f32 %v2353, %v2465
        %v2467 = vpop.f32.mrb[0].mxu0
        %v2468 = vadd.f32 %v2355, %v2467
        %2469 = vmatprep.mubr.bf16.mxu0 %v1066
        %2470 = vmatmul.mubr.bf16.gmra.mrb[0].mxu0 %v1065
        %v2471 = vpop.f32.mrb[0].mxu0
        %v2472 = vadd.f32 %v2359, %v2471
        %v2473 = vpop.f32.mrb[0].mxu0
        %v2474 = vadd.f32 %v2361, %v2473
        %v2475 = vpop.f32.mrb[0].mxu0
        %v2476 = vadd.f32 %v2363, %v2475
        %v2477 = vpop.f32.mrb[0].mxu0
        %v2478 = vadd.f32 %v2365, %v2477
        %2479 = vmatprep.mubr.bf16.mxu0 %v1078
        %2480 = vmatmul.mubr.bf16.gmra.mrb[0].mxu0 %v1077
        %v2481 = vpop.f32.mrb[0].mxu0
        %v2482 = vadd.f32 %v2369, %v2481
        %v2483 = vpop.f32.mrb[0].mxu0
        %v2484 = vadd.f32 %v2371, %v2483
        %v2485 = vpop.f32.mrb[0].mxu0
        %v2486 = vadd.f32 %v2373, %v2485
        %v2487 = vpop.f32.mrb[0].mxu0
        %v2488 = vadd.f32 %v2375, %v2487
        %2489 = vmatprep.mubr.bf16.mxu0 %v1090
        %2490 = vmatmul.mubr.bf16.gmra.mrb[0].mxu0 %v1089
        %v2491 = vpop.f32.mrb[0].mxu0
        %v2492 = vadd.f32 %v2379, %v2491
        %v2493 = vpop.f32.mrb[0].mxu0
        %v2494 = vadd.f32 %v2381, %v2493
        %v2495 = vpop.f32.mrb[0].mxu0
        %v2496 = vadd.f32 %v2383, %v2495
        %v2497 = vpop.f32.mrb[0].mxu0
        %v2498 = vadd.f32 %v2385, %v2497
        %2499 = vmatprep.mubr.bf16.mxu0 %v1102
        %2500 = vmatmul.mubr.bf16.gmra.mrb[0].mxu0 %v1101
        %v2501 = vpop.f32.mrb[0].mxu0
        %v2502 = vadd.f32 %v2389, %v2501
        %v2503 = vpop.f32.mrb[0].mxu0
        %v2504 = vadd.f32 %v2391, %v2503
        %v2505 = vpop.f32.mrb[0].mxu0
        %v2506 = vadd.f32 %v2393, %v2505
        %v2507 = vpop.f32.mrb[0].mxu0
        %v2508 = vadd.f32 %v2395, %v2507
        %2509 = vmatprep.mubr.bf16.mxu0 %v1114
        %2510 = vmatmul.mubr.bf16.gmra.mrb[0].mxu0 %v1113
        %v2511 = vpop.f32.mrb[0].mxu0
        %v2512 = vadd.f32 %v2399, %v2511
        %v2513 = vpop.f32.mrb[0].mxu0
        %v2514 = vadd.f32 %v2401, %v2513
        %v2515 = vpop.f32.mrb[0].mxu0
        %v2516 = vadd.f32 %v2403, %v2515
        %v2517 = vpop.f32.mrb[0].mxu0
        %v2518 = vadd.f32 %v2405, %v2517
        %2519 = vmatprep.mubr.bf16.mxu0 %v1126
        %2520 = vmatmul.mubr.bf16.gmra.mrb[0].mxu0 %v1125
        %v2521 = vpop.f32.mrb[0].mxu0
        %v2522 = vadd.f32 %v2409, %v2521
        %v2523 = vpop.f32.mrb[0].mxu0
        %v2524 = vadd.f32 %v2411, %v2523
        %v2525 = vpop.f32.mrb[0].mxu0
        %v2526 = vadd.f32 %v2413, %v2525
        %v2527 = vpop.f32.mrb[0].mxu0
        %v2528 = vadd.f32 %v2415, %v2527
        %2529 = vmatprep.mubr.bf16.mxu0 %v1138
        %2530 = vmatmul.mubr.bf16.gmra.mrb[0].mxu0 %v1137
        %v2531 = vpop.f32.mrb[0].mxu0
        %v2532 = vadd.f32 %v2419, %v2531
        %v2533 = vpop.f32.mrb[0].mxu0
        %v2534 = vadd.f32 %v2421, %v2533
        %v2535 = vpop.f32.mrb[0].mxu0
        %v2536 = vadd.f32 %v2423, %v2535
        %v2537 = vpop.f32.mrb[0].mxu0
        %v2538 = vadd.f32 %v2425, %v2537
        %2539 = vdwg.mxu0
        %2540 = vmatprep.subr.bf16.mxu0 %v1914
        %2541 = vmatpush1.bf16.msra.mxu0 %v1913
        %2542 = vmatprep.subr.bf16.mxu0 %v1916
        %2543 = vmatpush1.bf16.msra.mxu0 %v1915
        %2544 = vmatprep.subr.bf16.mxu0 %v1918
        %2545 = vmatpush1.bf16.msra.mxu0 %v1917
        %2546 = vmatprep.subr.bf16.mxu0 %v1920
        %2547 = vmatpush1.bf16.msra.mxu0 %v1919
        %2548 = vmatprep.subr.bf16.mxu0 %v1922
        %2549 = vmatpush1.bf16.msra.mxu0 %v1921
        %2550 = vmatprep.subr.bf16.mxu0 %v1924
        %2551 = vmatpush1.bf16.msra.mxu0 %v1923
        %2552 = vmatprep.subr.bf16.mxu0 %v1926
        %2553 = vmatpush1.bf16.msra.mxu0 %v1925
        %2554 = vmatprep.subr.bf16.mxu0 %v1928
        %2555 = vmatpush1.bf16.msra.mxu0 %v1927
        %2556 = vmatprep.subr.bf16.mxu0 %v1930
        %2557 = vmatpush1.bf16.msra.mxu0 %v1929
        %2558 = vmatprep.subr.bf16.mxu0 %v1932
        %2559 = vmatpush1.bf16.msra.mxu0 %v1931
        %2560 = vmatprep.subr.bf16.mxu0 %v1934
        %2561 = vmatpush1.bf16.msra.mxu0 %v1933
        %2562 = vmatprep.subr.bf16.mxu0 %v1936
        %2563 = vmatpush1.bf16.msra.mxu0 %v1935
        %2564 = vmatprep.subr.bf16.mxu0 %v1938
        %2565 = vmatpush1.bf16.msra.mxu0 %v1937
        %2566 = vmatprep.subr.bf16.mxu0 %v1940
        %2567 = vmatpush1.bf16.msra.mxu0 %v1939
        %2568 = vmatprep.subr.bf16.mxu0 %v1942
        %2569 = vmatpush1.bf16.msra.mxu0 %v1941
        %2570 = vmatprep.subr.bf16.mxu0 %v1944
        %2571 = vmatpush1.bf16.msra.mxu0 %v1943
        %2572 = vmatprep.mubr.bf16.mxu0 %v1056
        %2573 = vmatmul.mubr.bf16.gmra.mrb[0].mxu0 %v1055
        %v2574 = vpop.f32.mrb[0].mxu0
        %v2575 = vadd.f32 %v2462, %v2574
        %v2576 = vpop.f32.mrb[0].mxu0
        %v2577 = vadd.f32 %v2464, %v2576
        %v2578 = vpop.f32.mrb[0].mxu0
        %v2579 = vadd.f32 %v2466, %v2578
        %v2580 = vpop.f32.mrb[0].mxu0
        %v2581 = vadd.f32 %v2468, %v2580
        %2582 = vmatprep.mubr.bf16.mxu0 %v1068
        %2583 = vmatmul.mubr.bf16.gmra.mrb[0].mxu0 %v1067
        %v2584 = vpop.f32.mrb[0].mxu0
        %v2585 = vadd.f32 %v2472, %v2584
        %v2586 = vpop.f32.mrb[0].mxu0
        %v2587 = vadd.f32 %v2474, %v2586
        %v2588 = vpop.f32.mrb[0].mxu0
        %v2589 = vadd.f32 %v2476, %v2588
        %v2590 = vpop.f32.mrb[0].mxu0
        %v2591 = vadd.f32 %v2478, %v2590
        %2592 = vmatprep.mubr.bf16.mxu0 %v1080
        %2593 = vmatmul.mubr.bf16.gmra.mrb[0].mxu0 %v1079
        %v2594 = vpop.f32.mrb[0].mxu0
        %v2595 = vadd.f32 %v2482, %v2594
        %v2596 = vpop.f32.mrb[0].mxu0
        %v2597 = vadd.f32 %v2484, %v2596
        %v2598 = vpop.f32.mrb[0].mxu0
        %v2599 = vadd.f32 %v2486, %v2598
        %v2600 = vpop.f32.mrb[0].mxu0
        %v2601 = vadd.f32 %v2488, %v2600
        %2602 = vmatprep.mubr.bf16.mxu0 %v1092
        %2603 = vmatmul.mubr.bf16.gmra.mrb[0].mxu0 %v1091
        %v2604 = vpop.f32.mrb[0].mxu0
        %v2605 = vadd.f32 %v2492, %v2604
        %v2606 = vpop.f32.mrb[0].mxu0
        %v2607 = vadd.f32 %v2494, %v2606
        %v2608 = vpop.f32.mrb[0].mxu0
        %v2609 = vadd.f32 %v2496, %v2608
        %v2610 = vpop.f32.mrb[0].mxu0
        %v2611 = vadd.f32 %v2498, %v2610
        %2612 = vmatprep.mubr.bf16.mxu0 %v1104
        %2613 = vmatmul.mubr.bf16.gmra.mrb[0].mxu0 %v1103
        %v2614 = vpop.f32.mrb[0].mxu0
        %v2615 = vadd.f32 %v2502, %v2614
        %v2616 = vpop.f32.mrb[0].mxu0
        %v2617 = vadd.f32 %v2504, %v2616
        %v2618 = vpop.f32.mrb[0].mxu0
        %v2619 = vadd.f32 %v2506, %v2618
        %v2620 = vpop.f32.mrb[0].mxu0
        %v2621 = vadd.f32 %v2508, %v2620
        %2622 = vmatprep.mubr.bf16.mxu0 %v1116
        %2623 = vmatmul.mubr.bf16.gmra.mrb[0].mxu0 %v1115
        %v2624 = vpop.f32.mrb[0].mxu0
        %v2625 = vadd.f32 %v2512, %v2624
        %v2626 = vpop.f32.mrb[0].mxu0
        %v2627 = vadd.f32 %v2514, %v2626
        %v2628 = vpop.f32.mrb[0].mxu0
        %v2629 = vadd.f32 %v2516, %v2628
        %v2630 = vpop.f32.mrb[0].mxu0
        %v2631 = vadd.f32 %v2518, %v2630
        %2632 = vmatprep.mubr.bf16.mxu0 %v1128
        %2633 = vmatmul.mubr.bf16.gmra.mrb[0].mxu0 %v1127
        %v2634 = vpop.f32.mrb[0].mxu0
        %v2635 = vadd.f32 %v2522, %v2634
        %v2636 = vpop.f32.mrb[0].mxu0
        %v2637 = vadd.f32 %v2524, %v2636
        %v2638 = vpop.f32.mrb[0].mxu0
        %v2639 = vadd.f32 %v2526, %v2638
        %v2640 = vpop.f32.mrb[0].mxu0
        %v2641 = vadd.f32 %v2528, %v2640
        %2642 = vmatprep.mubr.bf16.mxu0 %v1140
        %2643 = vmatmul.mubr.bf16.gmra.mrb[0].mxu0 %v1139
        %v2644 = vpop.f32.mrb[0].mxu0
        %v2645 = vadd.f32 %v2532, %v2644
        %v2646 = vpop.f32.mrb[0].mxu0
        %v2647 = vadd.f32 %v2534, %v2646
        %v2648 = vpop.f32.mrb[0].mxu0
        %v2649 = vadd.f32 %v2536, %v2648
        %v2650 = vpop.f32.mrb[0].mxu0
        %v2651 = vadd.f32 %v2538, %v2650
        %2652 = vdwg.mxu0
        %2653 = vmatprep.subr.bf16.mxu0 %v1946
        %2654 = vmatpush1.bf16.msra.mxu0 %v1945
        %2655 = vmatprep.subr.bf16.mxu0 %v1948
        %2656 = vmatpush1.bf16.msra.mxu0 %v1947
        %2657 = vmatprep.subr.bf16.mxu0 %v1950
        %2658 = vmatpush1.bf16.msra.mxu0 %v1949
        %2659 = vmatprep.subr.bf16.mxu0 %v1952
        %2660 = vmatpush1.bf16.msra.mxu0 %v1951
        %2661 = vmatprep.subr.bf16.mxu0 %v1954
        %2662 = vmatpush1.bf16.msra.mxu0 %v1953
        %2663 = vmatprep.subr.bf16.mxu0 %v1956
        %2664 = vmatpush1.bf16.msra.mxu0 %v1955
        %2665 = vmatprep.subr.bf16.mxu0 %v1958
        %2666 = vmatpush1.bf16.msra.mxu0 %v1957
        %2667 = vmatprep.subr.bf16.mxu0 %v1960
        %2668 = vmatpush1.bf16.msra.mxu0 %v1959
        %2669 = vmatprep.subr.bf16.mxu0 %v1962
        %2670 = vmatpush1.bf16.msra.mxu0 %v1961
        %2671 = vmatprep.subr.bf16.mxu0 %v1964
        %2672 = vmatpush1.bf16.msra.mxu0 %v1963
        %2673 = vmatprep.subr.bf16.mxu0 %v1966
        %2674 = vmatpush1.bf16.msra.mxu0 %v1965
        %2675 = vmatprep.subr.bf16.mxu0 %v1968
        %2676 = vmatpush1.bf16.msra.mxu0 %v1967
        %2677 = vmatprep.subr.bf16.mxu0 %v1970
        %2678 = vmatpush1.bf16.msra.mxu0 %v1969
        %2679 = vmatprep.subr.bf16.mxu0 %v1972
        %2680 = vmatpush1.bf16.msra.mxu0 %v1971
        %2681 = vmatprep.subr.bf16.mxu0 %v1974
        %2682 = vmatpush1.bf16.msra.mxu0 %v1973
        %2683 = vmatprep.subr.bf16.mxu0 %v1976
        %2684 = vmatpush1.bf16.msra.mxu0 %v1975
        %2685 = vmatprep.mubr.bf16.mxu0 %v1058
        %2686 = vmatmul.mubr.bf16.gmra.mrb[0].mxu0 %v1057
        %v2687 = vpop.f32.mrb[0].mxu0
        %v2688 = vadd.f32 %v2575, %v2687
        %v2689 = vpop.f32.mrb[0].mxu0
        %v2690 = vadd.f32 %v2577, %v2689
        %v2691 = vpop.f32.mrb[0].mxu0
        %v2692 = vadd.f32 %v2579, %v2691
        %v2693 = vpop.f32.mrb[0].mxu0
        %v2694 = vadd.f32 %v2581, %v2693
        %2695 = vmatprep.mubr.bf16.mxu0 %v1070
        %2696 = vmatmul.mubr.bf16.gmra.mrb[0].mxu0 %v1069
        %v2697 = vpop.f32.mrb[0].mxu0
        %v2698 = vadd.f32 %v2585, %v2697
        %v2699 = vpop.f32.mrb[0].mxu0
        %v2700 = vadd.f32 %v2587, %v2699
        %v2701 = vpop.f32.mrb[0].mxu0
        %v2702 = vadd.f32 %v2589, %v2701
        %v2703 = vpop.f32.mrb[0].mxu0
        %v2704 = vadd.f32 %v2591, %v2703
        %2705 = vmatprep.mubr.bf16.mxu0 %v1082
        %2706 = vmatmul.mubr.bf16.gmra.mrb[0].mxu0 %v1081
        %v2707 = vpop.f32.mrb[0].mxu0
        %v2708 = vadd.f32 %v2595, %v2707
        %v2709 = vpop.f32.mrb[0].mxu0
        %v2710 = vadd.f32 %v2597, %v2709
        %v2711 = vpop.f32.mrb[0].mxu0
        %v2712 = vadd.f32 %v2599, %v2711
        %v2713 = vpop.f32.mrb[0].mxu0
        %v2714 = vadd.f32 %v2601, %v2713
        %2715 = vmatprep.mubr.bf16.mxu0 %v1094
        %2716 = vmatmul.mubr.bf16.gmra.mrb[0].mxu0 %v1093
        %v2717 = vpop.f32.mrb[0].mxu0
        %v2718 = vadd.f32 %v2605, %v2717
        %v2719 = vpop.f32.mrb[0].mxu0
        %v2720 = vadd.f32 %v2607, %v2719
        %v2721 = vpop.f32.mrb[0].mxu0
        %v2722 = vadd.f32 %v2609, %v2721
        %v2723 = vpop.f32.mrb[0].mxu0
        %v2724 = vadd.f32 %v2611, %v2723
        %2725 = vmatprep.mubr.bf16.mxu0 %v1106
        %2726 = vmatmul.mubr.bf16.gmra.mrb[0].mxu0 %v1105
        %v2727 = vpop.f32.mrb[0].mxu0
        %v2728 = vadd.f32 %v2615, %v2727
        %v2729 = vpop.f32.mrb[0].mxu0
        %v2730 = vadd.f32 %v2617, %v2729
        %v2731 = vpop.f32.mrb[0].mxu0
        %v2732 = vadd.f32 %v2619, %v2731
        %v2733 = vpop.f32.mrb[0].mxu0
        %v2734 = vadd.f32 %v2621, %v2733
        %2735 = vmatprep.mubr.bf16.mxu0 %v1118
        %2736 = vmatmul.mubr.bf16.gmra.mrb[0].mxu0 %v1117
        %v2737 = vpop.f32.mrb[0].mxu0
        %v2738 = vadd.f32 %v2625, %v2737
        %v2739 = vpop.f32.mrb[0].mxu0
        %v2740 = vadd.f32 %v2627, %v2739
        %v2741 = vpop.f32.mrb[0].mxu0
        %v2742 = vadd.f32 %v2629, %v2741
        %v2743 = vpop.f32.mrb[0].mxu0
        %v2744 = vadd.f32 %v2631, %v2743
        %2745 = vmatprep.mubr.bf16.mxu0 %v1130
        %2746 = vmatmul.mubr.bf16.gmra.mrb[0].mxu0 %v1129
        %v2747 = vpop.f32.mrb[0].mxu0
        %v2748 = vadd.f32 %v2635, %v2747
        %v2749 = vpop.f32.mrb[0].mxu0
        %v2750 = vadd.f32 %v2637, %v2749
        %v2751 = vpop.f32.mrb[0].mxu0
        %v2752 = vadd.f32 %v2639, %v2751
        %v2753 = vpop.f32.mrb[0].mxu0
        %v2754 = vadd.f32 %v2641, %v2753
        %2755 = vmatprep.mubr.bf16.mxu0 %v1142
        %2756 = vmatmul.mubr.bf16.gmra.mrb[0].mxu0 %v1141
        %v2757 = vpop.f32.mrb[0].mxu0
        %v2758 = vadd.f32 %v2645, %v2757
        %v2759 = vpop.f32.mrb[0].mxu0
        %v2760 = vadd.f32 %v2647, %v2759
        %v2761 = vpop.f32.mrb[0].mxu0
        %v2762 = vadd.f32 %v2649, %v2761
        %v2763 = vpop.f32.mrb[0].mxu0
        %v2764 = vadd.f32 %v2651, %v2763
        %2765 = vdwg.mxu0
        %2766 = vmatprep.subr.bf16.mxu0 %v1978
        %2767 = vmatpush1.bf16.msra.mxu0 %v1977
        %2768 = vmatprep.subr.bf16.mxu0 %v1980
        %2769 = vmatpush1.bf16.msra.mxu0 %v1979
        %2770 = vmatprep.subr.bf16.mxu0 %v1982
        %2771 = vmatpush1.bf16.msra.mxu0 %v1981
        %2772 = vmatprep.subr.bf16.mxu0 %v1984
        %2773 = vmatpush1.bf16.msra.mxu0 %v1983
        %2774 = vmatprep.subr.bf16.mxu0 %v1986
        %2775 = vmatpush1.bf16.msra.mxu0 %v1985
        %2776 = vmatprep.subr.bf16.mxu0 %v1988
        %2777 = vmatpush1.bf16.msra.mxu0 %v1987
        %2778 = vmatprep.subr.bf16.mxu0 %v1990
        %2779 = vmatpush1.bf16.msra.mxu0 %v1989
        %2780 = vmatprep.subr.bf16.mxu0 %v1992
        %2781 = vmatpush1.bf16.msra.mxu0 %v1991
        %2782 = vmatprep.subr.bf16.mxu0 %v1994
        %2783 = vmatpush1.bf16.msra.mxu0 %v1993
        %2784 = vmatprep.subr.bf16.mxu0 %v1996
        %2785 = vmatpush1.bf16.msra.mxu0 %v1995
        %2786 = vmatprep.subr.bf16.mxu0 %v1998
        %2787 = vmatpush1.bf16.msra.mxu0 %v1997
        %2788 = vmatprep.subr.bf16.mxu0 %v2000
        %2789 = vmatpush1.bf16.msra.mxu0 %v1999
        %2790 = vmatprep.subr.bf16.mxu0 %v2002
        %2791 = vmatpush1.bf16.msra.mxu0 %v2001
        %2792 = vmatprep.subr.bf16.mxu0 %v2004
        %2793 = vmatpush1.bf16.msra.mxu0 %v2003
        %2794 = vmatprep.subr.bf16.mxu0 %v2006
        %2795 = vmatpush1.bf16.msra.mxu0 %v2005
        %2796 = vmatprep.subr.bf16.mxu0 %v2008
        %2797 = vmatpush1.bf16.msra.mxu0 %v2007
        %2798 = vmatprep.mubr.bf16.mxu0 %v1060
        %2799 = vmatmul.mubr.bf16.gmra.mrb[0].mxu0 %v1059
        %v2800 = vpop.f32.mrb[0].mxu0
        %v2801 = vadd.f32 %v2688, %v2800
        %v2802 = vpop.f32.mrb[0].mxu0
        %v2803 = vadd.f32 %v2690, %v2802
        %v2804 = vpop.f32.mrb[0].mxu0
        %v2805 = vadd.f32 %v2692, %v2804
        %v2806 = vpop.f32.mrb[0].mxu0
        %v2807 = vadd.f32 %v2694, %v2806
        %2808 = vmatprep.mubr.bf16.mxu0 %v1072
        %2809 = vmatmul.mubr.bf16.gmra.mrb[0].mxu0 %v1071
        %v2810 = vpop.f32.mrb[0].mxu0
        %v2811 = vadd.f32 %v2698, %v2810
        %v2812 = vpop.f32.mrb[0].mxu0
        %v2813 = vadd.f32 %v2700, %v2812
        %v2814 = vpop.f32.mrb[0].mxu0
        %v2815 = vadd.f32 %v2702, %v2814
        %v2816 = vpop.f32.mrb[0].mxu0
        %v2817 = vadd.f32 %v2704, %v2816
        %2818 = vmatprep.mubr.bf16.mxu0 %v1084
        %2819 = vmatmul.mubr.bf16.gmra.mrb[0].mxu0 %v1083
        %v2820 = vpop.f32.mrb[0].mxu0
        %v2821 = vadd.f32 %v2708, %v2820
        %v2822 = vpop.f32.mrb[0].mxu0
        %v2823 = vadd.f32 %v2710, %v2822
        %v2824 = vpop.f32.mrb[0].mxu0
        %v2825 = vadd.f32 %v2712, %v2824
        %v2826 = vpop.f32.mrb[0].mxu0
        %v2827 = vadd.f32 %v2714, %v2826
        %2828 = vmatprep.mubr.bf16.mxu0 %v1096
        %2829 = vmatmul.mubr.bf16.gmra.mrb[0].mxu0 %v1095
        %v2830 = vpop.f32.mrb[0].mxu0
        %v2831 = vadd.f32 %v2718, %v2830
        %v2832 = vpop.f32.mrb[0].mxu0
        %v2833 = vadd.f32 %v2720, %v2832
        %v2834 = vpop.f32.mrb[0].mxu0
        %v2835 = vadd.f32 %v2722, %v2834
        %v2836 = vpop.f32.mrb[0].mxu0
        %v2837 = vadd.f32 %v2724, %v2836
        %2838 = vmatprep.mubr.bf16.mxu0 %v1108
        %2839 = vmatmul.mubr.bf16.gmra.mrb[0].mxu0 %v1107
        %v2840 = vpop.f32.mrb[0].mxu0
        %v2841 = vadd.f32 %v2728, %v2840
        %v2842 = vpop.f32.mrb[0].mxu0
        %v2843 = vadd.f32 %v2730, %v2842
        %v2844 = vpop.f32.mrb[0].mxu0
        %v2845 = vadd.f32 %v2732, %v2844
        %v2846 = vpop.f32.mrb[0].mxu0
        %v2847 = vadd.f32 %v2734, %v2846
        %2848 = vmatprep.mubr.bf16.mxu0 %v1120
        %2849 = vmatmul.mubr.bf16.gmra.mrb[0].mxu0 %v1119
        %v2850 = vpop.f32.mrb[0].mxu0
        %v2851 = vadd.f32 %v2738, %v2850
        %v2852 = vpop.f32.mrb[0].mxu0
        %v2853 = vadd.f32 %v2740, %v2852
        %v2854 = vpop.f32.mrb[0].mxu0
        %v2855 = vadd.f32 %v2742, %v2854
        %v2856 = vpop.f32.mrb[0].mxu0
        %v2857 = vadd.f32 %v2744, %v2856
        %2858 = vmatprep.mubr.bf16.mxu0 %v1132
        %2859 = vmatmul.mubr.bf16.gmra.mrb[0].mxu0 %v1131
        %v2860 = vpop.f32.mrb[0].mxu0
        %v2861 = vadd.f32 %v2748, %v2860
        %v2862 = vpop.f32.mrb[0].mxu0
        %v2863 = vadd.f32 %v2750, %v2862
        %v2864 = vpop.f32.mrb[0].mxu0
        %v2865 = vadd.f32 %v2752, %v2864
        %v2866 = vpop.f32.mrb[0].mxu0
        %v2867 = vadd.f32 %v2754, %v2866
        %2868 = vmatprep.mubr.bf16.mxu0 %v1144
        %2869 = vmatmul.mubr.bf16.gmra.mrb[0].mxu0 %v1143
        %v2870 = vpop.f32.mrb[0].mxu0
        %v2871 = vadd.f32 %v2758, %v2870
        %v2872 = vpop.f32.mrb[0].mxu0
        %v2873 = vadd.f32 %v2760, %v2872
        %v2874 = vpop.f32.mrb[0].mxu0
        %v2875 = vadd.f32 %v2762, %v2874
        %v2876 = vpop.f32.mrb[0].mxu0
        %v2877 = vadd.f32 %v2764, %v2876
        %2878 = vdwg.mxu0
        %v2927 = vunpack.c.l.b16 %v329
        %v2928 = vunpack.c.h.b16 %v329
        %v2929 = vunpack.c.l.b16 %v330
        %v2930 = vunpack.c.h.b16 %v330
        %v2931 = vunpack.c.l.b16 %v331
        %v2932 = vunpack.c.h.b16 %v331
        %v2933 = vunpack.c.l.b16 %v332
        %v2934 = vunpack.c.h.b16 %v332
        %v2935 = vunpack.c.l.b16 %v333
        %v2936 = vunpack.c.h.b16 %v333
        %v2937 = vunpack.c.l.b16 %v334
        %v2938 = vunpack.c.h.b16 %v334
        %v2939 = vunpack.c.l.b16 %v335
        %v2940 = vunpack.c.h.b16 %v335
        %v2941 = vunpack.c.l.b16 %v336
        %v2942 = vunpack.c.h.b16 %v336
        %v2943 = vunpack.c.l.b16 %v337
        %v2944 = vunpack.c.h.b16 %v337
        %v2945 = vunpack.c.l.b16 %v338
        %v2946 = vunpack.c.h.b16 %v338
        %v2947 = vunpack.c.l.b16 %v339
        %v2948 = vunpack.c.h.b16 %v339
        %v2949 = vunpack.c.l.b16 %v340
        %v2950 = vunpack.c.h.b16 %v340
        %v2951 = vunpack.c.l.b16 %v341
        %v2952 = vunpack.c.h.b16 %v341
        %v2953 = vunpack.c.l.b16 %v342
        %v2954 = vunpack.c.h.b16 %v342
        %v2955 = vunpack.c.l.b16 %v343
        %v2956 = vunpack.c.h.b16 %v343
        %v2957 = vunpack.c.l.b16 %v344
        %v2958 = vunpack.c.h.b16 %v344
        %v2959 = vunpack.c.l.b16 %v345
        %v2960 = vunpack.c.h.b16 %v345
        %v2961 = vunpack.c.l.b16 %v346
        %v2962 = vunpack.c.h.b16 %v346
        %v2963 = vunpack.c.l.b16 %v347
        %v2964 = vunpack.c.h.b16 %v347
        %v2965 = vunpack.c.l.b16 %v348
        %v2966 = vunpack.c.h.b16 %v348
        %v2967 = vunpack.c.l.b16 %v349
        %v2968 = vunpack.c.h.b16 %v349
        %v2969 = vunpack.c.l.b16 %v350
        %v2970 = vunpack.c.h.b16 %v350
        %v2971 = vunpack.c.l.b16 %v351
        %v2972 = vunpack.c.h.b16 %v351
        %v2973 = vunpack.c.l.b16 %v352
        %v2974 = vunpack.c.h.b16 %v352
        %v2975 = vunpack.c.l.b16 %v353
        %v2976 = vunpack.c.h.b16 %v353
        %v2977 = vunpack.c.l.b16 %v354
        %v2978 = vunpack.c.h.b16 %v354
        %v2979 = vunpack.c.l.b16 %v355
        %v2980 = vunpack.c.h.b16 %v355
        %v2981 = vunpack.c.l.b16 %v356
        %v2982 = vunpack.c.h.b16 %v356
        %v2983 = vunpack.c.l.b16 %v357
        %v2984 = vunpack.c.h.b16 %v357
        %v2985 = vunpack.c.l.b16 %v358
        %v2986 = vunpack.c.h.b16 %v358
        %v2987 = vunpack.c.l.b16 %v359
        %v2988 = vunpack.c.h.b16 %v359
        %v2989 = vunpack.c.l.b16 %v360
        %v2990 = vunpack.c.h.b16 %v360
        %v2991 = vunpack.c.l.b16 %v361
        %v2992 = vunpack.c.h.b16 %v361
        %v2993 = vunpack.c.l.b16 %v362
        %v2994 = vunpack.c.h.b16 %v362
        %v2995 = vunpack.c.l.b16 %v363
        %v2996 = vunpack.c.h.b16 %v363
        %v2997 = vunpack.c.l.b16 %v364
        %v2998 = vunpack.c.h.b16 %v364
        %v2999 = vunpack.c.l.b16 %v365
        %v3000 = vunpack.c.h.b16 %v365
        %v3001 = vunpack.c.l.b16 %v366
        %v3002 = vunpack.c.h.b16 %v366
        %v3003 = vunpack.c.l.b16 %v367
        %v3004 = vunpack.c.h.b16 %v367
        %v3005 = vunpack.c.l.b16 %v368
        %v3006 = vunpack.c.h.b16 %v368
        %v3007 = vunpack.c.l.b16 %v369
        %v3008 = vunpack.c.h.b16 %v369
        %v3009 = vunpack.c.l.b16 %v370
        %v3010 = vunpack.c.h.b16 %v370
        %v3011 = vunpack.c.l.b16 %v371
        %v3012 = vunpack.c.h.b16 %v371
        %v3013 = vunpack.c.l.b16 %v372
        %v3014 = vunpack.c.h.b16 %v372
        %v3015 = vunpack.c.l.b16 %v373
        %v3016 = vunpack.c.h.b16 %v373
        %v3017 = vunpack.c.l.b16 %v374
        %v3018 = vunpack.c.h.b16 %v374
        %v3019 = vunpack.c.l.b16 %v375
        %v3020 = vunpack.c.h.b16 %v375
        %v3021 = vunpack.c.l.b16 %v376
        %v3022 = vunpack.c.h.b16 %v376
        %v3023 = vpack.c.b16 %v2933, %v2927
        %v3024 = vpack.c.b16 %v2934, %v2928
        %v3025 = vpack.c.b16 %v2935, %v2929
        %v3026 = vpack.c.b16 %v2936, %v2930
        %v3027 = vpack.c.b16 %v2937, %v2931
        %v3028 = vpack.c.b16 %v2938, %v2932
        %v3029 = vpack.c.b16 %v2945, %v2939
        %v3030 = vpack.c.b16 %v2946, %v2940
        %v3031 = vpack.c.b16 %v2947, %v2941
        %v3032 = vpack.c.b16 %v2948, %v2942
        %v3033 = vpack.c.b16 %v2949, %v2943
        %v3034 = vpack.c.b16 %v2950, %v2944
        %v3035 = vpack.c.b16 %v2957, %v2951
        %v3036 = vpack.c.b16 %v2958, %v2952
        %v3037 = vpack.c.b16 %v2959, %v2953
        %v3038 = vpack.c.b16 %v2960, %v2954
        %v3039 = vpack.c.b16 %v2961, %v2955
        %v3040 = vpack.c.b16 %v2962, %v2956
        %v3041 = vpack.c.b16 %v2969, %v2963
        %v3042 = vpack.c.b16 %v2970, %v2964
        %v3043 = vpack.c.b16 %v2971, %v2965
        %v3044 = vpack.c.b16 %v2972, %v2966
        %v3045 = vpack.c.b16 %v2973, %v2967
        %v3046 = vpack.c.b16 %v2974, %v2968
        %v3047 = vpack.c.b16 %v2981, %v2975
        %v3048 = vpack.c.b16 %v2982, %v2976
        %v3049 = vpack.c.b16 %v2983, %v2977
        %v3050 = vpack.c.b16 %v2984, %v2978
        %v3051 = vpack.c.b16 %v2985, %v2979
        %v3052 = vpack.c.b16 %v2986, %v2980
        %v3053 = vpack.c.b16 %v2993, %v2987
        %v3054 = vpack.c.b16 %v2994, %v2988
        %v3055 = vpack.c.b16 %v2995, %v2989
        %v3056 = vpack.c.b16 %v2996, %v2990
        %v3057 = vpack.c.b16 %v2997, %v2991
        %v3058 = vpack.c.b16 %v2998, %v2992
        %v3059 = vpack.c.b16 %v3005, %v2999
        %v3060 = vpack.c.b16 %v3006, %v3000
        %v3061 = vpack.c.b16 %v3007, %v3001
        %v3062 = vpack.c.b16 %v3008, %v3002
        %v3063 = vpack.c.b16 %v3009, %v3003
        %v3064 = vpack.c.b16 %v3010, %v3004
        %v3065 = vpack.c.b16 %v3017, %v3011
        %v3066 = vpack.c.b16 %v3018, %v3012
        %v3067 = vpack.c.b16 %v3019, %v3013
        %v3068 = vpack.c.b16 %v3020, %v3014
        %v3069 = vpack.c.b16 %v3021, %v3015
        %v3070 = vpack.c.b16 %v3022, %v3016
        %v3215 = vunpack.c.l.b16 %v377
        %v3216 = vunpack.c.h.b16 %v377
        %v3217 = vunpack.c.l.b16 %v378
        %v3218 = vunpack.c.h.b16 %v378
        %v3219 = vunpack.c.l.b16 %v379
        %v3220 = vunpack.c.h.b16 %v379
        %v3221 = vunpack.c.l.b16 %v380
        %v3222 = vunpack.c.h.b16 %v380
        %v3223 = vunpack.c.l.b16 %v381
        %v3224 = vunpack.c.h.b16 %v381
        %v3225 = vunpack.c.l.b16 %v382
        %v3226 = vunpack.c.h.b16 %v382
        %v3227 = vunpack.c.l.b16 %v383
        %v3228 = vunpack.c.h.b16 %v383
        %v3229 = vunpack.c.l.b16 %v384
        %v3230 = vunpack.c.h.b16 %v384
        %v3231 = vunpack.c.l.b16 %v385
        %v3232 = vunpack.c.h.b16 %v385
        %v3233 = vunpack.c.l.b16 %v386
        %v3234 = vunpack.c.h.b16 %v386
        %v3235 = vunpack.c.l.b16 %v387
        %v3236 = vunpack.c.h.b16 %v387
        %v3237 = vunpack.c.l.b16 %v388
        %v3238 = vunpack.c.h.b16 %v388
        %v3239 = vunpack.c.l.b16 %v389
        %v3240 = vunpack.c.h.b16 %v389
        %v3241 = vunpack.c.l.b16 %v390
        %v3242 = vunpack.c.h.b16 %v390
        %v3243 = vunpack.c.l.b16 %v391
        %v3244 = vunpack.c.h.b16 %v391
        %v3245 = vunpack.c.l.b16 %v392
        %v3246 = vunpack.c.h.b16 %v392
        %v3247 = vunpack.c.l.b16 %v393
        %v3248 = vunpack.c.h.b16 %v393
        %v3249 = vunpack.c.l.b16 %v394
        %v3250 = vunpack.c.h.b16 %v394
        %v3251 = vunpack.c.l.b16 %v395
        %v3252 = vunpack.c.h.b16 %v395
        %v3253 = vunpack.c.l.b16 %v396
        %v3254 = vunpack.c.h.b16 %v396
        %v3255 = vunpack.c.l.b16 %v397
        %v3256 = vunpack.c.h.b16 %v397
        %v3257 = vunpack.c.l.b16 %v398
        %v3258 = vunpack.c.h.b16 %v398
        %v3259 = vunpack.c.l.b16 %v399
        %v3260 = vunpack.c.h.b16 %v399
        %v3261 = vunpack.c.l.b16 %v400
        %v3262 = vunpack.c.h.b16 %v400
        %v3263 = vunpack.c.l.b16 %v401
        %v3264 = vunpack.c.h.b16 %v401
        %v3265 = vunpack.c.l.b16 %v402
        %v3266 = vunpack.c.h.b16 %v402
        %v3267 = vunpack.c.l.b16 %v403
        %v3268 = vunpack.c.h.b16 %v403
        %v3269 = vunpack.c.l.b16 %v404
        %v3270 = vunpack.c.h.b16 %v404
        %v3271 = vunpack.c.l.b16 %v405
        %v3272 = vunpack.c.h.b16 %v405
        %v3273 = vunpack.c.l.b16 %v406
        %v3274 = vunpack.c.h.b16 %v406
        %v3275 = vunpack.c.l.b16 %v407
        %v3276 = vunpack.c.h.b16 %v407
        %v3277 = vunpack.c.l.b16 %v408
        %v3278 = vunpack.c.h.b16 %v408
        %v3279 = vunpack.c.l.b16 %v409
        %v3280 = vunpack.c.h.b16 %v409
        %v3281 = vunpack.c.l.b16 %v410
        %v3282 = vunpack.c.h.b16 %v410
        %v3283 = vunpack.c.l.b16 %v411
        %v3284 = vunpack.c.h.b16 %v411
        %v3285 = vunpack.c.l.b16 %v412
        %v3286 = vunpack.c.h.b16 %v412
        %v3287 = vunpack.c.l.b16 %v413
        %v3288 = vunpack.c.h.b16 %v413
        %v3289 = vunpack.c.l.b16 %v414
        %v3290 = vunpack.c.h.b16 %v414
        %v3291 = vunpack.c.l.b16 %v415
        %v3292 = vunpack.c.h.b16 %v415
        %v3293 = vunpack.c.l.b16 %v416
        %v3294 = vunpack.c.h.b16 %v416
        %v3295 = vunpack.c.l.b16 %v417
        %v3296 = vunpack.c.h.b16 %v417
        %v3297 = vunpack.c.l.b16 %v418
        %v3298 = vunpack.c.h.b16 %v418
        %v3299 = vunpack.c.l.b16 %v419
        %v3300 = vunpack.c.h.b16 %v419
        %v3301 = vunpack.c.l.b16 %v420
        %v3302 = vunpack.c.h.b16 %v420
        %v3303 = vunpack.c.l.b16 %v421
        %v3304 = vunpack.c.h.b16 %v421
        %v3305 = vunpack.c.l.b16 %v422
        %v3306 = vunpack.c.h.b16 %v422
        %v3307 = vunpack.c.l.b16 %v423
        %v3308 = vunpack.c.h.b16 %v423
        %v3309 = vunpack.c.l.b16 %v424
        %v3310 = vunpack.c.h.b16 %v424
        %v3311 = vunpack.c.l.b16 %v425
        %v3312 = vunpack.c.h.b16 %v425
        %v3313 = vunpack.c.l.b16 %v426
        %v3314 = vunpack.c.h.b16 %v426
        %v3315 = vunpack.c.l.b16 %v427
        %v3316 = vunpack.c.h.b16 %v427
        %v3317 = vunpack.c.l.b16 %v428
        %v3318 = vunpack.c.h.b16 %v428
        %v3319 = vunpack.c.l.b16 %v429
        %v3320 = vunpack.c.h.b16 %v429
        %v3321 = vunpack.c.l.b16 %v430
        %v3322 = vunpack.c.h.b16 %v430
        %v3323 = vunpack.c.l.b16 %v431
        %v3324 = vunpack.c.h.b16 %v431
        %v3325 = vunpack.c.l.b16 %v432
        %v3326 = vunpack.c.h.b16 %v432
        %v3327 = vunpack.c.l.b16 %v433
        %v3328 = vunpack.c.h.b16 %v433
        %v3329 = vunpack.c.l.b16 %v434
        %v3330 = vunpack.c.h.b16 %v434
        %v3331 = vunpack.c.l.b16 %v435
        %v3332 = vunpack.c.h.b16 %v435
        %v3333 = vunpack.c.l.b16 %v436
        %v3334 = vunpack.c.h.b16 %v436
        %v3335 = vunpack.c.l.b16 %v437
        %v3336 = vunpack.c.h.b16 %v437
        %v3337 = vunpack.c.l.b16 %v438
        %v3338 = vunpack.c.h.b16 %v438
        %v3339 = vunpack.c.l.b16 %v439
        %v3340 = vunpack.c.h.b16 %v439
        %v3341 = vunpack.c.l.b16 %v440
        %v3342 = vunpack.c.h.b16 %v440
        %v3343 = vunpack.c.l.b16 %v441
        %v3344 = vunpack.c.h.b16 %v441
        %v3345 = vunpack.c.l.b16 %v442
        %v3346 = vunpack.c.h.b16 %v442
        %v3347 = vunpack.c.l.b16 %v443
        %v3348 = vunpack.c.h.b16 %v443
        %v3349 = vunpack.c.l.b16 %v444
        %v3350 = vunpack.c.h.b16 %v444
        %v3351 = vunpack.c.l.b16 %v445
        %v3352 = vunpack.c.h.b16 %v445
        %v3353 = vunpack.c.l.b16 %v446
        %v3354 = vunpack.c.h.b16 %v446
        %v3355 = vunpack.c.l.b16 %v447
        %v3356 = vunpack.c.h.b16 %v447
        %v3357 = vunpack.c.l.b16 %v448
        %v3358 = vunpack.c.h.b16 %v448
        %v3359 = vunpack.c.l.b16 %v449
        %v3360 = vunpack.c.h.b16 %v449
        %v3361 = vunpack.c.l.b16 %v450
        %v3362 = vunpack.c.h.b16 %v450
        %v3363 = vunpack.c.l.b16 %v451
        %v3364 = vunpack.c.h.b16 %v451
        %v3365 = vunpack.c.l.b16 %v452
        %v3366 = vunpack.c.h.b16 %v452
        %v3367 = vunpack.c.l.b16 %v453
        %v3368 = vunpack.c.h.b16 %v453
        %v3369 = vunpack.c.l.b16 %v454
        %v3370 = vunpack.c.h.b16 %v454
        %v3371 = vunpack.c.l.b16 %v455
        %v3372 = vunpack.c.h.b16 %v455
        %v3373 = vunpack.c.l.b16 %v456
        %v3374 = vunpack.c.h.b16 %v456
        %v3375 = vunpack.c.l.b16 %v457
        %v3376 = vunpack.c.h.b16 %v457
        %v3377 = vunpack.c.l.b16 %v458
        %v3378 = vunpack.c.h.b16 %v458
        %v3379 = vunpack.c.l.b16 %v459
        %v3380 = vunpack.c.h.b16 %v459
        %v3381 = vunpack.c.l.b16 %v460
        %v3382 = vunpack.c.h.b16 %v460
        %v3383 = vunpack.c.l.b16 %v461
        %v3384 = vunpack.c.h.b16 %v461
        %v3385 = vunpack.c.l.b16 %v462
        %v3386 = vunpack.c.h.b16 %v462
        %v3387 = vunpack.c.l.b16 %v463
        %v3388 = vunpack.c.h.b16 %v463
        %v3389 = vunpack.c.l.b16 %v464
        %v3390 = vunpack.c.h.b16 %v464
        %v3391 = vunpack.c.l.b16 %v465
        %v3392 = vunpack.c.h.b16 %v465
        %v3393 = vunpack.c.l.b16 %v466
        %v3394 = vunpack.c.h.b16 %v466
        %v3395 = vunpack.c.l.b16 %v467
        %v3396 = vunpack.c.h.b16 %v467
        %v3397 = vunpack.c.l.b16 %v468
        %v3398 = vunpack.c.h.b16 %v468
        %v3399 = vunpack.c.l.b16 %v469
        %v3400 = vunpack.c.h.b16 %v469
        %v3401 = vunpack.c.l.b16 %v470
        %v3402 = vunpack.c.h.b16 %v470
        %v3403 = vunpack.c.l.b16 %v471
        %v3404 = vunpack.c.h.b16 %v471
        %v3405 = vunpack.c.l.b16 %v472
        %v3406 = vunpack.c.h.b16 %v472
        %v3407 = vpack.c.b16 %v3217, %v3215
        %v3408 = vpack.c.b16 %v3218, %v3216
        %v3409 = vpack.c.b16 %v3221, %v3219
        %v3410 = vpack.c.b16 %v3222, %v3220
        %v3411 = vpack.c.b16 %v3225, %v3223
        %v3412 = vpack.c.b16 %v3226, %v3224
        %v3413 = vpack.c.b16 %v3229, %v3227
        %v3414 = vpack.c.b16 %v3230, %v3228
        %v3415 = vpack.c.b16 %v3233, %v3231
        %v3416 = vpack.c.b16 %v3234, %v3232
        %v3417 = vpack.c.b16 %v3237, %v3235
        %v3418 = vpack.c.b16 %v3238, %v3236
        %v3419 = vpack.c.b16 %v3241, %v3239
        %v3420 = vpack.c.b16 %v3242, %v3240
        %v3421 = vpack.c.b16 %v3245, %v3243
        %v3422 = vpack.c.b16 %v3246, %v3244
        %v3423 = vpack.c.b16 %v3249, %v3247
        %v3424 = vpack.c.b16 %v3250, %v3248
        %v3425 = vpack.c.b16 %v3253, %v3251
        %v3426 = vpack.c.b16 %v3254, %v3252
        %v3427 = vpack.c.b16 %v3257, %v3255
        %v3428 = vpack.c.b16 %v3258, %v3256
        %v3429 = vpack.c.b16 %v3261, %v3259
        %v3430 = vpack.c.b16 %v3262, %v3260
        %v3431 = vpack.c.b16 %v3265, %v3263
        %v3432 = vpack.c.b16 %v3266, %v3264
        %v3433 = vpack.c.b16 %v3269, %v3267
        %v3434 = vpack.c.b16 %v3270, %v3268
        %v3435 = vpack.c.b16 %v3273, %v3271
        %v3436 = vpack.c.b16 %v3274, %v3272
        %v3437 = vpack.c.b16 %v3277, %v3275
        %v3438 = vpack.c.b16 %v3278, %v3276
        %v3439 = vpack.c.b16 %v3281, %v3279
        %v3440 = vpack.c.b16 %v3282, %v3280
        %v3441 = vpack.c.b16 %v3285, %v3283
        %v3442 = vpack.c.b16 %v3286, %v3284
        %v3443 = vpack.c.b16 %v3289, %v3287
        %v3444 = vpack.c.b16 %v3290, %v3288
        %v3445 = vpack.c.b16 %v3293, %v3291
        %v3446 = vpack.c.b16 %v3294, %v3292
        %v3447 = vpack.c.b16 %v3297, %v3295
        %v3448 = vpack.c.b16 %v3298, %v3296
        %v3449 = vpack.c.b16 %v3301, %v3299
        %v3450 = vpack.c.b16 %v3302, %v3300
        %v3451 = vpack.c.b16 %v3305, %v3303
        %v3452 = vpack.c.b16 %v3306, %v3304
        %v3453 = vpack.c.b16 %v3309, %v3307
        %v3454 = vpack.c.b16 %v3310, %v3308
        %v3455 = vpack.c.b16 %v3313, %v3311
        %v3456 = vpack.c.b16 %v3314, %v3312
        %v3457 = vpack.c.b16 %v3317, %v3315
        %v3458 = vpack.c.b16 %v3318, %v3316
        %v3459 = vpack.c.b16 %v3321, %v3319
        %v3460 = vpack.c.b16 %v3322, %v3320
        %v3461 = vpack.c.b16 %v3325, %v3323
        %v3462 = vpack.c.b16 %v3326, %v3324
        %v3463 = vpack.c.b16 %v3329, %v3327
        %v3464 = vpack.c.b16 %v3330, %v3328
        %v3465 = vpack.c.b16 %v3333, %v3331
        %v3466 = vpack.c.b16 %v3334, %v3332
        %v3467 = vpack.c.b16 %v3337, %v3335
        %v3468 = vpack.c.b16 %v3338, %v3336
        %v3469 = vpack.c.b16 %v3341, %v3339
        %v3470 = vpack.c.b16 %v3342, %v3340
        %v3471 = vpack.c.b16 %v3345, %v3343
        %v3472 = vpack.c.b16 %v3346, %v3344
        %v3473 = vpack.c.b16 %v3349, %v3347
        %v3474 = vpack.c.b16 %v3350, %v3348
        %v3475 = vpack.c.b16 %v3353, %v3351
        %v3476 = vpack.c.b16 %v3354, %v3352
        %v3477 = vpack.c.b16 %v3357, %v3355
        %v3478 = vpack.c.b16 %v3358, %v3356
        %v3479 = vpack.c.b16 %v3361, %v3359
        %v3480 = vpack.c.b16 %v3362, %v3360
        %v3481 = vpack.c.b16 %v3365, %v3363
        %v3482 = vpack.c.b16 %v3366, %v3364
        %v3483 = vpack.c.b16 %v3369, %v3367
        %v3484 = vpack.c.b16 %v3370, %v3368
        %v3485 = vpack.c.b16 %v3373, %v3371
        %v3486 = vpack.c.b16 %v3374, %v3372
        %v3487 = vpack.c.b16 %v3377, %v3375
        %v3488 = vpack.c.b16 %v3378, %v3376
        %v3489 = vpack.c.b16 %v3381, %v3379
        %v3490 = vpack.c.b16 %v3382, %v3380
        %v3491 = vpack.c.b16 %v3385, %v3383
        %v3492 = vpack.c.b16 %v3386, %v3384
        %v3493 = vpack.c.b16 %v3389, %v3387
        %v3494 = vpack.c.b16 %v3390, %v3388
        %v3495 = vpack.c.b16 %v3393, %v3391
        %v3496 = vpack.c.b16 %v3394, %v3392
        %v3497 = vpack.c.b16 %v3397, %v3395
        %v3498 = vpack.c.b16 %v3398, %v3396
        %v3499 = vpack.c.b16 %v3401, %v3399
        %v3500 = vpack.c.b16 %v3402, %v3400
        %v3501 = vpack.c.b16 %v3405, %v3403
        %v3502 = vpack.c.b16 %v3406, %v3404
        %3599 = vmatprep.subr.bf16.mxu0 %v3408
        %3600 = vmatpush1.bf16.msra.mxu0 %v3407
        %3601 = vmatprep.subr.bf16.mxu0 %v3410
        %3602 = vmatpush1.bf16.msra.mxu0 %v3409
        %3603 = vmatprep.subr.bf16.mxu0 %v3412
        %3604 = vmatpush1.bf16.msra.mxu0 %v3411
        %3605 = vmatprep.subr.bf16.mxu0 %v3414
        %3606 = vmatpush1.bf16.msra.mxu0 %v3413
        %3607 = vmatprep.subr.bf16.mxu0 %v3416
        %3608 = vmatpush1.bf16.msra.mxu0 %v3415
        %3609 = vmatprep.subr.bf16.mxu0 %v3418
        %3610 = vmatpush1.bf16.msra.mxu0 %v3417
        %3611 = vmatprep.subr.bf16.mxu0 %v3420
        %3612 = vmatpush1.bf16.msra.mxu0 %v3419
        %3613 = vmatprep.subr.bf16.mxu0 %v3422
        %3614 = vmatpush1.bf16.msra.mxu0 %v3421
        %3615 = vmatprep.subr.bf16.mxu0 %v3424
        %3616 = vmatpush1.bf16.msra.mxu0 %v3423
        %3617 = vmatprep.subr.bf16.mxu0 %v3426
        %3618 = vmatpush1.bf16.msra.mxu0 %v3425
        %3619 = vmatprep.subr.bf16.mxu0 %v3428
        %3620 = vmatpush1.bf16.msra.mxu0 %v3427
        %3621 = vmatprep.subr.bf16.mxu0 %v3430
        %3622 = vmatpush1.bf16.msra.mxu0 %v3429
        %3623 = vmatprep.subr.bf16.mxu0 %v3432
        %3624 = vmatpush1.bf16.msra.mxu0 %v3431
        %3625 = vmatprep.subr.bf16.mxu0 %v3434
        %3626 = vmatpush1.bf16.msra.mxu0 %v3433
        %3627 = vmatprep.subr.bf16.mxu0 %v3436
        %3628 = vmatpush1.bf16.msra.mxu0 %v3435
        %3629 = vmatprep.subr.bf16.mxu0 %v3438
        %3630 = vmatpush1.bf16.msra.mxu0 %v3437
        %3631 = vmatprep.mubr.bf16.mxu0 %v3024
        %3632 = vmatmul.mubr.bf16.gmra.mrb[0].mxu0 %v3023
        %v3633 = vpop.f32.mrb[0].mxu0
        %v3634 = vadd.f32 %v2801, %v3633
        %v3635 = vpop.f32.mrb[0].mxu0
        %v3636 = vadd.f32 %v2803, %v3635
        %v3637 = vpop.f32.mrb[0].mxu0
        %v3638 = vadd.f32 %v2805, %v3637
        %v3639 = vpop.f32.mrb[0].mxu0
        %v3640 = vadd.f32 %v2807, %v3639
        %3641 = vmatprep.mubr.bf16.mxu0 %v3030
        %3642 = vmatmul.mubr.bf16.gmra.mrb[0].mxu0 %v3029
        %v3643 = vpop.f32.mrb[0].mxu0
        %v3644 = vadd.f32 %v2811, %v3643
        %v3645 = vpop.f32.mrb[0].mxu0
        %v3646 = vadd.f32 %v2813, %v3645
        %v3647 = vpop.f32.mrb[0].mxu0
        %v3648 = vadd.f32 %v2815, %v3647
        %v3649 = vpop.f32.mrb[0].mxu0
        %v3650 = vadd.f32 %v2817, %v3649
        %3651 = vmatprep.mubr.bf16.mxu0 %v3036
        %3652 = vmatmul.mubr.bf16.gmra.mrb[0].mxu0 %v3035
        %v3653 = vpop.f32.mrb[0].mxu0
        %v3654 = vadd.f32 %v2821, %v3653
        %v3655 = vpop.f32.mrb[0].mxu0
        %v3656 = vadd.f32 %v2823, %v3655
        %v3657 = vpop.f32.mrb[0].mxu0
        %v3658 = vadd.f32 %v2825, %v3657
        %v3659 = vpop.f32.mrb[0].mxu0
        %v3660 = vadd.f32 %v2827, %v3659
        %3661 = vmatprep.mubr.bf16.mxu0 %v3042
        %3662 = vmatmul.mubr.bf16.gmra.mrb[0].mxu0 %v3041
        %v3663 = vpop.f32.mrb[0].mxu0
        %v3664 = vadd.f32 %v2831, %v3663
        %v3665 = vpop.f32.mrb[0].mxu0
        %v3666 = vadd.f32 %v2833, %v3665
        %v3667 = vpop.f32.mrb[0].mxu0
        %v3668 = vadd.f32 %v2835, %v3667
        %v3669 = vpop.f32.mrb[0].mxu0
        %v3670 = vadd.f32 %v2837, %v3669
        %3671 = vmatprep.mubr.bf16.mxu0 %v3048
        %3672 = vmatmul.mubr.bf16.gmra.mrb[0].mxu0 %v3047
        %v3673 = vpop.f32.mrb[0].mxu0
        %v3674 = vadd.f32 %v2841, %v3673
        %v3675 = vpop.f32.mrb[0].mxu0
        %v3676 = vadd.f32 %v2843, %v3675
        %v3677 = vpop.f32.mrb[0].mxu0
        %v3678 = vadd.f32 %v2845, %v3677
        %v3679 = vpop.f32.mrb[0].mxu0
        %v3680 = vadd.f32 %v2847, %v3679
        %3681 = vmatprep.mubr.bf16.mxu0 %v3054
        %3682 = vmatmul.mubr.bf16.gmra.mrb[0].mxu0 %v3053
        %v3683 = vpop.f32.mrb[0].mxu0
        %v3684 = vadd.f32 %v2851, %v3683
        %v3685 = vpop.f32.mrb[0].mxu0
        %v3686 = vadd.f32 %v2853, %v3685
        %v3687 = vpop.f32.mrb[0].mxu0
        %v3688 = vadd.f32 %v2855, %v3687
        %v3689 = vpop.f32.mrb[0].mxu0
        %v3690 = vadd.f32 %v2857, %v3689
        %3691 = vmatprep.mubr.bf16.mxu0 %v3060
        %3692 = vmatmul.mubr.bf16.gmra.mrb[0].mxu0 %v3059
        %v3693 = vpop.f32.mrb[0].mxu0
        %v3694 = vadd.f32 %v2861, %v3693
        %v3695 = vpop.f32.mrb[0].mxu0
        %v3696 = vadd.f32 %v2863, %v3695
        %v3697 = vpop.f32.mrb[0].mxu0
        %v3698 = vadd.f32 %v2865, %v3697
        %v3699 = vpop.f32.mrb[0].mxu0
        %v3700 = vadd.f32 %v2867, %v3699
        %3701 = vmatprep.mubr.bf16.mxu0 %v3066
        %3702 = vmatmul.mubr.bf16.gmra.mrb[0].mxu0 %v3065
        %v3703 = vpop.f32.mrb[0].mxu0
        %v3704 = vadd.f32 %v2871, %v3703
        %v3705 = vpop.f32.mrb[0].mxu0
        %v3706 = vadd.f32 %v2873, %v3705
        %v3707 = vpop.f32.mrb[0].mxu0
        %v3708 = vadd.f32 %v2875, %v3707
        %v3709 = vpop.f32.mrb[0].mxu0
        %v3710 = vadd.f32 %v2877, %v3709
        %3711 = vdwg.mxu0
        %3712 = vmatprep.subr.bf16.mxu0 %v3440
        %3713 = vmatpush1.bf16.msra.mxu0 %v3439
        %3714 = vmatprep.subr.bf16.mxu0 %v3442
        %3715 = vmatpush1.bf16.msra.mxu0 %v3441
        %3716 = vmatprep.subr.bf16.mxu0 %v3444
        %3717 = vmatpush1.bf16.msra.mxu0 %v3443
        %3718 = vmatprep.subr.bf16.mxu0 %v3446
        %3719 = vmatpush1.bf16.msra.mxu0 %v3445
        %3720 = vmatprep.subr.bf16.mxu0 %v3448
        %3721 = vmatpush1.bf16.msra.mxu0 %v3447
        %3722 = vmatprep.subr.bf16.mxu0 %v3450
        %3723 = vmatpush1.bf16.msra.mxu0 %v3449
        %3724 = vmatprep.subr.bf16.mxu0 %v3452
        %3725 = vmatpush1.bf16.msra.mxu0 %v3451
        %3726 = vmatprep.subr.bf16.mxu0 %v3454
        %3727 = vmatpush1.bf16.msra.mxu0 %v3453
        %3728 = vmatprep.subr.bf16.mxu0 %v3456
        %3729 = vmatpush1.bf16.msra.mxu0 %v3455
        %3730 = vmatprep.subr.bf16.mxu0 %v3458
        %3731 = vmatpush1.bf16.msra.mxu0 %v3457
        %3732 = vmatprep.subr.bf16.mxu0 %v3460
        %3733 = vmatpush1.bf16.msra.mxu0 %v3459
        %3734 = vmatprep.subr.bf16.mxu0 %v3462
        %3735 = vmatpush1.bf16.msra.mxu0 %v3461
        %3736 = vmatprep.subr.bf16.mxu0 %v3464
        %3737 = vmatpush1.bf16.msra.mxu0 %v3463
        %3738 = vmatprep.subr.bf16.mxu0 %v3466
        %3739 = vmatpush1.bf16.msra.mxu0 %v3465
        %3740 = vmatprep.subr.bf16.mxu0 %v3468
        %3741 = vmatpush1.bf16.msra.mxu0 %v3467
        %3742 = vmatprep.subr.bf16.mxu0 %v3470
        %3743 = vmatpush1.bf16.msra.mxu0 %v3469
        %3744 = vmatprep.mubr.bf16.mxu0 %v3026
        %3745 = vmatmul.mubr.bf16.gmra.mrb[0].mxu0 %v3025
        %v3746 = vpop.f32.mrb[0].mxu0
        %v3747 = vadd.f32 %v3634, %v3746
        %v3748 = vpop.f32.mrb[0].mxu0
        %v3749 = vadd.f32 %v3636, %v3748
        %v3750 = vpop.f32.mrb[0].mxu0
        %v3751 = vadd.f32 %v3638, %v3750
        %v3752 = vpop.f32.mrb[0].mxu0
        %v3753 = vadd.f32 %v3640, %v3752
        %3754 = vmatprep.mubr.bf16.mxu0 %v3032
        %3755 = vmatmul.mubr.bf16.gmra.mrb[0].mxu0 %v3031
        %v3756 = vpop.f32.mrb[0].mxu0
        %v3757 = vadd.f32 %v3644, %v3756
        %v3758 = vpop.f32.mrb[0].mxu0
        %v3759 = vadd.f32 %v3646, %v3758
        %v3760 = vpop.f32.mrb[0].mxu0
        %v3761 = vadd.f32 %v3648, %v3760
        %v3762 = vpop.f32.mrb[0].mxu0
        %v3763 = vadd.f32 %v3650, %v3762
        %3764 = vmatprep.mubr.bf16.mxu0 %v3038
        %3765 = vmatmul.mubr.bf16.gmra.mrb[0].mxu0 %v3037
        %v3766 = vpop.f32.mrb[0].mxu0
        %v3767 = vadd.f32 %v3654, %v3766
        %v3768 = vpop.f32.mrb[0].mxu0
        %v3769 = vadd.f32 %v3656, %v3768
        %v3770 = vpop.f32.mrb[0].mxu0
        %v3771 = vadd.f32 %v3658, %v3770
        %v3772 = vpop.f32.mrb[0].mxu0
        %v3773 = vadd.f32 %v3660, %v3772
        %3774 = vmatprep.mubr.bf16.mxu0 %v3044
        %3775 = vmatmul.mubr.bf16.gmra.mrb[0].mxu0 %v3043
        %v3776 = vpop.f32.mrb[0].mxu0
        %v3777 = vadd.f32 %v3664, %v3776
        %v3778 = vpop.f32.mrb[0].mxu0
        %v3779 = vadd.f32 %v3666, %v3778
        %v3780 = vpop.f32.mrb[0].mxu0
        %v3781 = vadd.f32 %v3668, %v3780
        %v3782 = vpop.f32.mrb[0].mxu0
        %v3783 = vadd.f32 %v3670, %v3782
        %3784 = vmatprep.mubr.bf16.mxu0 %v3050
        %3785 = vmatmul.mubr.bf16.gmra.mrb[0].mxu0 %v3049
        %v3786 = vpop.f32.mrb[0].mxu0
        %v3787 = vadd.f32 %v3674, %v3786
        %v3788 = vpop.f32.mrb[0].mxu0
        %v3789 = vadd.f32 %v3676, %v3788
        %v3790 = vpop.f32.mrb[0].mxu0
        %v3791 = vadd.f32 %v3678, %v3790
        %v3792 = vpop.f32.mrb[0].mxu0
        %v3793 = vadd.f32 %v3680, %v3792
        %3794 = vmatprep.mubr.bf16.mxu0 %v3056
        %3795 = vmatmul.mubr.bf16.gmra.mrb[0].mxu0 %v3055
        %v3796 = vpop.f32.mrb[0].mxu0
        %v3797 = vadd.f32 %v3684, %v3796
        %v3798 = vpop.f32.mrb[0].mxu0
        %v3799 = vadd.f32 %v3686, %v3798
        %v3800 = vpop.f32.mrb[0].mxu0
        %v3801 = vadd.f32 %v3688, %v3800
        %v3802 = vpop.f32.mrb[0].mxu0
        %v3803 = vadd.f32 %v3690, %v3802
        %3804 = vmatprep.mubr.bf16.mxu0 %v3062
        %3805 = vmatmul.mubr.bf16.gmra.mrb[0].mxu0 %v3061
        %v3806 = vpop.f32.mrb[0].mxu0
        %v3807 = vadd.f32 %v3694, %v3806
        %v3808 = vpop.f32.mrb[0].mxu0
        %v3809 = vadd.f32 %v3696, %v3808
        %v3810 = vpop.f32.mrb[0].mxu0
        %v3811 = vadd.f32 %v3698, %v3810
        %v3812 = vpop.f32.mrb[0].mxu0
        %v3813 = vadd.f32 %v3700, %v3812
        %3814 = vmatprep.mubr.bf16.mxu0 %v3068
        %3815 = vmatmul.mubr.bf16.gmra.mrb[0].mxu0 %v3067
        %v3816 = vpop.f32.mrb[0].mxu0
        %v3817 = vadd.f32 %v3704, %v3816
        %v3818 = vpop.f32.mrb[0].mxu0
        %v3819 = vadd.f32 %v3706, %v3818
        %v3820 = vpop.f32.mrb[0].mxu0
        %v3821 = vadd.f32 %v3708, %v3820
        %v3822 = vpop.f32.mrb[0].mxu0
        %v3823 = vadd.f32 %v3710, %v3822
        %3824 = vdwg.mxu0
        %3825 = vmatprep.subr.bf16.mxu0 %v3472
        %3826 = vmatpush1.bf16.msra.mxu0 %v3471
        %3827 = vmatprep.subr.bf16.mxu0 %v3474
        %3828 = vmatpush1.bf16.msra.mxu0 %v3473
        %3829 = vmatprep.subr.bf16.mxu0 %v3476
        %3830 = vmatpush1.bf16.msra.mxu0 %v3475
        %3831 = vmatprep.subr.bf16.mxu0 %v3478
        %3832 = vmatpush1.bf16.msra.mxu0 %v3477
        %3833 = vmatprep.subr.bf16.mxu0 %v3480
        %3834 = vmatpush1.bf16.msra.mxu0 %v3479
        %3835 = vmatprep.subr.bf16.mxu0 %v3482
        %3836 = vmatpush1.bf16.msra.mxu0 %v3481
        %3837 = vmatprep.subr.bf16.mxu0 %v3484
        %3838 = vmatpush1.bf16.msra.mxu0 %v3483
        %3839 = vmatprep.subr.bf16.mxu0 %v3486
        %3840 = vmatpush1.bf16.msra.mxu0 %v3485
        %3841 = vmatprep.subr.bf16.mxu0 %v3488
        %3842 = vmatpush1.bf16.msra.mxu0 %v3487
        %3843 = vmatprep.subr.bf16.mxu0 %v3490
        %3844 = vmatpush1.bf16.msra.mxu0 %v3489
        %3845 = vmatprep.subr.bf16.mxu0 %v3492
        %3846 = vmatpush1.bf16.msra.mxu0 %v3491
        %3847 = vmatprep.subr.bf16.mxu0 %v3494
        %3848 = vmatpush1.bf16.msra.mxu0 %v3493
        %3849 = vmatprep.subr.bf16.mxu0 %v3496
        %3850 = vmatpush1.bf16.msra.mxu0 %v3495
        %3851 = vmatprep.subr.bf16.mxu0 %v3498
        %3852 = vmatpush1.bf16.msra.mxu0 %v3497
        %3853 = vmatprep.subr.bf16.mxu0 %v3500
        %3854 = vmatpush1.bf16.msra.mxu0 %v3499
        %3855 = vmatprep.subr.bf16.mxu0 %v3502
        %3856 = vmatpush1.bf16.msra.mxu0 %v3501
        %3857 = vmatprep.mubr.bf16.mxu0 %v3028
        %3858 = vmatmul.mubr.bf16.gmra.mrb[0].mxu0 %v3027
        %v3859 = vpop.f32.mrb[0].mxu0
        %v3860 = vadd.f32 %v3747, %v3859
        %v3861 = vpop.f32.mrb[0].mxu0
        %v3862 = vadd.f32 %v3749, %v3861
        %v3863 = vpop.f32.mrb[0].mxu0
        %v3864 = vadd.f32 %v3751, %v3863
        %v3865 = vpop.f32.mrb[0].mxu0
        %v3866 = vadd.f32 %v3753, %v3865
        %3867 = vmatprep.mubr.bf16.mxu0 %v3034
        %3868 = vmatmul.mubr.bf16.gmra.mrb[0].mxu0 %v3033
        %v3869 = vpop.f32.mrb[0].mxu0
        %v3870 = vadd.f32 %v3757, %v3869
        %v3871 = vpop.f32.mrb[0].mxu0
        %v3872 = vadd.f32 %v3759, %v3871
        %v3873 = vpop.f32.mrb[0].mxu0
        %v3874 = vadd.f32 %v3761, %v3873
        %v3875 = vpop.f32.mrb[0].mxu0
        %v3876 = vadd.f32 %v3763, %v3875
        %3877 = vmatprep.mubr.bf16.mxu0 %v3040
        %3878 = vmatmul.mubr.bf16.gmra.mrb[0].mxu0 %v3039
        %v3879 = vpop.f32.mrb[0].mxu0
        %v3880 = vadd.f32 %v3767, %v3879
        %v3881 = vpop.f32.mrb[0].mxu0
        %v3882 = vadd.f32 %v3769, %v3881
        %v3883 = vpop.f32.mrb[0].mxu0
        %v3884 = vadd.f32 %v3771, %v3883
        %v3885 = vpop.f32.mrb[0].mxu0
        %v3886 = vadd.f32 %v3773, %v3885
        %3887 = vmatprep.mubr.bf16.mxu0 %v3046
        %3888 = vmatmul.mubr.bf16.gmra.mrb[0].mxu0 %v3045
        %v3889 = vpop.f32.mrb[0].mxu0
        %v3890 = vadd.f32 %v3777, %v3889
        %v3891 = vpop.f32.mrb[0].mxu0
        %v3892 = vadd.f32 %v3779, %v3891
        %v3893 = vpop.f32.mrb[0].mxu0
        %v3894 = vadd.f32 %v3781, %v3893
        %v3895 = vpop.f32.mrb[0].mxu0
        %v3896 = vadd.f32 %v3783, %v3895
        %3897 = vmatprep.mubr.bf16.mxu0 %v3052
        %3898 = vmatmul.mubr.bf16.gmra.mrb[0].mxu0 %v3051
        %v3899 = vpop.f32.mrb[0].mxu0
        %v3900 = vadd.f32 %v3787, %v3899
        %v3901 = vpop.f32.mrb[0].mxu0
        %v3902 = vadd.f32 %v3789, %v3901
        %v3903 = vpop.f32.mrb[0].mxu0
        %v3904 = vadd.f32 %v3791, %v3903
        %v3905 = vpop.f32.mrb[0].mxu0
        %v3906 = vadd.f32 %v3793, %v3905
        %3907 = vmatprep.mubr.bf16.mxu0 %v3058
        %3908 = vmatmul.mubr.bf16.gmra.mrb[0].mxu0 %v3057
        %v3909 = vpop.f32.mrb[0].mxu0
        %v3910 = vadd.f32 %v3797, %v3909
        %v3911 = vpop.f32.mrb[0].mxu0
        %v3912 = vadd.f32 %v3799, %v3911
        %v3913 = vpop.f32.mrb[0].mxu0
        %v3914 = vadd.f32 %v3801, %v3913
        %v3915 = vpop.f32.mrb[0].mxu0
        %v3916 = vadd.f32 %v3803, %v3915
        %3917 = vmatprep.mubr.bf16.mxu0 %v3064
        %3918 = vmatmul.mubr.bf16.gmra.mrb[0].mxu0 %v3063
        %v3919 = vpop.f32.mrb[0].mxu0
        %v3920 = vadd.f32 %v3807, %v3919
        %v3921 = vpop.f32.mrb[0].mxu0
        %v3922 = vadd.f32 %v3809, %v3921
        %v3923 = vpop.f32.mrb[0].mxu0
        %v3924 = vadd.f32 %v3811, %v3923
        %v3925 = vpop.f32.mrb[0].mxu0
        %v3926 = vadd.f32 %v3813, %v3925
        %3927 = vmatprep.mubr.bf16.mxu0 %v3070
        %3928 = vmatmul.mubr.bf16.gmra.mrb[0].mxu0 %v3069
        %v3929 = vpop.f32.mrb[0].mxu0
        %v3930 = vadd.f32 %v3817, %v3929
        %v3931 = vpop.f32.mrb[0].mxu0
        %v3932 = vadd.f32 %v3819, %v3931
        %v3933 = vpop.f32.mrb[0].mxu0
        %v3934 = vadd.f32 %v3821, %v3933
        %v3935 = vpop.f32.mrb[0].mxu0
        %v3936 = vadd.f32 %v3823, %v3935
        %3937 = vdwg.mxu0
        %v3938 = vld [vmem:[#allocation10] ss:$4 sm:$0x3]
        %v3940 = vlaneseq
        %v3941 = vshrl.u32 %v3940, 7
        %v3942 = vsub.s32 0, %v3941
        %v3943 = vrot.slane %v3938, %v3942
        %v3944 = vlaneseq
        %v3945 = vshrl.u32 %v3944, 7
        %v3946 = vsub.s32 1, %v3945
        %v3947 = vrot.slane %v3938, %v3946
        %v3950 = vadd.f32 %v3860, %v3943
        %v3951 = vadd.f32 %v3862, %v3947
        %v3952 = vadd.f32 %v3864, %v3943
        %v3953 = vadd.f32 %v3866, %v3947
        %v3954 = vadd.f32 %v3870, %v3943
        %v3955 = vadd.f32 %v3872, %v3947
        %v3956 = vadd.f32 %v3874, %v3943
        %v3957 = vadd.f32 %v3876, %v3947
        %v3958 = vadd.f32 %v3880, %v3943
        %v3959 = vadd.f32 %v3882, %v3947
        %v3960 = vadd.f32 %v3884, %v3943
        %v3961 = vadd.f32 %v3886, %v3947
        %v3962 = vadd.f32 %v3890, %v3943
        %v3963 = vadd.f32 %v3892, %v3947
        %v3964 = vadd.f32 %v3894, %v3943
        %v3965 = vadd.f32 %v3896, %v3947
        %v3966 = vadd.f32 %v3900, %v3943
        %v3967 = vadd.f32 %v3902, %v3947
        %v3968 = vadd.f32 %v3904, %v3943
        %v3969 = vadd.f32 %v3906, %v3947
        %v3970 = vadd.f32 %v3910, %v3943
        %v3971 = vadd.f32 %v3912, %v3947
        %v3972 = vadd.f32 %v3914, %v3943
        %v3973 = vadd.f32 %v3916, %v3947
        %v3974 = vadd.f32 %v3920, %v3943
        %v3975 = vadd.f32 %v3922, %v3947
        %v3976 = vadd.f32 %v3924, %v3943
        %v3977 = vadd.f32 %v3926, %v3947
        %v3978 = vadd.f32 %v3930, %v3943
        %v3979 = vadd.f32 %v3932, %v3947
        %v3980 = vadd.f32 %v3934, %v3943
        %v3981 = vadd.f32 %v3936, %v3947
        %v3982 = vmax.f32 %v3950, 0.0
        %v3983 = vmax.f32 %v3951, 0.0
        %v3984 = vmax.f32 %v3952, 0.0
        %v3985 = vmax.f32 %v3953, 0.0
        %v3986 = vmax.f32 %v3954, 0.0
        %v3987 = vmax.f32 %v3955, 0.0
        %v3988 = vmax.f32 %v3956, 0.0
        %v3989 = vmax.f32 %v3957, 0.0
        %v3990 = vmax.f32 %v3958, 0.0
        %v3991 = vmax.f32 %v3959, 0.0
        %v3992 = vmax.f32 %v3960, 0.0
        %v3993 = vmax.f32 %v3961, 0.0
        %v3994 = vmax.f32 %v3962, 0.0
        %v3995 = vmax.f32 %v3963, 0.0
        %v3996 = vmax.f32 %v3964, 0.0
        %v3997 = vmax.f32 %v3965, 0.0
        %v3998 = vmax.f32 %v3966, 0.0
        %v3999 = vmax.f32 %v3967, 0.0
        %v4000 = vmax.f32 %v3968, 0.0
        %v4001 = vmax.f32 %v3969, 0.0
        %v4002 = vmax.f32 %v3970, 0.0
        %v4003 = vmax.f32 %v3971, 0.0
        %v4004 = vmax.f32 %v3972, 0.0
        %v4005 = vmax.f32 %v3973, 0.0
        %v4006 = vmax.f32 %v3974, 0.0
        %v4007 = vmax.f32 %v3975, 0.0
        %v4008 = vmax.f32 %v3976, 0.0
        %v4009 = vmax.f32 %v3977, 0.0
        %v4010 = vmax.f32 %v3978, 0.0
        %v4011 = vmax.f32 %v3979, 0.0
        %v4012 = vmax.f32 %v3980, 0.0
        %v4013 = vmax.f32 %v3981, 0.0
        %v4014 = vpack.c.bf16 %v3984, %v3982
        %v4015 = vpack.c.bf16 %v3985, %v3983
        %v4016 = vpack.c.bf16 %v3988, %v3986
        %v4017 = vpack.c.bf16 %v3989, %v3987
        %v4018 = vpack.c.bf16 %v3992, %v3990
        %v4019 = vpack.c.bf16 %v3993, %v3991
        %v4020 = vpack.c.bf16 %v3996, %v3994
        %v4021 = vpack.c.bf16 %v3997, %v3995
        %v4022 = vpack.c.bf16 %v4000, %v3998
        %v4023 = vpack.c.bf16 %v4001, %v3999
        %v4024 = vpack.c.bf16 %v4004, %v4002
        %v4025 = vpack.c.bf16 %v4005, %v4003
        %v4026 = vpack.c.bf16 %v4008, %v4006
        %v4027 = vpack.c.bf16 %v4009, %v4007
        %v4028 = vpack.c.bf16 %v4012, %v4010
        %v4029 = vpack.c.bf16 %v4013, %v4011
        %v4030 = vld [vmem:[#allocation8] sm:$0xff]
        %v4031 = vld [vmem:[#allocation8 + $0x8] sm:$0xff]
        %v4032 = vld [vmem:[#allocation8 + $0x10] sm:$0xff]
        %v4033 = vld [vmem:[#allocation8 + $0x18] sm:$0xff]
        %v4034 = vld [vmem:[#allocation8 + $0x20] sm:$0xff]
        %v4035 = vld [vmem:[#allocation8 + $0x28] sm:$0xff]
        %v4036 = vld [vmem:[#allocation8 + $0x30] sm:$0xff]
        %v4037 = vld [vmem:[#allocation8 + $0x38] sm:$0xff]
        %v4038 = vld [vmem:[#allocation8 + $0x40] sm:$0xff]
        %v4039 = vld [vmem:[#allocation8 + $0x48] sm:$0xff]
        %v4040 = vld [vmem:[#allocation8 + $0x50] sm:$0xff]
        %v4041 = vld [vmem:[#allocation8 + $0x58] sm:$0xff]
        %v4042 = vld [vmem:[#allocation8 + $0x60] sm:$0xff]
        %v4043 = vld [vmem:[#allocation8 + $0x68] sm:$0xff]
        %v4044 = vld [vmem:[#allocation8 + $0x70] sm:$0xff]
        %v4045 = vld [vmem:[#allocation8 + $0x78] sm:$0xff]
        %v4046 = vld [vmem:[#allocation8 + $0x80] sm:$0xff]
        %v4047 = vld [vmem:[#allocation8 + $0x88] sm:$0xff]
        %v4048 = vld [vmem:[#allocation8 + $0x90] sm:$0xff]
        %v4049 = vld [vmem:[#allocation8 + $0x98] sm:$0xff]
        %v4050 = vld [vmem:[#allocation8 + $0xa0] sm:$0xff]
        %v4051 = vld [vmem:[#allocation8 + $0xa8] sm:$0xff]
        %v4052 = vld [vmem:[#allocation8 + $0xb0] sm:$0xff]
        %v4053 = vld [vmem:[#allocation8 + $0xb8] sm:$0xff]
        %v4054 = vld [vmem:[#allocation8 + $0xc0] sm:$0xff]
        %v4055 = vld [vmem:[#allocation8 + $0xc8] sm:$0xff]
        %v4056 = vld [vmem:[#allocation8 + $0xd0] sm:$0xff]
        %v4057 = vld [vmem:[#allocation8 + $0xd8] sm:$0xff]
        %v4058 = vld [vmem:[#allocation8 + $0xe0] sm:$0xff]
        %v4059 = vld [vmem:[#allocation8 + $0xe8] sm:$0xff]
        %v4060 = vld [vmem:[#allocation8 + $0xf0] sm:$0xff]
        %v4061 = vld [vmem:[#allocation8 + $0xf8] sm:$0xff]
        %s4062 = scalar_lea.vmem [#allocation10], 1
        %v4063 = vld [vmem:[%s4062] ss:$4 sm:$0x3]
        %v4065 = vlaneseq
        %v4066 = vshrl.u32 %v4065, 7
        %v4067 = vsub.s32 0, %v4066
        %v4068 = vrot.slane %v4063, %v4067
        %v4069 = vlaneseq
        %v4070 = vshrl.u32 %v4069, 7
        %v4071 = vsub.s32 1, %v4070
        %v4072 = vrot.slane %v4063, %v4071
        %v4107 = vunpack.c.l.b16 %v4030
        %v4108 = vunpack.c.h.b16 %v4030
        %v4109 = vunpack.c.l.b16 %v4031
        %v4110 = vunpack.c.h.b16 %v4031
        %v4111 = vunpack.c.l.b16 %v4032
        %v4112 = vunpack.c.h.b16 %v4032
        %v4113 = vunpack.c.l.b16 %v4033
        %v4114 = vunpack.c.h.b16 %v4033
        %v4115 = vunpack.c.l.b16 %v4034
        %v4116 = vunpack.c.h.b16 %v4034
        %v4117 = vunpack.c.l.b16 %v4035
        %v4118 = vunpack.c.h.b16 %v4035
        %v4119 = vunpack.c.l.b16 %v4036
        %v4120 = vunpack.c.h.b16 %v4036
        %v4121 = vunpack.c.l.b16 %v4037
        %v4122 = vunpack.c.h.b16 %v4037
        %v4123 = vunpack.c.l.b16 %v4038
        %v4124 = vunpack.c.h.b16 %v4038
        %v4125 = vunpack.c.l.b16 %v4039
        %v4126 = vunpack.c.h.b16 %v4039
        %v4127 = vunpack.c.l.b16 %v4040
        %v4128 = vunpack.c.h.b16 %v4040
        %v4129 = vunpack.c.l.b16 %v4041
        %v4130 = vunpack.c.h.b16 %v4041
        %v4131 = vunpack.c.l.b16 %v4042
        %v4132 = vunpack.c.h.b16 %v4042
        %v4133 = vunpack.c.l.b16 %v4043
        %v4134 = vunpack.c.h.b16 %v4043
        %v4135 = vunpack.c.l.b16 %v4044
        %v4136 = vunpack.c.h.b16 %v4044
        %v4137 = vunpack.c.l.b16 %v4045
        %v4138 = vunpack.c.h.b16 %v4045
        %v4139 = vunpack.c.l.b16 %v4046
        %v4140 = vunpack.c.h.b16 %v4046
        %v4141 = vunpack.c.l.b16 %v4047
        %v4142 = vunpack.c.h.b16 %v4047
        %v4143 = vunpack.c.l.b16 %v4048
        %v4144 = vunpack.c.h.b16 %v4048
        %v4145 = vunpack.c.l.b16 %v4049
        %v4146 = vunpack.c.h.b16 %v4049
        %v4147 = vunpack.c.l.b16 %v4050
        %v4148 = vunpack.c.h.b16 %v4050
        %v4149 = vunpack.c.l.b16 %v4051
        %v4150 = vunpack.c.h.b16 %v4051
        %v4151 = vunpack.c.l.b16 %v4052
        %v4152 = vunpack.c.h.b16 %v4052
        %v4153 = vunpack.c.l.b16 %v4053
        %v4154 = vunpack.c.h.b16 %v4053
        %v4155 = vunpack.c.l.b16 %v4054
        %v4156 = vunpack.c.h.b16 %v4054
        %v4157 = vunpack.c.l.b16 %v4055
        %v4158 = vunpack.c.h.b16 %v4055
        %v4159 = vunpack.c.l.b16 %v4056
        %v4160 = vunpack.c.h.b16 %v4056
        %v4161 = vunpack.c.l.b16 %v4057
        %v4162 = vunpack.c.h.b16 %v4057
        %v4163 = vunpack.c.l.b16 %v4058
        %v4164 = vunpack.c.h.b16 %v4058
        %v4165 = vunpack.c.l.b16 %v4059
        %v4166 = vunpack.c.h.b16 %v4059
        %v4167 = vunpack.c.l.b16 %v4060
        %v4168 = vunpack.c.h.b16 %v4060
        %v4169 = vunpack.c.l.b16 %v4061
        %v4170 = vunpack.c.h.b16 %v4061
        %v4171 = vpack.c.b16 %v4109, %v4107
        %v4172 = vpack.c.b16 %v4110, %v4108
        %v4173 = vpack.c.b16 %v4113, %v4111
        %v4174 = vpack.c.b16 %v4114, %v4112
        %v4175 = vpack.c.b16 %v4117, %v4115
        %v4176 = vpack.c.b16 %v4118, %v4116
        %v4177 = vpack.c.b16 %v4121, %v4119
        %v4178 = vpack.c.b16 %v4122, %v4120
        %v4179 = vpack.c.b16 %v4125, %v4123
        %v4180 = vpack.c.b16 %v4126, %v4124
        %v4181 = vpack.c.b16 %v4129, %v4127
        %v4182 = vpack.c.b16 %v4130, %v4128
        %v4183 = vpack.c.b16 %v4133, %v4131
        %v4184 = vpack.c.b16 %v4134, %v4132
        %v4185 = vpack.c.b16 %v4137, %v4135
        %v4186 = vpack.c.b16 %v4138, %v4136
        %v4187 = vpack.c.b16 %v4141, %v4139
        %v4188 = vpack.c.b16 %v4142, %v4140
        %v4189 = vpack.c.b16 %v4145, %v4143
        %v4190 = vpack.c.b16 %v4146, %v4144
        %v4191 = vpack.c.b16 %v4149, %v4147
        %v4192 = vpack.c.b16 %v4150, %v4148
        %v4193 = vpack.c.b16 %v4153, %v4151
        %v4194 = vpack.c.b16 %v4154, %v4152
        %v4195 = vpack.c.b16 %v4157, %v4155
        %v4196 = vpack.c.b16 %v4158, %v4156
        %v4197 = vpack.c.b16 %v4161, %v4159
        %v4198 = vpack.c.b16 %v4162, %v4160
        %v4199 = vpack.c.b16 %v4165, %v4163
        %v4200 = vpack.c.b16 %v4166, %v4164
        %v4201 = vpack.c.b16 %v4169, %v4167
        %v4202 = vpack.c.b16 %v4170, %v4168
        %4235 = vmatprep.subr.bf16.mxu0 %v4172
        %4236 = vmatpush1.bf16.msra.mxu0 %v4171
        %4237 = vmatprep.subr.bf16.mxu0 %v4174
        %4238 = vmatpush1.bf16.msra.mxu0 %v4173
        %4239 = vmatprep.subr.bf16.mxu0 %v4176
        %4240 = vmatpush1.bf16.msra.mxu0 %v4175
        %4241 = vmatprep.subr.bf16.mxu0 %v4178
        %4242 = vmatpush1.bf16.msra.mxu0 %v4177
        %4243 = vmatprep.subr.bf16.mxu0 %v4180
        %4244 = vmatpush1.bf16.msra.mxu0 %v4179
        %4245 = vmatprep.subr.bf16.mxu0 %v4182
        %4246 = vmatpush1.bf16.msra.mxu0 %v4181
        %4247 = vmatprep.subr.bf16.mxu0 %v4184
        %4248 = vmatpush1.bf16.msra.mxu0 %v4183
        %4249 = vmatprep.subr.bf16.mxu0 %v4186
        %4250 = vmatpush1.bf16.msra.mxu0 %v4185
        %4251 = vmatprep.subr.bf16.mxu0 %v4188
        %4252 = vmatpush1.bf16.msra.mxu0 %v4187
        %4253 = vmatprep.subr.bf16.mxu0 %v4190
        %4254 = vmatpush1.bf16.msra.mxu0 %v4189
        %4255 = vmatprep.subr.bf16.mxu0 %v4192
        %4256 = vmatpush1.bf16.msra.mxu0 %v4191
        %4257 = vmatprep.subr.bf16.mxu0 %v4194
        %4258 = vmatpush1.bf16.msra.mxu0 %v4193
        %4259 = vmatprep.subr.bf16.mxu0 %v4196
        %4260 = vmatpush1.bf16.msra.mxu0 %v4195
        %4261 = vmatprep.subr.bf16.mxu0 %v4198
        %4262 = vmatpush1.bf16.msra.mxu0 %v4197
        %4263 = vmatprep.subr.bf16.mxu0 %v4200
        %4264 = vmatpush1.bf16.msra.mxu0 %v4199
        %4265 = vmatprep.subr.bf16.mxu0 %v4202
        %4266 = vmatpush1.bf16.msra.mxu0 %v4201
        %4267 = vmatprep.mubr.bf16.mxu0 %v4015
        %4268 = vmatmul.mubr.bf16.gmra.mrb[0].mxu0 %v4014
        %v4269 = vpop.f32.mrb[0].mxu0
        %v4270 = vadd.f32 %v4068, %v4269
        %v4271 = vpop.f32.mrb[0].mxu0
        %v4272 = vadd.f32 %v4072, %v4271
        %v4273 = vpop.f32.mrb[0].mxu0
        %v4274 = vadd.f32 %v4068, %v4273
        %v4275 = vpop.f32.mrb[0].mxu0
        %v4276 = vadd.f32 %v4072, %v4275
        %4277 = vmatprep.mubr.bf16.mxu0 %v4017
        %4278 = vmatmul.mubr.bf16.gmra.mrb[0].mxu0 %v4016
        %v4279 = vpop.f32.mrb[0].mxu0
        %v4280 = vadd.f32 %v4068, %v4279
        %v4281 = vpop.f32.mrb[0].mxu0
        %v4282 = vadd.f32 %v4072, %v4281
        %v4283 = vpop.f32.mrb[0].mxu0
        %v4284 = vadd.f32 %v4068, %v4283
        %v4285 = vpop.f32.mrb[0].mxu0
        %v4286 = vadd.f32 %v4072, %v4285
        %4287 = vmatprep.mubr.bf16.mxu0 %v4019
        %4288 = vmatmul.mubr.bf16.gmra.mrb[0].mxu0 %v4018
        %v4289 = vpop.f32.mrb[0].mxu0
        %v4290 = vadd.f32 %v4068, %v4289
        %v4291 = vpop.f32.mrb[0].mxu0
        %v4292 = vadd.f32 %v4072, %v4291
        %v4293 = vpop.f32.mrb[0].mxu0
        %v4294 = vadd.f32 %v4068, %v4293
        %v4295 = vpop.f32.mrb[0].mxu0
        %v4296 = vadd.f32 %v4072, %v4295
        %4297 = vmatprep.mubr.bf16.mxu0 %v4021
        %4298 = vmatmul.mubr.bf16.gmra.mrb[0].mxu0 %v4020
        %v4299 = vpop.f32.mrb[0].mxu0
        %v4300 = vadd.f32 %v4068, %v4299
        %v4301 = vpop.f32.mrb[0].mxu0
        %v4302 = vadd.f32 %v4072, %v4301
        %v4303 = vpop.f32.mrb[0].mxu0
        %v4304 = vadd.f32 %v4068, %v4303
        %v4305 = vpop.f32.mrb[0].mxu0
        %v4306 = vadd.f32 %v4072, %v4305
        %4307 = vmatprep.mubr.bf16.mxu0 %v4023
        %4308 = vmatmul.mubr.bf16.gmra.mrb[0].mxu0 %v4022
        %v4309 = vpop.f32.mrb[0].mxu0
        %v4310 = vadd.f32 %v4068, %v4309
        %v4311 = vpop.f32.mrb[0].mxu0
        %v4312 = vadd.f32 %v4072, %v4311
        %v4313 = vpop.f32.mrb[0].mxu0
        %v4314 = vadd.f32 %v4068, %v4313
        %v4315 = vpop.f32.mrb[0].mxu0
        %v4316 = vadd.f32 %v4072, %v4315
        %4317 = vmatprep.mubr.bf16.mxu0 %v4025
        %4318 = vmatmul.mubr.bf16.gmra.mrb[0].mxu0 %v4024
        %v4319 = vpop.f32.mrb[0].mxu0
        %v4320 = vadd.f32 %v4068, %v4319
        %v4321 = vpop.f32.mrb[0].mxu0
        %v4322 = vadd.f32 %v4072, %v4321
        %v4323 = vpop.f32.mrb[0].mxu0
        %v4324 = vadd.f32 %v4068, %v4323
        %v4325 = vpop.f32.mrb[0].mxu0
        %v4326 = vadd.f32 %v4072, %v4325
        %4327 = vmatprep.mubr.bf16.mxu0 %v4027
        %4328 = vmatmul.mubr.bf16.gmra.mrb[0].mxu0 %v4026
        %v4329 = vpop.f32.mrb[0].mxu0
        %v4330 = vadd.f32 %v4068, %v4329
        %v4331 = vpop.f32.mrb[0].mxu0
        %v4332 = vadd.f32 %v4072, %v4331
        %v4333 = vpop.f32.mrb[0].mxu0
        %v4334 = vadd.f32 %v4068, %v4333
        %v4335 = vpop.f32.mrb[0].mxu0
        %v4336 = vadd.f32 %v4072, %v4335
        %4337 = vmatprep.mubr.bf16.mxu0 %v4029
        %4338 = vmatmul.mubr.bf16.gmra.mrb[0].mxu0 %v4028
        %v4339 = vpop.f32.mrb[0].mxu0
        %v4340 = vadd.f32 %v4068, %v4339
        %v4341 = vpop.f32.mrb[0].mxu0
        %v4342 = vadd.f32 %v4072, %v4341
        %v4343 = vpop.f32.mrb[0].mxu0
        %v4344 = vadd.f32 %v4068, %v4343
        %v4345 = vpop.f32.mrb[0].mxu0
        %v4346 = vadd.f32 %v4072, %v4345
        %4347 = vdwg.mxu0
        %v4348 = vmax.f32 %v4270, 0.0
        %v4349 = vmax.f32 %v4272, 0.0
        %v4350 = vmax.f32 %v4274, 0.0
        %v4351 = vmax.f32 %v4276, 0.0
        %v4352 = vmax.f32 %v4280, 0.0
        %v4353 = vmax.f32 %v4282, 0.0
        %v4354 = vmax.f32 %v4284, 0.0
        %v4355 = vmax.f32 %v4286, 0.0
        %v4356 = vmax.f32 %v4290, 0.0
        %v4357 = vmax.f32 %v4292, 0.0
        %v4358 = vmax.f32 %v4294, 0.0
        %v4359 = vmax.f32 %v4296, 0.0
        %v4360 = vmax.f32 %v4300, 0.0
        %v4361 = vmax.f32 %v4302, 0.0
        %v4362 = vmax.f32 %v4304, 0.0
        %v4363 = vmax.f32 %v4306, 0.0
        %v4364 = vmax.f32 %v4310, 0.0
        %v4365 = vmax.f32 %v4312, 0.0
        %v4366 = vmax.f32 %v4314, 0.0
        %v4367 = vmax.f32 %v4316, 0.0
        %v4368 = vmax.f32 %v4320, 0.0
        %v4369 = vmax.f32 %v4322, 0.0
        %v4370 = vmax.f32 %v4324, 0.0
        %v4371 = vmax.f32 %v4326, 0.0
        %v4372 = vmax.f32 %v4330, 0.0
        %v4373 = vmax.f32 %v4332, 0.0
        %v4374 = vmax.f32 %v4334, 0.0
        %v4375 = vmax.f32 %v4336, 0.0
        %v4376 = vmax.f32 %v4340, 0.0
        %v4377 = vmax.f32 %v4342, 0.0
        %v4378 = vmax.f32 %v4344, 0.0
        %v4379 = vmax.f32 %v4346, 0.0
        %v4380 = vpack.c.bf16 %v4350, %v4348
        %v4381 = vpack.c.bf16 %v4351, %v4349
        %v4382 = vpack.c.bf16 %v4354, %v4352
        %v4383 = vpack.c.bf16 %v4355, %v4353
        %v4384 = vpack.c.bf16 %v4358, %v4356
        %v4385 = vpack.c.bf16 %v4359, %v4357
        %v4386 = vpack.c.bf16 %v4362, %v4360
        %v4387 = vpack.c.bf16 %v4363, %v4361
        %v4388 = vpack.c.bf16 %v4366, %v4364
        %v4389 = vpack.c.bf16 %v4367, %v4365
        %v4390 = vpack.c.bf16 %v4370, %v4368
        %v4391 = vpack.c.bf16 %v4371, %v4369
        %v4392 = vpack.c.bf16 %v4374, %v4372
        %v4393 = vpack.c.bf16 %v4375, %v4373
        %v4394 = vpack.c.bf16 %v4378, %v4376
        %v4395 = vpack.c.bf16 %v4379, %v4377
        %s4396 = scalar_lea.vmem [#allocation8], 256
        %v4397 = vld [vmem:[%s4396] sm:$0xff]
        %v4398 = vld [vmem:[%s4396 + $0x8] sm:$0xff]
        %v4399 = vld [vmem:[%s4396 + $0x10] sm:$0xff]
        %v4400 = vld [vmem:[%s4396 + $0x18] sm:$0xff]
        %v4401 = vld [vmem:[%s4396 + $0x20] sm:$0xff]
        %v4402 = vld [vmem:[%s4396 + $0x28] sm:$0xff]
        %v4403 = vld [vmem:[%s4396 + $0x30] sm:$0xff]
        %v4404 = vld [vmem:[%s4396 + $0x38] sm:$0xff]
        %v4405 = vld [vmem:[%s4396 + $0x40] sm:$0xff]
        %v4406 = vld [vmem:[%s4396 + $0x48] sm:$0xff]
        %v4407 = vld [vmem:[%s4396 + $0x50] sm:$0xff]
        %v4408 = vld [vmem:[%s4396 + $0x58] sm:$0xff]
        %v4409 = vld [vmem:[%s4396 + $0x60] sm:$0xff]
        %v4410 = vld [vmem:[%s4396 + $0x68] sm:$0xff]
        %v4411 = vld [vmem:[%s4396 + $0x70] sm:$0xff]
        %v4412 = vld [vmem:[%s4396 + $0x78] sm:$0xff]
        %v4413 = vld [vmem:[%s4396 + $0x80] sm:$0xff]
        %v4414 = vld [vmem:[%s4396 + $0x88] sm:$0xff]
        %v4415 = vld [vmem:[%s4396 + $0x90] sm:$0xff]
        %v4416 = vld [vmem:[%s4396 + $0x98] sm:$0xff]
        %v4417 = vld [vmem:[%s4396 + $0xa0] sm:$0xff]
        %v4418 = vld [vmem:[%s4396 + $0xa8] sm:$0xff]
        %v4419 = vld [vmem:[%s4396 + $0xb0] sm:$0xff]
        %v4420 = vld [vmem:[%s4396 + $0xb8] sm:$0xff]
        %v4421 = vld [vmem:[%s4396 + $0xc0] sm:$0xff]
        %v4422 = vld [vmem:[%s4396 + $0xc8] sm:$0xff]
        %v4423 = vld [vmem:[%s4396 + $0xd0] sm:$0xff]
        %v4424 = vld [vmem:[%s4396 + $0xd8] sm:$0xff]
        %v4425 = vld [vmem:[%s4396 + $0xe0] sm:$0xff]
        %v4426 = vld [vmem:[%s4396 + $0xe8] sm:$0xff]
        %v4427 = vld [vmem:[%s4396 + $0xf0] sm:$0xff]
        %v4428 = vld [vmem:[%s4396 + $0xf8] sm:$0xff]
        %s4429 = scalar_lea.vmem [#allocation10], 2
        %v4430 = vld [vmem:[%s4429] ss:$4 sm:$0x3]
        %v4432 = vlaneseq
        %v4433 = vshrl.u32 %v4432, 7
        %v4434 = vsub.s32 0, %v4433
        %v4435 = vrot.slane %v4430, %v4434
        %v4436 = vlaneseq
        %v4437 = vshrl.u32 %v4436, 7
        %v4438 = vsub.s32 1, %v4437
        %v4439 = vrot.slane %v4430, %v4438
        %v4474 = vunpack.c.l.b16 %v4397
        %v4475 = vunpack.c.h.b16 %v4397
        %v4476 = vunpack.c.l.b16 %v4398
        %v4477 = vunpack.c.h.b16 %v4398
        %v4478 = vunpack.c.l.b16 %v4399
        %v4479 = vunpack.c.h.b16 %v4399
        %v4480 = vunpack.c.l.b16 %v4400
        %v4481 = vunpack.c.h.b16 %v4400
        %v4482 = vunpack.c.l.b16 %v4401
        %v4483 = vunpack.c.h.b16 %v4401
        %v4484 = vunpack.c.l.b16 %v4402
        %v4485 = vunpack.c.h.b16 %v4402
        %v4486 = vunpack.c.l.b16 %v4403
        %v4487 = vunpack.c.h.b16 %v4403
        %v4488 = vunpack.c.l.b16 %v4404
        %v4489 = vunpack.c.h.b16 %v4404
        %v4490 = vunpack.c.l.b16 %v4405
        %v4491 = vunpack.c.h.b16 %v4405
        %v4492 = vunpack.c.l.b16 %v4406
        %v4493 = vunpack.c.h.b16 %v4406
        %v4494 = vunpack.c.l.b16 %v4407
        %v4495 = vunpack.c.h.b16 %v4407
        %v4496 = vunpack.c.l.b16 %v4408
        %v4497 = vunpack.c.h.b16 %v4408
        %v4498 = vunpack.c.l.b16 %v4409
        %v4499 = vunpack.c.h.b16 %v4409
        %v4500 = vunpack.c.l.b16 %v4410
        %v4501 = vunpack.c.h.b16 %v4410
        %v4502 = vunpack.c.l.b16 %v4411
        %v4503 = vunpack.c.h.b16 %v4411
        %v4504 = vunpack.c.l.b16 %v4412
        %v4505 = vunpack.c.h.b16 %v4412
        %v4506 = vunpack.c.l.b16 %v4413
        %v4507 = vunpack.c.h.b16 %v4413
        %v4508 = vunpack.c.l.b16 %v4414
        %v4509 = vunpack.c.h.b16 %v4414
        %v4510 = vunpack.c.l.b16 %v4415
        %v4511 = vunpack.c.h.b16 %v4415
        %v4512 = vunpack.c.l.b16 %v4416
        %v4513 = vunpack.c.h.b16 %v4416
        %v4514 = vunpack.c.l.b16 %v4417
        %v4515 = vunpack.c.h.b16 %v4417
        %v4516 = vunpack.c.l.b16 %v4418
        %v4517 = vunpack.c.h.b16 %v4418
        %v4518 = vunpack.c.l.b16 %v4419
        %v4519 = vunpack.c.h.b16 %v4419
        %v4520 = vunpack.c.l.b16 %v4420
        %v4521 = vunpack.c.h.b16 %v4420
        %v4522 = vunpack.c.l.b16 %v4421
        %v4523 = vunpack.c.h.b16 %v4421
        %v4524 = vunpack.c.l.b16 %v4422
        %v4525 = vunpack.c.h.b16 %v4422
        %v4526 = vunpack.c.l.b16 %v4423
        %v4527 = vunpack.c.h.b16 %v4423
        %v4528 = vunpack.c.l.b16 %v4424
        %v4529 = vunpack.c.h.b16 %v4424
        %v4530 = vunpack.c.l.b16 %v4425
        %v4531 = vunpack.c.h.b16 %v4425
        %v4532 = vunpack.c.l.b16 %v4426
        %v4533 = vunpack.c.h.b16 %v4426
        %v4534 = vunpack.c.l.b16 %v4427
        %v4535 = vunpack.c.h.b16 %v4427
        %v4536 = vunpack.c.l.b16 %v4428
        %v4537 = vunpack.c.h.b16 %v4428
        %v4538 = vpack.c.b16 %v4476, %v4474
        %v4539 = vpack.c.b16 %v4477, %v4475
        %v4540 = vpack.c.b16 %v4480, %v4478
        %v4541 = vpack.c.b16 %v4481, %v4479
        %v4542 = vpack.c.b16 %v4484, %v4482
        %v4543 = vpack.c.b16 %v4485, %v4483
        %v4544 = vpack.c.b16 %v4488, %v4486
        %v4545 = vpack.c.b16 %v4489, %v4487
        %v4546 = vpack.c.b16 %v4492, %v4490
        %v4547 = vpack.c.b16 %v4493, %v4491
        %v4548 = vpack.c.b16 %v4496, %v4494
        %v4549 = vpack.c.b16 %v4497, %v4495
        %v4550 = vpack.c.b16 %v4500, %v4498
        %v4551 = vpack.c.b16 %v4501, %v4499
        %v4552 = vpack.c.b16 %v4504, %v4502
        %v4553 = vpack.c.b16 %v4505, %v4503
        %v4554 = vpack.c.b16 %v4508, %v4506
        %v4555 = vpack.c.b16 %v4509, %v4507
        %v4556 = vpack.c.b16 %v4512, %v4510
        %v4557 = vpack.c.b16 %v4513, %v4511
        %v4558 = vpack.c.b16 %v4516, %v4514
        %v4559 = vpack.c.b16 %v4517, %v4515
        %v4560 = vpack.c.b16 %v4520, %v4518
        %v4561 = vpack.c.b16 %v4521, %v4519
        %v4562 = vpack.c.b16 %v4524, %v4522
        %v4563 = vpack.c.b16 %v4525, %v4523
        %v4564 = vpack.c.b16 %v4528, %v4526
        %v4565 = vpack.c.b16 %v4529, %v4527
        %v4566 = vpack.c.b16 %v4532, %v4530
        %v4567 = vpack.c.b16 %v4533, %v4531
        %v4568 = vpack.c.b16 %v4536, %v4534
        %v4569 = vpack.c.b16 %v4537, %v4535
        %4602 = vmatprep.subr.bf16.mxu0 %v4539
        %4603 = vmatpush1.bf16.msra.mxu0 %v4538
        %4604 = vmatprep.subr.bf16.mxu0 %v4541
        %4605 = vmatpush1.bf16.msra.mxu0 %v4540
        %4606 = vmatprep.subr.bf16.mxu0 %v4543
        %4607 = vmatpush1.bf16.msra.mxu0 %v4542
        %4608 = vmatprep.subr.bf16.mxu0 %v4545
        %4609 = vmatpush1.bf16.msra.mxu0 %v4544
        %4610 = vmatprep.subr.bf16.mxu0 %v4547
        %4611 = vmatpush1.bf16.msra.mxu0 %v4546
        %4612 = vmatprep.subr.bf16.mxu0 %v4549
        %4613 = vmatpush1.bf16.msra.mxu0 %v4548
        %4614 = vmatprep.subr.bf16.mxu0 %v4551
        %4615 = vmatpush1.bf16.msra.mxu0 %v4550
        %4616 = vmatprep.subr.bf16.mxu0 %v4553
        %4617 = vmatpush1.bf16.msra.mxu0 %v4552
        %4618 = vmatprep.subr.bf16.mxu0 %v4555
        %4619 = vmatpush1.bf16.msra.mxu0 %v4554
        %4620 = vmatprep.subr.bf16.mxu0 %v4557
        %4621 = vmatpush1.bf16.msra.mxu0 %v4556
        %4622 = vmatprep.subr.bf16.mxu0 %v4559
        %4623 = vmatpush1.bf16.msra.mxu0 %v4558
        %4624 = vmatprep.subr.bf16.mxu0 %v4561
        %4625 = vmatpush1.bf16.msra.mxu0 %v4560
        %4626 = vmatprep.subr.bf16.mxu0 %v4563
        %4627 = vmatpush1.bf16.msra.mxu0 %v4562
        %4628 = vmatprep.subr.bf16.mxu0 %v4565
        %4629 = vmatpush1.bf16.msra.mxu0 %v4564
        %4630 = vmatprep.subr.bf16.mxu0 %v4567
        %4631 = vmatpush1.bf16.msra.mxu0 %v4566
        %4632 = vmatprep.subr.bf16.mxu0 %v4569
        %4633 = vmatpush1.bf16.msra.mxu0 %v4568
        %4634 = vmatprep.mubr.bf16.mxu0 %v4381
        %4635 = vmatmul.mubr.bf16.gmra.mrb[0].mxu0 %v4380
        %v4636 = vpop.f32.mrb[0].mxu0
        %v4637 = vadd.f32 %v4435, %v4636
        %v4638 = vpop.f32.mrb[0].mxu0
        %v4639 = vadd.f32 %v4439, %v4638
        %v4640 = vpop.f32.mrb[0].mxu0
        %v4641 = vadd.f32 %v4435, %v4640
        %v4642 = vpop.f32.mrb[0].mxu0
        %v4643 = vadd.f32 %v4439, %v4642
        %4644 = vmatprep.mubr.bf16.mxu0 %v4383
        %4645 = vmatmul.mubr.bf16.gmra.mrb[0].mxu0 %v4382
        %v4646 = vpop.f32.mrb[0].mxu0
        %v4647 = vadd.f32 %v4435, %v4646
        %v4648 = vpop.f32.mrb[0].mxu0
        %v4649 = vadd.f32 %v4439, %v4648
        %v4650 = vpop.f32.mrb[0].mxu0
        %v4651 = vadd.f32 %v4435, %v4650
        %v4652 = vpop.f32.mrb[0].mxu0
        %v4653 = vadd.f32 %v4439, %v4652
        %4654 = vmatprep.mubr.bf16.mxu0 %v4385
        %4655 = vmatmul.mubr.bf16.gmra.mrb[0].mxu0 %v4384
        %v4656 = vpop.f32.mrb[0].mxu0
        %v4657 = vadd.f32 %v4435, %v4656
        %v4658 = vpop.f32.mrb[0].mxu0
        %v4659 = vadd.f32 %v4439, %v4658
        %v4660 = vpop.f32.mrb[0].mxu0
        %v4661 = vadd.f32 %v4435, %v4660
        %v4662 = vpop.f32.mrb[0].mxu0
        %v4663 = vadd.f32 %v4439, %v4662
        %4664 = vmatprep.mubr.bf16.mxu0 %v4387
        %4665 = vmatmul.mubr.bf16.gmra.mrb[0].mxu0 %v4386
        %v4666 = vpop.f32.mrb[0].mxu0
        %v4667 = vadd.f32 %v4435, %v4666
        %v4668 = vpop.f32.mrb[0].mxu0
        %v4669 = vadd.f32 %v4439, %v4668
        %v4670 = vpop.f32.mrb[0].mxu0
        %v4671 = vadd.f32 %v4435, %v4670
        %v4672 = vpop.f32.mrb[0].mxu0
        %v4673 = vadd.f32 %v4439, %v4672
        %4674 = vmatprep.mubr.bf16.mxu0 %v4389
        %4675 = vmatmul.mubr.bf16.gmra.mrb[0].mxu0 %v4388
        %v4676 = vpop.f32.mrb[0].mxu0
        %v4677 = vadd.f32 %v4435, %v4676
        %v4678 = vpop.f32.mrb[0].mxu0
        %v4679 = vadd.f32 %v4439, %v4678
        %v4680 = vpop.f32.mrb[0].mxu0
        %v4681 = vadd.f32 %v4435, %v4680
        %v4682 = vpop.f32.mrb[0].mxu0
        %v4683 = vadd.f32 %v4439, %v4682
        %4684 = vmatprep.mubr.bf16.mxu0 %v4391
        %4685 = vmatmul.mubr.bf16.gmra.mrb[0].mxu0 %v4390
        %v4686 = vpop.f32.mrb[0].mxu0
        %v4687 = vadd.f32 %v4435, %v4686
        %v4688 = vpop.f32.mrb[0].mxu0
        %v4689 = vadd.f32 %v4439, %v4688
        %v4690 = vpop.f32.mrb[0].mxu0
        %v4691 = vadd.f32 %v4435, %v4690
        %v4692 = vpop.f32.mrb[0].mxu0
        %v4693 = vadd.f32 %v4439, %v4692
        %4694 = vmatprep.mubr.bf16.mxu0 %v4393
        %4695 = vmatmul.mubr.bf16.gmra.mrb[0].mxu0 %v4392
        %v4696 = vpop.f32.mrb[0].mxu0
        %v4697 = vadd.f32 %v4435, %v4696
        %v4698 = vpop.f32.mrb[0].mxu0
        %v4699 = vadd.f32 %v4439, %v4698
        %v4700 = vpop.f32.mrb[0].mxu0
        %v4701 = vadd.f32 %v4435, %v4700
        %v4702 = vpop.f32.mrb[0].mxu0
        %v4703 = vadd.f32 %v4439, %v4702
        %4704 = vmatprep.mubr.bf16.mxu0 %v4395
        %4705 = vmatmul.mubr.bf16.gmra.mrb[0].mxu0 %v4394
        %v4706 = vpop.f32.mrb[0].mxu0
        %v4707 = vadd.f32 %v4435, %v4706
        %v4708 = vpop.f32.mrb[0].mxu0
        %v4709 = vadd.f32 %v4439, %v4708
        %v4710 = vpop.f32.mrb[0].mxu0
        %v4711 = vadd.f32 %v4435, %v4710
        %v4712 = vpop.f32.mrb[0].mxu0
        %v4713 = vadd.f32 %v4439, %v4712
        %4714 = vdwg.mxu0
        %4715 = vst [vmem:[%s325] sm:$0xff] %v4637
        %4716 = vst [vmem:[%s325 + $0x8] sm:$0xff] %v4639
        %4717 = vst [vmem:[%s325 + $0x10] sm:$0xff] %v4641
        %4718 = vst [vmem:[%s325 + $0x18] sm:$0xff] %v4643
        %4719 = vst [vmem:[%s325 + $0x20] sm:$0xff] %v4647
        %4720 = vst [vmem:[%s325 + $0x28] sm:$0xff] %v4649
        %4721 = vst [vmem:[%s325 + $0x30] sm:$0xff] %v4651
        %4722 = vst [vmem:[%s325 + $0x38] sm:$0xff] %v4653
        %4723 = vst [vmem:[%s325 + $0x40] sm:$0xff] %v4657
        %4724 = vst [vmem:[%s325 + $0x48] sm:$0xff] %v4659
        %4725 = vst [vmem:[%s325 + $0x50] sm:$0xff] %v4661
        %4726 = vst [vmem:[%s325 + $0x58] sm:$0xff] %v4663
        %4727 = vst [vmem:[%s325 + $0x60] sm:$0xff] %v4667
        %4728 = vst [vmem:[%s325 + $0x68] sm:$0xff] %v4669
        %4729 = vst [vmem:[%s325 + $0x70] sm:$0xff] %v4671
        %4730 = vst [vmem:[%s325 + $0x78] sm:$0xff] %v4673
        %4731 = vst [vmem:[%s325 + $0x80] sm:$0xff] %v4677
        %4732 = vst [vmem:[%s325 + $0x88] sm:$0xff] %v4679
        %4733 = vst [vmem:[%s325 + $0x90] sm:$0xff] %v4681
        %4734 = vst [vmem:[%s325 + $0x98] sm:$0xff] %v4683
        %4735 = vst [vmem:[%s325 + $0xa0] sm:$0xff] %v4687
        %4736 = vst [vmem:[%s325 + $0xa8] sm:$0xff] %v4689
        %4737 = vst [vmem:[%s325 + $0xb0] sm:$0xff] %v4691
        %4738 = vst [vmem:[%s325 + $0xb8] sm:$0xff] %v4693
        %4739 = vst [vmem:[%s325 + $0xc0] sm:$0xff] %v4697
        %4740 = vst [vmem:[%s325 + $0xc8] sm:$0xff] %v4699
        %4741 = vst [vmem:[%s325 + $0xd0] sm:$0xff] %v4701
        %4742 = vst [vmem:[%s325 + $0xd8] sm:$0xff] %v4703
        %4743 = vst [vmem:[%s325 + $0xe0] sm:$0xff] %v4707
        %4744 = vst [vmem:[%s325 + $0xe8] sm:$0xff] %v4709
        %4745 = vst [vmem:[%s325 + $0xf0] sm:$0xff] %v4711
        %4746 = vst [vmem:[%s325 + $0xf8] sm:$0xff] %v4713
        %s4747 = sand.u32 %s149, 1
        %s4748 = scalar_lea.sflag [#allocation4], %s4747
        %s4749 = sand.u32 %s149, 1
        %s4750 = smul.addr %s4749, 256
        %s4751 = scalar_lea.vmem [#allocation11], %s4750
        // Predicated region
        $region61: #{tpu_custom_call.1} parent=39 // pred_check
          %p4752 = pneg %p159
        $region62: #{tpu_custom_call.1} parent=39 // pred_check_branch
          %4754 = sbr.rel (%p4752) target = $region64
        $region63: #{tpu_custom_call.1} parent=39 // pred_region
          %s4755 = smul.u32 16, %s26
          %s4757 = ssub.s32 4096, 4096
          %4758 = vsyncadd %s4748, %s4757
          %s4759 = smul.addr %s4755, 2
          %s4760 = smul.addr %s4759, 128
          %s4761 = scalar_lea.hbm %s5, %s4760
          %s4762 = sshll.u32 %s4751, 4
          %s4763 = int_to_ptr.vmem [resolvable:$true] %s4762
          %4768 = dma.vmem_to_hbm [thread:$0]  %s4763, 4096, %s4761, %s4748, 256, 256, 16
        $region64: #{tpu_custom_call.1} parent=39 // pred_fallthru
          _
      $region40: #{tpu_custom_call.1} parent=5 // pred_fallthru
        _
      %p4769 = scmp.le.s32.totalorder 2, %s21
      // Predicated region
      $region65: #{tpu_custom_call.1} parent=5 // pred_check
        %p4770 = pneg %p4769
      $region66: #{tpu_custom_call.1} parent=5 // pred_check_branch
        %4772 = sbr.rel (%p4770) target = $region68
      $region67: #{tpu_custom_call.1} parent=5 // pred_region
        %s4773 = ssub.s32 %s21, 2
        // Predicated region
        $region69: #{tpu_custom_call.1} parent=67 // pred_check
          %p4774 = pneg %p165
        $region70: #{tpu_custom_call.1} parent=67 // pred_check_branch
          %4776 = sbr.rel (%p4774) target = $region72
        $region71: #{tpu_custom_call.1} parent=67 // pred_region
          %s4777 = sand.u32 %s150, 1
          %s4778 = scalar_lea.sflag [#allocation4], %s4777
          %s4779 = sand.u32 %s150, 1
          %s4780 = smul.addr %s4779, 256
          %s4781 = scalar_lea.vmem [#allocation11], %s4780
          %4782 = dma.done %s4778, 4096
        $region72: #{tpu_custom_call.1} parent=67 // pred_fallthru
          _
      $region68: #{tpu_custom_call.1} parent=5 // pred_fallthru
        _
    $region6: #{tpu_custom_call.1} parent=1 // loop_footer
      %s25 = sadd.s32 1, %s21
    $region7: #{tpu_custom_call.1} parent=1 // loop_footer_branch
      %20 = sbr.rel target = $region3
    $region8: #{tpu_custom_call.1} parent=1 // loop_exit
      _
    %4783 = vsyncpa [#allocation3], 1
    %s4784 = scalar_lea.sflag [#allocation3], 1
    %4785 = vsyncpa %s4784, 1
    %4786 = vsyncpa [#allocation6], 1
    %s4787 = scalar_lea.sflag [#allocation6], 1
    %4788 = vsyncpa %s4787, 1
    %4789 = vsyncpa [#allocation9], 1
    %4790 = vsyncpa [#allocation4], 1
    %s4791 = scalar_lea.sflag [#allocation4], 1
    %4792 = vsyncpa %s4791, 1

</llo_original>
